<compile_context>
chip_gen: v5e
topology: v5e:2x2
jax: 0.10.0
libtpu: 0.0.40
codegen_flags: <defaults>
</compile_context>

<pallas_src>
import numpy as np

import jax
import jax.numpy as jnp
from jax.experimental import pallas as pl
from jax.experimental.pallas import tpu as pltpu

EPS = 1e-5          # nn.InstanceNorm2d default eps (affine=False, biased var)
NEG_SLOPE = 0.2     # LeakyReLU slope
VMEM_LIMIT = 32 * 1024 * 1024   # explicit scoped-VMEM budget (safe on v5e/v6e/v7x)


# ----------------------------- kernel helpers -------------------------------

def _in_lrelu(y):
    """InstanceNorm2d (affine=False, biased variance) + LeakyReLU(0.2).

    y: (M, C) f32, M = spatial positions of one sample.  Stays f32 (v5e has no
    bf16 VALU/EUP); rsqrt goes to the EUP slot.
    """
    mean = jnp.mean(y, axis=0, keepdims=True)
    var = jnp.mean(jnp.square(y - mean), axis=0, keepdims=True)
    yn = (y - mean) * jax.lax.rsqrt(var + EPS)
    return jnp.where(yn >= 0, yn, NEG_SLOPE * yn)


def _make_fused_kernel(nb, m2, m3, c2, c3):
    """Builds the fused kernel for NB samples per grid step (static loop)."""

    def kernel(p1_ref, w1_ref, s2_ref, w2s_ref, s3_ref, w3s_ref,
               w4_ref, b4_ref, o_ref):
        # Constant, VMEM-resident operands (fetched once: constant index_map).
        w1 = w1_ref[...]          # (48, d)        bf16
        s2 = s2_ref[...]          # (16*m2, m1)    bf16 one-hot gather
        s3 = s3_ref[...]          # (16*m3, m2)    bf16 one-hot gather
        w4 = w4_ref[...]          # (16, 4d)       f32  head weight
        b4 = b4_ref[...]          # (1, 1)         f32  head bias

        for n in range(nb):                                   # static unroll
            # ---- block 1: conv1 (im2col matmul) + IN + LeakyReLU ----------
            x1 = p1_ref[n]                                    # (m1, 48) bf16
            h1 = jnp.dot(x1, w1, preferred_element_type=jnp.float32)
            h1b = _in_lrelu(h1).astype(jnp.bfloat16)          # (m1, d)

            # ---- block 2: in-kernel 4x4/s2/p1 patch gather + conv2 + IN ----
            # g2[t*m2:(t+1)*m2] == shifted/zero-padded copy of h1 for kernel
            # offset t=(i,j); exact gather via one-hot matmul on the MXU.
            g2 = jnp.dot(s2, h1b, preferred_element_type=jnp.float32)
            g2 = g2.astype(jnp.bfloat16)                      # (16*m2, d)
            acc2 = jnp.zeros((m2, c2), jnp.float32)
            for t in range(16):
                acc2 = acc2 + jnp.dot(g2[t * m2:(t + 1) * m2], w2s_ref[t],
                                      preferred_element_type=jnp.float32)
            h2b = _in_lrelu(acc2).astype(jnp.bfloat16)        # (m2, 2d)

            # ---- block 3: same scheme ------------------------------------
            g3 = jnp.dot(s3, h2b, preferred_element_type=jnp.float32)
            g3 = g3.astype(jnp.bfloat16)                      # (16*m3, 2d)
            acc3 = jnp.zeros((m3, c3), jnp.float32)
            for t in range(16):
                acc3 = acc3 + jnp.dot(g3[t * m3:(t + 1) * m3], w3s_ref[t],
                                      preferred_element_type=jnp.float32)
            h3 = _in_lrelu(acc3)                              # (m3=16, 4d) f32

            # ---- head: Conv2d(4d, 1, 4, s=1, p=0) over the 4x4 map ---------
            # == full elementwise dot with the (4*4, 4d) weight + bias.
            o_ref[n] = jnp.sum(h3 * w4, keepdims=True) + b4   # (1, 1)

    return kernel


# ----------------------------- Pallas wrapper -------------------------------

def _pick_nb(n):
    """Samples per grid step: amortize the ~0.35us/step cost but keep >=2 grid
    steps when possible so both v7x TensorCores get work."""
    cap = min(8, max(1, n // 2))
    for nb in range(cap, 0, -1):
        if n % nb == 0:
            return nb
    return 1


def fused_discriminator(p1, pp, nb):
    """p1: (N, m1, 48) bf16 layer-1 patches; pp: packed params; nb divides N."""
    n, m1, k1 = p1.shape
    w1, s2, w2s, s3, w3s, w4, b4 = (pp["w1"], pp["s2"], pp["w2s"], pp["s3"],
                                    pp["w3s"], pp["w4"], pp["b4"])
    m2 = s2.shape[0] // 16
    m3 = s3.shape[0] // 16
    c2 = w2s.shape[2]
    c3 = w3s.shape[2]

    kernel = _make_fused_kernel(nb, m2, m3, c2, c3)
    out = pl.pallas_call(
        kernel,
        out_shape=jax.ShapeDtypeStruct((n, 1, 1), jnp.float32),
        grid=(n // nb,),
        in_specs=[
            pl.BlockSpec((nb, m1, k1), lambda g: (g, 0, 0)),   # per-step patches
            pl.BlockSpec(w1.shape, lambda g: (0, 0)),          # constants:
            pl.BlockSpec(s2.shape, lambda g: (0, 0)),
            pl.BlockSpec(w2s.shape, lambda g: (0, 0, 0)),
            pl.BlockSpec(s3.shape, lambda g: (0, 0)),
            pl.BlockSpec(w3s.shape, lambda g: (0, 0, 0)),
            pl.BlockSpec(w4.shape, lambda g: (0, 0)),
            pl.BlockSpec(b4.shape, lambda g: (0, 0)),
        ],
        out_specs=pl.BlockSpec((nb, 1, 1), lambda g: (g, 0, 0)),
        compiler_params=pltpu.CompilerParams(
            dimension_semantics=("parallel",),
            vmem_limit_bytes=VMEM_LIMIT,
        ),
    )(p1, w1, s2, w2s, s3, w3s, w4, b4)
    return out


# ------------------------------- XLA glue -----------------------------------

def _im2col(x, kh, kw, stride, pad):
    """x: (N,H,W,C) NHWC -> bf16 patches (N, OH*OW, kh*kw*C), row order p*OW+q,
    last-dim order (i, j, c).  One-time glue on the raw input only."""
    if pad:
        x = jnp.pad(x, ((0, 0), (pad, pad), (pad, pad), (0, 0)))
    n, hp, wp, c = x.shape
    oh = (hp - kh) // stride + 1
    ow = (wp - kw) // stride + 1
    cols = []
    for i in range(kh):
        for j in range(kw):
            cols.append(x[:, i:i + stride * oh:stride, j:j + stride * ow:stride, :])
    p = jnp.stack(cols, axis=3).reshape(n, oh * ow, kh * kw * c)
    return p.astype(jnp.bfloat16), oh, ow


def _build_selection(in_h, in_w, k=4, stride=2, pad=1):
    """One-hot gather matrix for a kxk/stride/pad conv: S[(i*k+j)*M_out + m_out,
    m_in] = 1 iff input pos of offset (i,j) for output m_out is m_in (in-bounds);
    out-of-bounds rows stay all-zero (implicit zero padding)."""
    oh = (in_h + 2 * pad - k) // stride + 1
    ow = (in_w + 2 * pad - k) // stride + 1
    m_in, m_out = in_h * in_w, oh * ow
    s = np.zeros((k * k * m_out, m_in), np.float32)
    for i in range(k):
        for j in range(k):
            t = i * k + j
            for p in range(oh):
                h = stride * p - pad + i
                if not 0 <= h < in_h:
                    continue
                for q in range(ow):
                    w = stride * q - pad + j
                    if 0 <= w < in_w:
                        s[t * m_out + p * ow + q, h * in_w + w] = 1.0
    return s, oh, ow


# ------------------------------ model / params ------------------------------

def init_params(key, d=32):
    """PyTorch-style uniform(-1/sqrt(fan_in), 1/sqrt(fan_in)) init, HWIO weights."""
    def conv_init(kw_key, kb_key, kh, kw, cin, cout):
        fan_in = kh * kw * cin
        bound = 1.0 / jnp.sqrt(jnp.float32(fan_in))
        w = jax.random.uniform(kw_key, (kh, kw, cin, cout), jnp.float32, -bound, bound)
        b = jax.random.uniform(kb_key, (cout,), jnp.float32, -bound, bound)
        return w, b

    keys = jax.random.split(key, 8)
    p = {}
    p["w1"], p["b1"] = conv_init(keys[0], keys[1], 4, 4, 3, d)
    p["w2"], p["b2"] = conv_init(keys[2], keys[3], 4, 4, d, 2 * d)
    p["w3"], p["b3"] = conv_init(keys[4], keys[5], 4, 4, 2 * d, 4 * d)
    p["w4"], p["b4"] = conv_init(keys[6], keys[7], 4, 4, 4 * d, 1)
    return p


def pack_params(params, in_hw=(32, 32)):
    """One-time packing: bf16 MXU weights, per-offset weight slices for the
    fused layers, one-hot gather matrices, f32 head weight.  b1..b3 dropped
    (no-op before affine-less InstanceNorm)."""
    h, w = in_hw
    d = params["w1"].shape[3]
    oh1, ow1 = (h + 2 - 4) // 2 + 1, (w + 2 - 4) // 2 + 1
    s2_np, oh2, ow2 = _build_selection(oh1, ow1)
    s3_np, oh3, ow3 = _build_selection(oh2, ow2)
    if (oh3, ow3) != (4, 4):
        raise ValueError("fused head requires a 4x4 pre-head map (32x32 input)")

    pp = {}
    pp["w1"] = params["w1"].reshape(4 * 4 * 3, d).astype(jnp.bfloat16)        # (48, d)
    pp["s2"] = jnp.asarray(s2_np, jnp.bfloat16)                               # (16*64, 256)
    pp["w2s"] = params["w2"].reshape(16, d, 2 * d).astype(jnp.bfloat16)       # (16, d, 2d)
    pp["s3"] = jnp.asarray(s3_np, jnp.bfloat16)                               # (16*16, 64)
    pp["w3s"] = params["w3"].reshape(16, 2 * d, 4 * d).astype(jnp.bfloat16)   # (16, 2d, 4d)
    pp["w4"] = params["w4"].reshape(16, 4 * d).astype(jnp.float32)            # (16, 4d)
    pp["b4"] = params["b4"].reshape(1, 1).astype(jnp.float32)
    return pp


def discriminator_forward(pp, x_nchw):
    """pp: packed params; x_nchw: (N, 3, 32, 32) -> squeezed output (N,)."""
    x = jnp.transpose(x_nchw, (0, 2, 3, 1)).astype(jnp.float32)   # NHWC
    n = x.shape[0]
    p1, _, _ = _im2col(x, 4, 4, 2, 1)                             # (N, 256, 48) bf16
    out = fused_discriminator(p1, pp, _pick_nb(n))                # (N, 1, 1)
    return jnp.squeeze(out)


# ---------------------------------- main -------------------------------------

if __name__ == "__main__":
    key = jax.random.PRNGKey(0)
    k_param, k_input = jax.random.split(key)

    d = 32
    # 32x32 RGB input: 32 -> 16 -> 8 -> 4 -> 1 spatial, output shape (2,)
    x = jax.random.normal(k_input, (2, 3, 32, 32), dtype=jnp.float32)
    params = init_params(k_param, d=d)
    packed = pack_params(params, in_hw=(32, 32))   # one-time weight/gather packing

    fwd = jax.jit(discriminator_forward)
    out = fwd(packed, x)
    jax.block_until_ready(out)

    assert out.shape == (2,), f"unexpected output shape {out.shape}"
    assert bool(jnp.all(jnp.isfinite(out))), "non-finite output"
    print("KERNEL_OK")
</pallas_src>

<mosaic_0001>
module attributes {stable_mosaic.version = 11 : i64} {
  func.func @kernel(%arg0: i32, %arg1: memref<1x256x48xbf16, #tpu.memory_space<vmem>>, %arg2: memref<48x32xbf16, #tpu.memory_space<vmem>>, %arg3: memref<1024x256xbf16, #tpu.memory_space<vmem>>, %arg4: memref<16x32x64xbf16, #tpu.memory_space<vmem>>, %arg5: memref<256x64xbf16, #tpu.memory_space<vmem>>, %arg6: memref<16x64x128xbf16, #tpu.memory_space<vmem>>, %arg7: memref<16x128xf32, #tpu.memory_space<vmem>>, %arg8: memref<1x1xf32, #tpu.memory_space<vmem>>, %arg9: memref<1x1x1xf32, #tpu.memory_space<vmem>>) attributes {dimension_semantics = [#tpu.dimension_semantics<parallel>], iteration_bounds = array<i64: 2>, scalar_prefetch = 0 : i64, scratch_operands = 0 : i64, tpu.core_type = #tpu.core_type<tc>, window_params = [{transform_indices = @transform_0, window_bounds = array<i64: 1, 256, 48>}, {pipeline_mode = #tpu.pipeline_mode<synchronous>, transform_indices = @transform_1, window_bounds = array<i64: 48, 32>}, {pipeline_mode = #tpu.pipeline_mode<synchronous>, transform_indices = @transform_2, window_bounds = array<i64: 1024, 256>}, {pipeline_mode = #tpu.pipeline_mode<synchronous>, transform_indices = @transform_3, window_bounds = array<i64: 16, 32, 64>}, {pipeline_mode = #tpu.pipeline_mode<synchronous>, transform_indices = @transform_4, window_bounds = array<i64: 256, 64>}, {pipeline_mode = #tpu.pipeline_mode<synchronous>, transform_indices = @transform_5, window_bounds = array<i64: 16, 64, 128>}, {pipeline_mode = #tpu.pipeline_mode<synchronous>, transform_indices = @transform_6, window_bounds = array<i64: 16, 128>}, {pipeline_mode = #tpu.pipeline_mode<synchronous>, transform_indices = @transform_7, window_bounds = array<i64: 1, 1>}, {transform_indices = @transform_8, window_bounds = array<i64: 1, 1, 1>}]} {
    %c0 = arith.constant 0 : index
    %c0_0 = arith.constant 0 : index
    %0 = vector.load %arg2[%c0, %c0_0] : memref<48x32xbf16, #tpu.memory_space<vmem>>, vector<48x32xbf16>
    %c0_1 = arith.constant 0 : index
    %c0_2 = arith.constant 0 : index
    %1 = vector.load %arg3[%c0_1, %c0_2] : memref<1024x256xbf16, #tpu.memory_space<vmem>>, vector<1024x256xbf16>
    %c0_3 = arith.constant 0 : index
    %c0_4 = arith.constant 0 : index
    %2 = vector.load %arg5[%c0_3, %c0_4] : memref<256x64xbf16, #tpu.memory_space<vmem>>, vector<256x64xbf16>
    %c0_5 = arith.constant 0 : index
    %c0_6 = arith.constant 0 : index
    %3 = vector.load %arg7[%c0_5, %c0_6] : memref<16x128xf32, #tpu.memory_space<vmem>>, vector<16x128xf32>
    %c0_7 = arith.constant 0 : index
    %c0_8 = arith.constant 0 : index
    %4 = vector.load %arg8[%c0_7, %c0_8] : memref<1x1xf32, #tpu.memory_space<vmem>>, vector<1x1xf32>
    %c0_9 = arith.constant 0 : index
    %c0_10 = arith.constant 0 : index
    %c0_11 = arith.constant 0 : index
    %5 = vector.load %arg1[%c0_9, %c0_10, %c0_11] : memref<1x256x48xbf16, #tpu.memory_space<vmem>>, vector<1x256x48xbf16>
    %6 = vector.shape_cast %5 : vector<1x256x48xbf16> to vector<256x48xbf16>
    %cst = arith.constant dense<0.000000e+00> : vector<256x32xf32>
    %7 = tpu.matmul %6, %0, %cst {dimension_numbers = #tpu.dot_dimension_numbers<[1], [0], [0], [1], [0, 0, 1, 1], [], []>} : vector<256x48xbf16>, vector<48x32xbf16>, vector<256x32xf32> -> vector<256x32xf32>
    %cst_12 = arith.constant dense<0.000000e+00> : vector<32xf32>
    %8 = vector.multi_reduction <add>, %7, %cst_12 [0] : vector<256x32xf32> to vector<32xf32>
    %9 = vector.shape_cast %8 : vector<32xf32> to vector<1x32xf32>
    %cst_13 = arith.constant 2.560000e+02 : f32
    %10 = vector.broadcast %cst_13 : f32 to vector<1x32xf32>
    %11 = arith.divf %9, %10 : vector<1x32xf32>
    %12 = vector.broadcast %11 : vector<1x32xf32> to vector<256x32xf32>
    %13 = arith.subf %7, %12 : vector<256x32xf32>
    %14 = arith.mulf %13, %13 : vector<256x32xf32>
    %cst_14 = arith.constant dense<0.000000e+00> : vector<32xf32>
    %15 = vector.multi_reduction <add>, %14, %cst_14 [0] : vector<256x32xf32> to vector<32xf32>
    %16 = vector.shape_cast %15 : vector<32xf32> to vector<1x32xf32>
    %cst_15 = arith.constant 2.560000e+02 : f32
    %17 = vector.broadcast %cst_15 : f32 to vector<1x32xf32>
    %18 = arith.divf %16, %17 : vector<1x32xf32>
    %19 = vector.broadcast %11 : vector<1x32xf32> to vector<256x32xf32>
    %20 = arith.subf %7, %19 : vector<256x32xf32>
    %cst_16 = arith.constant 9.99999974E-6 : f32
    %21 = vector.broadcast %cst_16 : f32 to vector<1x32xf32>
    %22 = arith.addf %18, %21 : vector<1x32xf32>
    %23 = math.rsqrt %22 : vector<1x32xf32>
    %24 = vector.broadcast %23 : vector<1x32xf32> to vector<256x32xf32>
    %25 = arith.mulf %20, %24 : vector<256x32xf32>
    %cst_17 = arith.constant 0.000000e+00 : f32
    %26 = vector.broadcast %cst_17 : f32 to vector<256x32xf32>
    %27 = arith.cmpf oge, %25, %26 : vector<256x32xf32>
    %cst_18 = arith.constant 2.000000e-01 : f32
    %28 = vector.broadcast %cst_18 : f32 to vector<256x32xf32>
    %29 = arith.mulf %28, %25 : vector<256x32xf32>
    %30 = arith.select %27, %25, %29 : vector<256x32xi1>, vector<256x32xf32>
    %31 = arith.truncf %30 : vector<256x32xf32> to vector<256x32xbf16>
    %cst_19 = arith.constant dense<0.000000e+00> : vector<1024x32xf32>
    %32 = tpu.matmul %1, %31, %cst_19 {dimension_numbers = #tpu.dot_dimension_numbers<[1], [0], [0], [1], [0, 0, 1, 1], [], []>} : vector<1024x256xbf16>, vector<256x32xbf16>, vector<1024x32xf32> -> vector<1024x32xf32>
    %33 = arith.truncf %32 : vector<1024x32xf32> to vector<1024x32xbf16>
    %cst_20 = arith.constant 0.000000e+00 : f32
    %34 = vector.broadcast %cst_20 : f32 to vector<64x64xf32>
    %35 = vector.extract_strided_slice %33 {offsets = [0, 0], sizes = [64, 32], strides = [1, 1]} : vector<1024x32xbf16> to vector<64x32xbf16>
    %c0_21 = arith.constant 0 : index
    %c0_22 = arith.constant 0 : index
    %c0_23 = arith.constant 0 : index
    %36 = vector.load %arg4[%c0_21, %c0_22, %c0_23] : memref<16x32x64xbf16, #tpu.memory_space<vmem>>, vector<1x32x64xbf16>
    %37 = vector.shape_cast %36 : vector<1x32x64xbf16> to vector<32x64xbf16>
    %cst_24 = arith.constant dense<0.000000e+00> : vector<64x64xf32>
    %38 = tpu.matmul %35, %37, %cst_24 {dimension_numbers = #tpu.dot_dimension_numbers<[1], [0], [0], [1], [0, 0, 1, 1], [], []>} : vector<64x32xbf16>, vector<32x64xbf16>, vector<64x64xf32> -> vector<64x64xf32>
    %39 = arith.addf %34, %38 : vector<64x64xf32>
    %40 = vector.extract_strided_slice %33 {offsets = [64, 0], sizes = [64, 32], strides = [1, 1]} : vector<1024x32xbf16> to vector<64x32xbf16>
    %c1 = arith.constant 1 : index
    %c0_25 = arith.constant 0 : index
    %c0_26 = arith.constant 0 : index
    %41 = vector.load %arg4[%c1, %c0_25, %c0_26] : memref<16x32x64xbf16, #tpu.memory_space<vmem>>, vector<1x32x64xbf16>
    %42 = vector.shape_cast %41 : vector<1x32x64xbf16> to vector<32x64xbf16>
    %cst_27 = arith.constant dense<0.000000e+00> : vector<64x64xf32>
    %43 = tpu.matmul %40, %42, %cst_27 {dimension_numbers = #tpu.dot_dimension_numbers<[1], [0], [0], [1], [0, 0, 1, 1], [], []>} : vector<64x32xbf16>, vector<32x64xbf16>, vector<64x64xf32> -> vector<64x64xf32>
    %44 = arith.addf %39, %43 : vector<64x64xf32>
    %45 = vector.extract_strided_slice %33 {offsets = [128, 0], sizes = [64, 32], strides = [1, 1]} : vector<1024x32xbf16> to vector<64x32xbf16>
    %c2 = arith.constant 2 : index
    %c0_28 = arith.constant 0 : index
    %c0_29 = arith.constant 0 : index
    %46 = vector.load %arg4[%c2, %c0_28, %c0_29] : memref<16x32x64xbf16, #tpu.memory_space<vmem>>, vector<1x32x64xbf16>
    %47 = vector.shape_cast %46 : vector<1x32x64xbf16> to vector<32x64xbf16>
    %cst_30 = arith.constant dense<0.000000e+00> : vector<64x64xf32>
    %48 = tpu.matmul %45, %47, %cst_30 {dimension_numbers = #tpu.dot_dimension_numbers<[1], [0], [0], [1], [0, 0, 1, 1], [], []>} : vector<64x32xbf16>, vector<32x64xbf16>, vector<64x64xf32> -> vector<64x64xf32>
    %49 = arith.addf %44, %48 : vector<64x64xf32>
    %50 = vector.extract_strided_slice %33 {offsets = [192, 0], sizes = [64, 32], strides = [1, 1]} : vector<1024x32xbf16> to vector<64x32xbf16>
    %c3 = arith.constant 3 : index
    %c0_31 = arith.constant 0 : index
    %c0_32 = arith.constant 0 : index
    %51 = vector.load %arg4[%c3, %c0_31, %c0_32] : memref<16x32x64xbf16, #tpu.memory_space<vmem>>, vector<1x32x64xbf16>
    %52 = vector.shape_cast %51 : vector<1x32x64xbf16> to vector<32x64xbf16>
    %cst_33 = arith.constant dense<0.000000e+00> : vector<64x64xf32>
    %53 = tpu.matmul %50, %52, %cst_33 {dimension_numbers = #tpu.dot_dimension_numbers<[1], [0], [0], [1], [0, 0, 1, 1], [], []>} : vector<64x32xbf16>, vector<32x64xbf16>, vector<64x64xf32> -> vector<64x64xf32>
    %54 = arith.addf %49, %53 : vector<64x64xf32>
    %55 = vector.extract_strided_slice %33 {offsets = [256, 0], sizes = [64, 32], strides = [1, 1]} : vector<1024x32xbf16> to vector<64x32xbf16>
    %c4 = arith.constant 4 : index
    %c0_34 = arith.constant 0 : index
    %c0_35 = arith.constant 0 : index
    %56 = vector.load %arg4[%c4, %c0_34, %c0_35] : memref<16x32x64xbf16, #tpu.memory_space<vmem>>, vector<1x32x64xbf16>
    %57 = vector.shape_cast %56 : vector<1x32x64xbf16> to vector<32x64xbf16>
    %cst_36 = arith.constant dense<0.000000e+00> : vector<64x64xf32>
    %58 = tpu.matmul %55, %57, %cst_36 {dimension_numbers = #tpu.dot_dimension_numbers<[1], [0], [0], [1], [0, 0, 1, 1], [], []>} : vector<64x32xbf16>, vector<32x64xbf16>, vector<64x64xf32> -> vector<64x64xf32>
    %59 = arith.addf %54, %58 : vector<64x64xf32>
    %60 = vector.extract_strided_slice %33 {offsets = [320, 0], sizes = [64, 32], strides = [1, 1]} : vector<1024x32xbf16> to vector<64x32xbf16>
    %c5 = arith.constant 5 : index
    %c0_37 = arith.constant 0 : index
    %c0_38 = arith.constant 0 : index
    %61 = vector.load %arg4[%c5, %c0_37, %c0_38] : memref<16x32x64xbf16, #tpu.memory_space<vmem>>, vector<1x32x64xbf16>
    %62 = vector.shape_cast %61 : vector<1x32x64xbf16> to vector<32x64xbf16>
    %cst_39 = arith.constant dense<0.000000e+00> : vector<64x64xf32>
    %63 = tpu.matmul %60, %62, %cst_39 {dimension_numbers = #tpu.dot_dimension_numbers<[1], [0], [0], [1], [0, 0, 1, 1], [], []>} : vector<64x32xbf16>, vector<32x64xbf16>, vector<64x64xf32> -> vector<64x64xf32>
    %64 = arith.addf %59, %63 : vector<64x64xf32>
    %65 = vector.extract_strided_slice %33 {offsets = [384, 0], sizes = [64, 32], strides = [1, 1]} : vector<1024x32xbf16> to vector<64x32xbf16>
    %c6 = arith.constant 6 : index
    %c0_40 = arith.constant 0 : index
    %c0_41 = arith.constant 0 : index
    %66 = vector.load %arg4[%c6, %c0_40, %c0_41] : memref<16x32x64xbf16, #tpu.memory_space<vmem>>, vector<1x32x64xbf16>
    %67 = vector.shape_cast %66 : vector<1x32x64xbf16> to vector<32x64xbf16>
    %cst_42 = arith.constant dense<0.000000e+00> : vector<64x64xf32>
    %68 = tpu.matmul %65, %67, %cst_42 {dimension_numbers = #tpu.dot_dimension_numbers<[1], [0], [0], [1], [0, 0, 1, 1], [], []>} : vector<64x32xbf16>, vector<32x64xbf16>, vector<64x64xf32> -> vector<64x64xf32>
    %69 = arith.addf %64, %68 : vector<64x64xf32>
    %70 = vector.extract_strided_slice %33 {offsets = [448, 0], sizes = [64, 32], strides = [1, 1]} : vector<1024x32xbf16> to vector<64x32xbf16>
    %c7 = arith.constant 7 : index
    %c0_43 = arith.constant 0 : index
    %c0_44 = arith.constant 0 : index
    %71 = vector.load %arg4[%c7, %c0_43, %c0_44] : memref<16x32x64xbf16, #tpu.memory_space<vmem>>, vector<1x32x64xbf16>
    %72 = vector.shape_cast %71 : vector<1x32x64xbf16> to vector<32x64xbf16>
    %cst_45 = arith.constant dense<0.000000e+00> : vector<64x64xf32>
    %73 = tpu.matmul %70, %72, %cst_45 {dimension_numbers = #tpu.dot_dimension_numbers<[1], [0], [0], [1], [0, 0, 1, 1], [], []>} : vector<64x32xbf16>, vector<32x64xbf16>, vector<64x64xf32> -> vector<64x64xf32>
    %74 = arith.addf %69, %73 : vector<64x64xf32>
    %75 = vector.extract_strided_slice %33 {offsets = [512, 0], sizes = [64, 32], strides = [1, 1]} : vector<1024x32xbf16> to vector<64x32xbf16>
    %c8 = arith.constant 8 : index
    %c0_46 = arith.constant 0 : index
    %c0_47 = arith.constant 0 : index
    %76 = vector.load %arg4[%c8, %c0_46, %c0_47] : memref<16x32x64xbf16, #tpu.memory_space<vmem>>, vector<1x32x64xbf16>
    %77 = vector.shape_cast %76 : vector<1x32x64xbf16> to vector<32x64xbf16>
    %cst_48 = arith.constant dense<0.000000e+00> : vector<64x64xf32>
    %78 = tpu.matmul %75, %77, %cst_48 {dimension_numbers = #tpu.dot_dimension_numbers<[1], [0], [0], [1], [0, 0, 1, 1], [], []>} : vector<64x32xbf16>, vector<32x64xbf16>, vector<64x64xf32> -> vector<64x64xf32>
    %79 = arith.addf %74, %78 : vector<64x64xf32>
    %80 = vector.extract_strided_slice %33 {offsets = [576, 0], sizes = [64, 32], strides = [1, 1]} : vector<1024x32xbf16> to vector<64x32xbf16>
    %c9 = arith.constant 9 : index
    %c0_49 = arith.constant 0 : index
    %c0_50 = arith.constant 0 : index
    %81 = vector.load %arg4[%c9, %c0_49, %c0_50] : memref<16x32x64xbf16, #tpu.memory_space<vmem>>, vector<1x32x64xbf16>
    %82 = vector.shape_cast %81 : vector<1x32x64xbf16> to vector<32x64xbf16>
    %cst_51 = arith.constant dense<0.000000e+00> : vector<64x64xf32>
    %83 = tpu.matmul %80, %82, %cst_51 {dimension_numbers = #tpu.dot_dimension_numbers<[1], [0], [0], [1], [0, 0, 1, 1], [], []>} : vector<64x32xbf16>, vector<32x64xbf16>, vector<64x64xf32> -> vector<64x64xf32>
    %84 = arith.addf %79, %83 : vector<64x64xf32>
    %85 = vector.extract_strided_slice %33 {offsets = [640, 0], sizes = [64, 32], strides = [1, 1]} : vector<1024x32xbf16> to vector<64x32xbf16>
    %c10 = arith.constant 10 : index
    %c0_52 = arith.constant 0 : index
    %c0_53 = arith.constant 0 : index
    %86 = vector.load %arg4[%c10, %c0_52, %c0_53] : memref<16x32x64xbf16, #tpu.memory_space<vmem>>, vector<1x32x64xbf16>
    %87 = vector.shape_cast %86 : vector<1x32x64xbf16> to vector<32x64xbf16>
    %cst_54 = arith.constant dense<0.000000e+00> : vector<64x64xf32>
    %88 = tpu.matmul %85, %87, %cst_54 {dimension_numbers = #tpu.dot_dimension_numbers<[1], [0], [0], [1], [0, 0, 1, 1], [], []>} : vector<64x32xbf16>, vector<32x64xbf16>, vector<64x64xf32> -> vector<64x64xf32>
    %89 = arith.addf %84, %88 : vector<64x64xf32>
    %90 = vector.extract_strided_slice %33 {offsets = [704, 0], sizes = [64, 32], strides = [1, 1]} : vector<1024x32xbf16> to vector<64x32xbf16>
    %c11 = arith.constant 11 : index
    %c0_55 = arith.constant 0 : index
    %c0_56 = arith.constant 0 : index
    %91 = vector.load %arg4[%c11, %c0_55, %c0_56] : memref<16x32x64xbf16, #tpu.memory_space<vmem>>, vector<1x32x64xbf16>
    %92 = vector.shape_cast %91 : vector<1x32x64xbf16> to vector<32x64xbf16>
    %cst_57 = arith.constant dense<0.000000e+00> : vector<64x64xf32>
    %93 = tpu.matmul %90, %92, %cst_57 {dimension_numbers = #tpu.dot_dimension_numbers<[1], [0], [0], [1], [0, 0, 1, 1], [], []>} : vector<64x32xbf16>, vector<32x64xbf16>, vector<64x64xf32> -> vector<64x64xf32>
    %94 = arith.addf %89, %93 : vector<64x64xf32>
    %95 = vector.extract_strided_slice %33 {offsets = [768, 0], sizes = [64, 32], strides = [1, 1]} : vector<1024x32xbf16> to vector<64x32xbf16>
    %c12 = arith.constant 12 : index
    %c0_58 = arith.constant 0 : index
    %c0_59 = arith.constant 0 : index
    %96 = vector.load %arg4[%c12, %c0_58, %c0_59] : memref<16x32x64xbf16, #tpu.memory_space<vmem>>, vector<1x32x64xbf16>
    %97 = vector.shape_cast %96 : vector<1x32x64xbf16> to vector<32x64xbf16>
    %cst_60 = arith.constant dense<0.000000e+00> : vector<64x64xf32>
    %98 = tpu.matmul %95, %97, %cst_60 {dimension_numbers = #tpu.dot_dimension_numbers<[1], [0], [0], [1], [0, 0, 1, 1], [], []>} : vector<64x32xbf16>, vector<32x64xbf16>, vector<64x64xf32> -> vector<64x64xf32>
    %99 = arith.addf %94, %98 : vector<64x64xf32>
    %100 = vector.extract_strided_slice %33 {offsets = [832, 0], sizes = [64, 32], strides = [1, 1]} : vector<1024x32xbf16> to vector<64x32xbf16>
    %c13 = arith.constant 13 : index
    %c0_61 = arith.constant 0 : index
    %c0_62 = arith.constant 0 : index
    %101 = vector.load %arg4[%c13, %c0_61, %c0_62] : memref<16x32x64xbf16, #tpu.memory_space<vmem>>, vector<1x32x64xbf16>
    %102 = vector.shape_cast %101 : vector<1x32x64xbf16> to vector<32x64xbf16>
    %cst_63 = arith.constant dense<0.000000e+00> : vector<64x64xf32>
    %103 = tpu.matmul %100, %102, %cst_63 {dimension_numbers = #tpu.dot_dimension_numbers<[1], [0], [0], [1], [0, 0, 1, 1], [], []>} : vector<64x32xbf16>, vector<32x64xbf16>, vector<64x64xf32> -> vector<64x64xf32>
    %104 = arith.addf %99, %103 : vector<64x64xf32>
    %105 = vector.extract_strided_slice %33 {offsets = [896, 0], sizes = [64, 32], strides = [1, 1]} : vector<1024x32xbf16> to vector<64x32xbf16>
    %c14 = arith.constant 14 : index
    %c0_64 = arith.constant 0 : index
    %c0_65 = arith.constant 0 : index
    %106 = vector.load %arg4[%c14, %c0_64, %c0_65] : memref<16x32x64xbf16, #tpu.memory_space<vmem>>, vector<1x32x64xbf16>
    %107 = vector.shape_cast %106 : vector<1x32x64xbf16> to vector<32x64xbf16>
    %cst_66 = arith.constant dense<0.000000e+00> : vector<64x64xf32>
    %108 = tpu.matmul %105, %107, %cst_66 {dimension_numbers = #tpu.dot_dimension_numbers<[1], [0], [0], [1], [0, 0, 1, 1], [], []>} : vector<64x32xbf16>, vector<32x64xbf16>, vector<64x64xf32> -> vector<64x64xf32>
    %109 = arith.addf %104, %108 : vector<64x64xf32>
    %110 = vector.extract_strided_slice %33 {offsets = [960, 0], sizes = [64, 32], strides = [1, 1]} : vector<1024x32xbf16> to vector<64x32xbf16>
    %c15 = arith.constant 15 : index
    %c0_67 = arith.constant 0 : index
    %c0_68 = arith.constant 0 : index
    %111 = vector.load %arg4[%c15, %c0_67, %c0_68] : memref<16x32x64xbf16, #tpu.memory_space<vmem>>, vector<1x32x64xbf16>
    %112 = vector.shape_cast %111 : vector<1x32x64xbf16> to vector<32x64xbf16>
    %cst_69 = arith.constant dense<0.000000e+00> : vector<64x64xf32>
    %113 = tpu.matmul %110, %112, %cst_69 {dimension_numbers = #tpu.dot_dimension_numbers<[1], [0], [0], [1], [0, 0, 1, 1], [], []>} : vector<64x32xbf16>, vector<32x64xbf16>, vector<64x64xf32> -> vector<64x64xf32>
    %114 = arith.addf %109, %113 : vector<64x64xf32>
    %cst_70 = arith.constant dense<0.000000e+00> : vector<64xf32>
    %115 = vector.multi_reduction <add>, %114, %cst_70 [0] : vector<64x64xf32> to vector<64xf32>
    %116 = vector.shape_cast %115 : vector<64xf32> to vector<1x64xf32>
    %cst_71 = arith.constant 6.400000e+01 : f32
    %117 = vector.broadcast %cst_71 : f32 to vector<1x64xf32>
    %118 = arith.divf %116, %117 : vector<1x64xf32>
    %119 = vector.broadcast %118 : vector<1x64xf32> to vector<64x64xf32>
    %120 = arith.subf %114, %119 : vector<64x64xf32>
    %121 = arith.mulf %120, %120 : vector<64x64xf32>
    %cst_72 = arith.constant dense<0.000000e+00> : vector<64xf32>
    %122 = vector.multi_reduction <add>, %121, %cst_72 [0] : vector<64x64xf32> to vector<64xf32>
    %123 = vector.shape_cast %122 : vector<64xf32> to vector<1x64xf32>
    %cst_73 = arith.constant 6.400000e+01 : f32
    %124 = vector.broadcast %cst_73 : f32 to vector<1x64xf32>
    %125 = arith.divf %123, %124 : vector<1x64xf32>
    %126 = vector.broadcast %118 : vector<1x64xf32> to vector<64x64xf32>
    %127 = arith.subf %114, %126 : vector<64x64xf32>
    %cst_74 = arith.constant 9.99999974E-6 : f32
    %128 = vector.broadcast %cst_74 : f32 to vector<1x64xf32>
    %129 = arith.addf %125, %128 : vector<1x64xf32>
    %130 = math.rsqrt %129 : vector<1x64xf32>
    %131 = vector.broadcast %130 : vector<1x64xf32> to vector<64x64xf32>
    %132 = arith.mulf %127, %131 : vector<64x64xf32>
    %cst_75 = arith.constant 0.000000e+00 : f32
    %133 = vector.broadcast %cst_75 : f32 to vector<64x64xf32>
    %134 = arith.cmpf oge, %132, %133 : vector<64x64xf32>
    %cst_76 = arith.constant 2.000000e-01 : f32
    %135 = vector.broadcast %cst_76 : f32 to vector<64x64xf32>
    %136 = arith.mulf %135, %132 : vector<64x64xf32>
    %137 = arith.select %134, %132, %136 : vector<64x64xi1>, vector<64x64xf32>
    %138 = arith.truncf %137 : vector<64x64xf32> to vector<64x64xbf16>
    %cst_77 = arith.constant dense<0.000000e+00> : vector<256x64xf32>
    %139 = tpu.matmul %2, %138, %cst_77 {dimension_numbers = #tpu.dot_dimension_numbers<[1], [0], [0], [1], [0, 0, 1, 1], [], []>} : vector<256x64xbf16>, vector<64x64xbf16>, vector<256x64xf32> -> vector<256x64xf32>
    %140 = arith.truncf %139 : vector<256x64xf32> to vector<256x64xbf16>
    %cst_78 = arith.constant 0.000000e+00 : f32
    %141 = vector.broadcast %cst_78 : f32 to vector<16x128xf32>
    %142 = vector.extract_strided_slice %140 {offsets = [0, 0], sizes = [16, 64], strides = [1, 1]} : vector<256x64xbf16> to vector<16x64xbf16>
    %c0_79 = arith.constant 0 : index
    %c0_80 = arith.constant 0 : index
    %c0_81 = arith.constant 0 : index
    %143 = vector.load %arg6[%c0_79, %c0_80, %c0_81] : memref<16x64x128xbf16, #tpu.memory_space<vmem>>, vector<1x64x128xbf16>
    %144 = vector.shape_cast %143 : vector<1x64x128xbf16> to vector<64x128xbf16>
    %cst_82 = arith.constant dense<0.000000e+00> : vector<16x128xf32>
    %145 = tpu.matmul %142, %144, %cst_82 {dimension_numbers = #tpu.dot_dimension_numbers<[1], [0], [0], [1], [0, 0, 1, 1], [], []>} : vector<16x64xbf16>, vector<64x128xbf16>, vector<16x128xf32> -> vector<16x128xf32>
    %146 = arith.addf %141, %145 : vector<16x128xf32>
    %147 = vector.extract_strided_slice %140 {offsets = [16, 0], sizes = [16, 64], strides = [1, 1]} : vector<256x64xbf16> to vector<16x64xbf16>
    %c1_83 = arith.constant 1 : index
    %c0_84 = arith.constant 0 : index
    %c0_85 = arith.constant 0 : index
    %148 = vector.load %arg6[%c1_83, %c0_84, %c0_85] : memref<16x64x128xbf16, #tpu.memory_space<vmem>>, vector<1x64x128xbf16>
    %149 = vector.shape_cast %148 : vector<1x64x128xbf16> to vector<64x128xbf16>
    %cst_86 = arith.constant dense<0.000000e+00> : vector<16x128xf32>
    %150 = tpu.matmul %147, %149, %cst_86 {dimension_numbers = #tpu.dot_dimension_numbers<[1], [0], [0], [1], [0, 0, 1, 1], [], []>} : vector<16x64xbf16>, vector<64x128xbf16>, vector<16x128xf32> -> vector<16x128xf32>
    %151 = arith.addf %146, %150 : vector<16x128xf32>
    %152 = vector.extract_strided_slice %140 {offsets = [32, 0], sizes = [16, 64], strides = [1, 1]} : vector<256x64xbf16> to vector<16x64xbf16>
    %c2_87 = arith.constant 2 : index
    %c0_88 = arith.constant 0 : index
    %c0_89 = arith.constant 0 : index
    %153 = vector.load %arg6[%c2_87, %c0_88, %c0_89] : memref<16x64x128xbf16, #tpu.memory_space<vmem>>, vector<1x64x128xbf16>
    %154 = vector.shape_cast %153 : vector<1x64x128xbf16> to vector<64x128xbf16>
    %cst_90 = arith.constant dense<0.000000e+00> : vector<16x128xf32>
    %155 = tpu.matmul %152, %154, %cst_90 {dimension_numbers = #tpu.dot_dimension_numbers<[1], [0], [0], [1], [0, 0, 1, 1], [], []>} : vector<16x64xbf16>, vector<64x128xbf16>, vector<16x128xf32> -> vector<16x128xf32>
    %156 = arith.addf %151, %155 : vector<16x128xf32>
    %157 = vector.extract_strided_slice %140 {offsets = [48, 0], sizes = [16, 64], strides = [1, 1]} : vector<256x64xbf16> to vector<16x64xbf16>
    %c3_91 = arith.constant 3 : index
    %c0_92 = arith.constant 0 : index
    %c0_93 = arith.constant 0 : index
    %158 = vector.load %arg6[%c3_91, %c0_92, %c0_93] : memref<16x64x128xbf16, #tpu.memory_space<vmem>>, vector<1x64x128xbf16>
    %159 = vector.shape_cast %158 : vector<1x64x128xbf16> to vector<64x128xbf16>
    %cst_94 = arith.constant dense<0.000000e+00> : vector<16x128xf32>
    %160 = tpu.matmul %157, %159, %cst_94 {dimension_numbers = #tpu.dot_dimension_numbers<[1], [0], [0], [1], [0, 0, 1, 1], [], []>} : vector<16x64xbf16>, vector<64x128xbf16>, vector<16x128xf32> -> vector<16x128xf32>
    %161 = arith.addf %156, %160 : vector<16x128xf32>
    %162 = vector.extract_strided_slice %140 {offsets = [64, 0], sizes = [16, 64], strides = [1, 1]} : vector<256x64xbf16> to vector<16x64xbf16>
    %c4_95 = arith.constant 4 : index
    %c0_96 = arith.constant 0 : index
    %c0_97 = arith.constant 0 : index
    %163 = vector.load %arg6[%c4_95, %c0_96, %c0_97] : memref<16x64x128xbf16, #tpu.memory_space<vmem>>, vector<1x64x128xbf16>
    %164 = vector.shape_cast %163 : vector<1x64x128xbf16> to vector<64x128xbf16>
    %cst_98 = arith.constant dense<0.000000e+00> : vector<16x128xf32>
    %165 = tpu.matmul %162, %164, %cst_98 {dimension_numbers = #tpu.dot_dimension_numbers<[1], [0], [0], [1], [0, 0, 1, 1], [], []>} : vector<16x64xbf16>, vector<64x128xbf16>, vector<16x128xf32> -> vector<16x128xf32>
    %166 = arith.addf %161, %165 : vector<16x128xf32>
    %167 = vector.extract_strided_slice %140 {offsets = [80, 0], sizes = [16, 64], strides = [1, 1]} : vector<256x64xbf16> to vector<16x64xbf16>
    %c5_99 = arith.constant 5 : index
    %c0_100 = arith.constant 0 : index
    %c0_101 = arith.constant 0 : index
    %168 = vector.load %arg6[%c5_99, %c0_100, %c0_101] : memref<16x64x128xbf16, #tpu.memory_space<vmem>>, vector<1x64x128xbf16>
    %169 = vector.shape_cast %168 : vector<1x64x128xbf16> to vector<64x128xbf16>
    %cst_102 = arith.constant dense<0.000000e+00> : vector<16x128xf32>
    %170 = tpu.matmul %167, %169, %cst_102 {dimension_numbers = #tpu.dot_dimension_numbers<[1], [0], [0], [1], [0, 0, 1, 1], [], []>} : vector<16x64xbf16>, vector<64x128xbf16>, vector<16x128xf32> -> vector<16x128xf32>
    %171 = arith.addf %166, %170 : vector<16x128xf32>
    %172 = vector.extract_strided_slice %140 {offsets = [96, 0], sizes = [16, 64], strides = [1, 1]} : vector<256x64xbf16> to vector<16x64xbf16>
    %c6_103 = arith.constant 6 : index
    %c0_104 = arith.constant 0 : index
    %c0_105 = arith.constant 0 : index
    %173 = vector.load %arg6[%c6_103, %c0_104, %c0_105] : memref<16x64x128xbf16, #tpu.memory_space<vmem>>, vector<1x64x128xbf16>
    %174 = vector.shape_cast %173 : vector<1x64x128xbf16> to vector<64x128xbf16>
    %cst_106 = arith.constant dense<0.000000e+00> : vector<16x128xf32>
    %175 = tpu.matmul %172, %174, %cst_106 {dimension_numbers = #tpu.dot_dimension_numbers<[1], [0], [0], [1], [0, 0, 1, 1], [], []>} : vector<16x64xbf16>, vector<64x128xbf16>, vector<16x128xf32> -> vector<16x128xf32>
    %176 = arith.addf %171, %175 : vector<16x128xf32>
    %177 = vector.extract_strided_slice %140 {offsets = [112, 0], sizes = [16, 64], strides = [1, 1]} : vector<256x64xbf16> to vector<16x64xbf16>
    %c7_107 = arith.constant 7 : index
    %c0_108 = arith.constant 0 : index
    %c0_109 = arith.constant 0 : index
    %178 = vector.load %arg6[%c7_107, %c0_108, %c0_109] : memref<16x64x128xbf16, #tpu.memory_space<vmem>>, vector<1x64x128xbf16>
    %179 = vector.shape_cast %178 : vector<1x64x128xbf16> to vector<64x128xbf16>
    %cst_110 = arith.constant dense<0.000000e+00> : vector<16x128xf32>
    %180 = tpu.matmul %177, %179, %cst_110 {dimension_numbers = #tpu.dot_dimension_numbers<[1], [0], [0], [1], [0, 0, 1, 1], [], []>} : vector<16x64xbf16>, vector<64x128xbf16>, vector<16x128xf32> -> vector<16x128xf32>
    %181 = arith.addf %176, %180 : vector<16x128xf32>
    %182 = vector.extract_strided_slice %140 {offsets = [128, 0], sizes = [16, 64], strides = [1, 1]} : vector<256x64xbf16> to vector<16x64xbf16>
    %c8_111 = arith.constant 8 : index
    %c0_112 = arith.constant 0 : index
    %c0_113 = arith.constant 0 : index
    %183 = vector.load %arg6[%c8_111, %c0_112, %c0_113] : memref<16x64x128xbf16, #tpu.memory_space<vmem>>, vector<1x64x128xbf16>
    %184 = vector.shape_cast %183 : vector<1x64x128xbf16> to vector<64x128xbf16>
    %cst_114 = arith.constant dense<0.000000e+00> : vector<16x128xf32>
    %185 = tpu.matmul %182, %184, %cst_114 {dimension_numbers = #tpu.dot_dimension_numbers<[1], [0], [0], [1], [0, 0, 1, 1], [], []>} : vector<16x64xbf16>, vector<64x128xbf16>, vector<16x128xf32> -> vector<16x128xf32>
    %186 = arith.addf %181, %185 : vector<16x128xf32>
    %187 = vector.extract_strided_slice %140 {offsets = [144, 0], sizes = [16, 64], strides = [1, 1]} : vector<256x64xbf16> to vector<16x64xbf16>
    %c9_115 = arith.constant 9 : index
    %c0_116 = arith.constant 0 : index
    %c0_117 = arith.constant 0 : index
    %188 = vector.load %arg6[%c9_115, %c0_116, %c0_117] : memref<16x64x128xbf16, #tpu.memory_space<vmem>>, vector<1x64x128xbf16>
    %189 = vector.shape_cast %188 : vector<1x64x128xbf16> to vector<64x128xbf16>
    %cst_118 = arith.constant dense<0.000000e+00> : vector<16x128xf32>
    %190 = tpu.matmul %187, %189, %cst_118 {dimension_numbers = #tpu.dot_dimension_numbers<[1], [0], [0], [1], [0, 0, 1, 1], [], []>} : vector<16x64xbf16>, vector<64x128xbf16>, vector<16x128xf32> -> vector<16x128xf32>
    %191 = arith.addf %186, %190 : vector<16x128xf32>
    %192 = vector.extract_strided_slice %140 {offsets = [160, 0], sizes = [16, 64], strides = [1, 1]} : vector<256x64xbf16> to vector<16x64xbf16>
    %c10_119 = arith.constant 10 : index
    %c0_120 = arith.constant 0 : index
    %c0_121 = arith.constant 0 : index
    %193 = vector.load %arg6[%c10_119, %c0_120, %c0_121] : memref<16x64x128xbf16, #tpu.memory_space<vmem>>, vector<1x64x128xbf16>
    %194 = vector.shape_cast %193 : vector<1x64x128xbf16> to vector<64x128xbf16>
    %cst_122 = arith.constant dense<0.000000e+00> : vector<16x128xf32>
    %195 = tpu.matmul %192, %194, %cst_122 {dimension_numbers = #tpu.dot_dimension_numbers<[1], [0], [0], [1], [0, 0, 1, 1], [], []>} : vector<16x64xbf16>, vector<64x128xbf16>, vector<16x128xf32> -> vector<16x128xf32>
    %196 = arith.addf %191, %195 : vector<16x128xf32>
    %197 = vector.extract_strided_slice %140 {offsets = [176, 0], sizes = [16, 64], strides = [1, 1]} : vector<256x64xbf16> to vector<16x64xbf16>
    %c11_123 = arith.constant 11 : index
    %c0_124 = arith.constant 0 : index
    %c0_125 = arith.constant 0 : index
    %198 = vector.load %arg6[%c11_123, %c0_124, %c0_125] : memref<16x64x128xbf16, #tpu.memory_space<vmem>>, vector<1x64x128xbf16>
    %199 = vector.shape_cast %198 : vector<1x64x128xbf16> to vector<64x128xbf16>
    %cst_126 = arith.constant dense<0.000000e+00> : vector<16x128xf32>
    %200 = tpu.matmul %197, %199, %cst_126 {dimension_numbers = #tpu.dot_dimension_numbers<[1], [0], [0], [1], [0, 0, 1, 1], [], []>} : vector<16x64xbf16>, vector<64x128xbf16>, vector<16x128xf32> -> vector<16x128xf32>
    %201 = arith.addf %196, %200 : vector<16x128xf32>
    %202 = vector.extract_strided_slice %140 {offsets = [192, 0], sizes = [16, 64], strides = [1, 1]} : vector<256x64xbf16> to vector<16x64xbf16>
    %c12_127 = arith.constant 12 : index
    %c0_128 = arith.constant 0 : index
    %c0_129 = arith.constant 0 : index
    %203 = vector.load %arg6[%c12_127, %c0_128, %c0_129] : memref<16x64x128xbf16, #tpu.memory_space<vmem>>, vector<1x64x128xbf16>
    %204 = vector.shape_cast %203 : vector<1x64x128xbf16> to vector<64x128xbf16>
    %cst_130 = arith.constant dense<0.000000e+00> : vector<16x128xf32>
    %205 = tpu.matmul %202, %204, %cst_130 {dimension_numbers = #tpu.dot_dimension_numbers<[1], [0], [0], [1], [0, 0, 1, 1], [], []>} : vector<16x64xbf16>, vector<64x128xbf16>, vector<16x128xf32> -> vector<16x128xf32>
    %206 = arith.addf %201, %205 : vector<16x128xf32>
    %207 = vector.extract_strided_slice %140 {offsets = [208, 0], sizes = [16, 64], strides = [1, 1]} : vector<256x64xbf16> to vector<16x64xbf16>
    %c13_131 = arith.constant 13 : index
    %c0_132 = arith.constant 0 : index
    %c0_133 = arith.constant 0 : index
    %208 = vector.load %arg6[%c13_131, %c0_132, %c0_133] : memref<16x64x128xbf16, #tpu.memory_space<vmem>>, vector<1x64x128xbf16>
    %209 = vector.shape_cast %208 : vector<1x64x128xbf16> to vector<64x128xbf16>
    %cst_134 = arith.constant dense<0.000000e+00> : vector<16x128xf32>
    %210 = tpu.matmul %207, %209, %cst_134 {dimension_numbers = #tpu.dot_dimension_numbers<[1], [0], [0], [1], [0, 0, 1, 1], [], []>} : vector<16x64xbf16>, vector<64x128xbf16>, vector<16x128xf32> -> vector<16x128xf32>
    %211 = arith.addf %206, %210 : vector<16x128xf32>
    %212 = vector.extract_strided_slice %140 {offsets = [224, 0], sizes = [16, 64], strides = [1, 1]} : vector<256x64xbf16> to vector<16x64xbf16>
    %c14_135 = arith.constant 14 : index
    %c0_136 = arith.constant 0 : index
    %c0_137 = arith.constant 0 : index
    %213 = vector.load %arg6[%c14_135, %c0_136, %c0_137] : memref<16x64x128xbf16, #tpu.memory_space<vmem>>, vector<1x64x128xbf16>
    %214 = vector.shape_cast %213 : vector<1x64x128xbf16> to vector<64x128xbf16>
    %cst_138 = arith.constant dense<0.000000e+00> : vector<16x128xf32>
    %215 = tpu.matmul %212, %214, %cst_138 {dimension_numbers = #tpu.dot_dimension_numbers<[1], [0], [0], [1], [0, 0, 1, 1], [], []>} : vector<16x64xbf16>, vector<64x128xbf16>, vector<16x128xf32> -> vector<16x128xf32>
    %216 = arith.addf %211, %215 : vector<16x128xf32>
    %217 = vector.extract_strided_slice %140 {offsets = [240, 0], sizes = [16, 64], strides = [1, 1]} : vector<256x64xbf16> to vector<16x64xbf16>
    %c15_139 = arith.constant 15 : index
    %c0_140 = arith.constant 0 : index
    %c0_141 = arith.constant 0 : index
    %218 = vector.load %arg6[%c15_139, %c0_140, %c0_141] : memref<16x64x128xbf16, #tpu.memory_space<vmem>>, vector<1x64x128xbf16>
    %219 = vector.shape_cast %218 : vector<1x64x128xbf16> to vector<64x128xbf16>
    %cst_142 = arith.constant dense<0.000000e+00> : vector<16x128xf32>
    %220 = tpu.matmul %217, %219, %cst_142 {dimension_numbers = #tpu.dot_dimension_numbers<[1], [0], [0], [1], [0, 0, 1, 1], [], []>} : vector<16x64xbf16>, vector<64x128xbf16>, vector<16x128xf32> -> vector<16x128xf32>
    %221 = arith.addf %216, %220 : vector<16x128xf32>
    %cst_143 = arith.constant dense<0.000000e+00> : vector<128xf32>
    %222 = vector.multi_reduction <add>, %221, %cst_143 [0] : vector<16x128xf32> to vector<128xf32>
    %223 = vector.shape_cast %222 : vector<128xf32> to vector<1x128xf32>
    %cst_144 = arith.constant 1.600000e+01 : f32
    %224 = vector.broadcast %cst_144 : f32 to vector<1x128xf32>
    %225 = arith.divf %223, %224 : vector<1x128xf32>
    %226 = vector.broadcast %225 : vector<1x128xf32> to vector<16x128xf32>
    %227 = arith.subf %221, %226 : vector<16x128xf32>
    %228 = arith.mulf %227, %227 : vector<16x128xf32>
    %cst_145 = arith.constant dense<0.000000e+00> : vector<128xf32>
    %229 = vector.multi_reduction <add>, %228, %cst_145 [0] : vector<16x128xf32> to vector<128xf32>
    %230 = vector.shape_cast %229 : vector<128xf32> to vector<1x128xf32>
    %cst_146 = arith.constant 1.600000e+01 : f32
    %231 = vector.broadcast %cst_146 : f32 to vector<1x128xf32>
    %232 = arith.divf %230, %231 : vector<1x128xf32>
    %233 = vector.broadcast %225 : vector<1x128xf32> to vector<16x128xf32>
    %234 = arith.subf %221, %233 : vector<16x128xf32>
    %cst_147 = arith.constant 9.99999974E-6 : f32
    %235 = vector.broadcast %cst_147 : f32 to vector<1x128xf32>
    %236 = arith.addf %232, %235 : vector<1x128xf32>
    %237 = math.rsqrt %236 : vector<1x128xf32>
    %238 = vector.broadcast %237 : vector<1x128xf32> to vector<16x128xf32>
    %239 = arith.mulf %234, %238 : vector<16x128xf32>
    %cst_148 = arith.constant 0.000000e+00 : f32
    %240 = vector.broadcast %cst_148 : f32 to vector<16x128xf32>
    %241 = arith.cmpf oge, %239, %240 : vector<16x128xf32>
    %cst_149 = arith.constant 2.000000e-01 : f32
    %242 = vector.broadcast %cst_149 : f32 to vector<16x128xf32>
    %243 = arith.mulf %242, %239 : vector<16x128xf32>
    %244 = arith.select %241, %239, %243 : vector<16x128xi1>, vector<16x128xf32>
    %245 = arith.mulf %244, %3 : vector<16x128xf32>
    %246 = vector.shape_cast %245 : vector<16x128xf32> to vector<1x16x128xf32>
    %cst_150 = arith.constant dense<0.000000e+00> : vector<1xf32>
    %247 = vector.multi_reduction <add>, %246, %cst_150 [1, 2] : vector<1x16x128xf32> to vector<1xf32>
    %248 = vector.shape_cast %247 : vector<1xf32> to vector<1x1x1xf32>
    %249 = vector.extract %248[0, 0, 0] : f32 from vector<1x1x1xf32>
    %250 = vector.broadcast %249 : f32 to vector<1x1xf32>
    %251 = arith.addf %250, %4 : vector<1x1xf32>
    %c0_151 = arith.constant 0 : index
    %c0_152 = arith.constant 0 : index
    %c0_153 = arith.constant 0 : index
    %252 = vector.load %arg9[%c0_151, %c0_152, %c0_153] : memref<1x1x1xf32, #tpu.memory_space<vmem>>, vector<1x1x1xf32>
    %253 = vector.shape_cast %252 : vector<1x1x1xf32> to vector<1x1xf32>
    %254 = vector.shape_cast %251 : vector<1x1xf32> to vector<1x1x1xf32>
    tpu.vector_store %arg9[%c0_151, %c0_152, %c0_153], %254 {strides = array<i32>} : memref<1x1x1xf32, #tpu.memory_space<vmem>>, vector<1x1x1xf32>,
    return
  }
  func.func @transform_0(%arg0: i32) -> (i32, i32, i32) {
    %c0_i32 = arith.constant 0 : i32
    %c0_i32_0 = arith.constant 0 : i32
    %c0_i32_1 = arith.constant 0 : i32
    return %arg0, %c0_i32, %c0_i32_0 : i32, i32, i32
  }
  func.func @transform_1(%arg0: i32) -> (i32, i32) {
    %c0_i32 = arith.constant 0 : i32
    %c0_i32_0 = arith.constant 0 : i32
    %c0_i32_1 = arith.constant 0 : i32
    return %c0_i32, %c0_i32_0 : i32, i32
  }
  func.func @transform_2(%arg0: i32) -> (i32, i32) {
    %c0_i32 = arith.constant 0 : i32
    %c0_i32_0 = arith.constant 0 : i32
    %c0_i32_1 = arith.constant 0 : i32
    return %c0_i32, %c0_i32_0 : i32, i32
  }
  func.func @transform_3(%arg0: i32) -> (i32, i32, i32) {
    %c0_i32 = arith.constant 0 : i32
    %c0_i32_0 = arith.constant 0 : i32
    %c0_i32_1 = arith.constant 0 : i32
    %c0_i32_2 = arith.constant 0 : i32
    return %c0_i32, %c0_i32_0, %c0_i32_1 : i32, i32, i32
  }
  func.func @transform_4(%arg0: i32) -> (i32, i32) {
    %c0_i32 = arith.constant 0 : i32
    %c0_i32_0 = arith.constant 0 : i32
    %c0_i32_1 = arith.constant 0 : i32
    return %c0_i32, %c0_i32_0 : i32, i32
  }
  func.func @transform_5(%arg0: i32) -> (i32, i32, i32) {
    %c0_i32 = arith.constant 0 : i32
    %c0_i32_0 = arith.constant 0 : i32
    %c0_i32_1 = arith.constant 0 : i32
    %c0_i32_2 = arith.constant 0 : i32
    return %c0_i32, %c0_i32_0, %c0_i32_1 : i32, i32, i32
  }
  func.func @transform_6(%arg0: i32) -> (i32, i32) {
    %c0_i32 = arith.constant 0 : i32
    %c0_i32_0 = arith.constant 0 : i32
    %c0_i32_1 = arith.constant 0 : i32
    return %c0_i32, %c0_i32_0 : i32, i32
  }
  func.func @transform_7(%arg0: i32) -> (i32, i32) {
    %c0_i32 = arith.constant 0 : i32
    %c0_i32_0 = arith.constant 0 : i32
    %c0_i32_1 = arith.constant 0 : i32
    return %c0_i32, %c0_i32_0 : i32, i32
  }
  func.func @transform_8(%arg0: i32) -> (i32, i32, i32) {
    %c0_i32 = arith.constant 0 : i32
    %c0_i32_0 = arith.constant 0 : i32
    %c0_i32_1 = arith.constant 0 : i32
    return %arg0, %c0_i32, %c0_i32_0 : i32, i32, i32
  }
}

</mosaic_0001>

<llo_original>
// kernel: discriminator_forward.1
$region0: #{discriminator_forward.1}
  #allocation0 [shape = 'u32[]', space=smem, size = 0x4, offset = 0x4, fixed_abs, tag = 'smem constant byte address 0x4 - core index']
  #allocation1 [shape = 'u32[72,128]{1,0:T(1,128)}', space=vmem, size = 0x9000, scoped, tag = 'internal scratch']
  #allocation2 [shape = 'f32[1,1]{1,0:T(1,128)S(1)}', space=vmem, size = 0x200, scoped, tag = 'scoped memory for discriminator_forward.1']
  %s0 = inlined_call_operand.vmem [shape: bf16[2,256,48], index: 0, kind: input, shape index: {}]
  %s1 = inlined_call_operand.vmem [shape: bf16[48,32], index: 1, kind: input, shape index: {}]
  %s2 = inlined_call_operand.vmem [shape: bf16[1024,256], index: 2, kind: input, shape index: {}]
  %s3 = inlined_call_operand.vmem [shape: bf16[16,32,64], index: 3, kind: input, shape index: {}]
  %s4 = inlined_call_operand.vmem [shape: bf16[256,64], index: 4, kind: input, shape index: {}]
  %s5 = inlined_call_operand.vmem [shape: bf16[16,64,128], index: 5, kind: input, shape index: {}]
  %s6 = inlined_call_operand.vmem [shape: f32[16,128], index: 6, kind: input, shape index: {}]
  %s7 = inlined_call_operand.<no memory space> [shape: f32[1,1], index: 7, kind: input, shape index: {}]
  %s8 = inlined_call_operand.vmem [shape: f32[2,1,1], index: 8, kind: output, shape index: {}]
  %s9 = sld [smem:[#allocation0]]
  $region65: #{discriminator_forward.1} parent=0
    _
  %s11 = ssub.s32 1, %s9
  %s12 = scalar_select 0, %s11, %s9
  %v13 = vstv %s7
  %14 = vst [vmem:[#allocation2] sm:$0x1] %v13
  loop: start=0, step=1, limit=4
  $region2: #{discriminator_forward.1} parent=0 // loop_pre_header
    _
  $region3: #{discriminator_forward.1} parent=0 // loop_header
    %s16 = sphi 0, %s20
    %p17 = scmp.ge.s32.totalorder %s16, 4
    %s26 = sphi 0, %s28
    %s29 = sphi 0, %s26
    %s30 = sphi 0, %s29
    %s46 = sphi 0, %s30
    %s50 = sphi 0, %s50
    %s52 = sphi 0, %s50
    %s53 = sphi 0, %s52
    %s67 = sphi 0, %s53
    %s71 = sphi 0, %s71
    %s73 = sphi 0, %s71
    %s74 = sphi 0, %s73
    %s88 = sphi 0, %s74
    %s92 = sphi 0, %s92
    %s94 = sphi 0, %s92
    %s95 = sphi 0, %s94
    %s109 = sphi 0, %s95
    %s113 = sphi 0, %s113
    %s115 = sphi 0, %s113
    %s116 = sphi 0, %s115
    %s130 = sphi 0, %s116
    %s134 = sphi 0, %s134
    %s136 = sphi 0, %s134
    %s137 = sphi 0, %s136
    %s151 = sphi 0, %s137
    %s155 = sphi 0, %s155
    %s157 = sphi 0, %s155
    %s158 = sphi 0, %s157
    %s172 = sphi 0, %s158
    %s176 = sphi 0, %s176
    %s178 = sphi 0, %s176
    %s179 = sphi 0, %s178
    %s193 = sphi 0, %s179
    %s199 = sphi 0, %s201
    %s202 = sphi 0, %s199
    %s203 = sphi 0, %s202
    %s219 = sphi 0, %s203
  $region4: #{discriminator_forward.1} parent=0 // loop_header_branch
    %19 = sbr.rel (%p17) target = $region8
  $region5: #{discriminator_forward.1} parent=0 // loop_body
    %s21 = ssub.s32 %s16, 1
    %s22 = ssub.s32 %s16, 2
    %s23 = sadd.s32 %s16, 1
    %s24 = ssub.s32 %s16, %s23
    %p25 = scmp.eq.s32.totalorder %s24, 0
    %s27 = sadd.s32 %s26, 1
    %s28 = scalar_select %p25, %s26, %s27
    %p31 = pneg %p25
    %p32 = scmp.eq.s32.totalorder %s16, 1
    %p33 = por %p31, %p32
    %p34 = scmp.ne.s32.totalorder %s26, %s29
    %p35 = scmp.eq.s32.totalorder %s16, 0
    %p36 = por %p34, %p35
    %p37 = scmp.ne.s32.totalorder %s26, %s29
    %p38 = scmp.eq.s32.totalorder %s21, 1
    %p39 = por %p37, %p38
    %p40 = scmp.ne.s32.totalorder %s29, %s30
    %p41 = scmp.eq.s32.totalorder %s21, 0
    %p42 = por %p40, %p41
    %p43 = scmp.ne.s32.totalorder %s29, %s30
    %p44 = scmp.eq.s32.totalorder %s22, 1
    %p45 = por %p43, %p44
    %p47 = scmp.ne.s32.totalorder %s30, %s46
    %p48 = scmp.eq.s32.totalorder %s22, 0
    %p49 = por %p47, %p48
    %s51 = sadd.s32 %s50, 1
    %p54 = scmp.eq.s32.totalorder %s16, 1
    %p55 = scmp.ne.s32.totalorder %s50, %s52
    %p56 = scmp.eq.s32.totalorder %s16, 0
    %p57 = por %p55, %p56
    %p58 = scmp.ne.s32.totalorder %s50, %s52
    %p59 = scmp.eq.s32.totalorder %s21, 1
    %p60 = por %p58, %p59
    %p61 = scmp.ne.s32.totalorder %s52, %s53
    %p62 = scmp.eq.s32.totalorder %s21, 0
    %p63 = por %p61, %p62
    %p64 = scmp.ne.s32.totalorder %s52, %s53
    %p65 = scmp.eq.s32.totalorder %s22, 1
    %p66 = por %p64, %p65
    %p68 = scmp.ne.s32.totalorder %s53, %s67
    %p69 = scmp.eq.s32.totalorder %s22, 0
    %p70 = por %p68, %p69
    %s72 = sadd.s32 %s71, 1
    %p75 = scmp.eq.s32.totalorder %s16, 1
    %p76 = scmp.ne.s32.totalorder %s71, %s73
    %p77 = scmp.eq.s32.totalorder %s16, 0
    %p78 = por %p76, %p77
    %p79 = scmp.ne.s32.totalorder %s71, %s73
    %p80 = scmp.eq.s32.totalorder %s21, 1
    %p81 = por %p79, %p80
    %p82 = scmp.ne.s32.totalorder %s73, %s74
    %p83 = scmp.eq.s32.totalorder %s21, 0
    %p84 = por %p82, %p83
    %p85 = scmp.ne.s32.totalorder %s73, %s74
    %p86 = scmp.eq.s32.totalorder %s22, 1
    %p87 = por %p85, %p86
    %p89 = scmp.ne.s32.totalorder %s74, %s88
    %p90 = scmp.eq.s32.totalorder %s22, 0
    %p91 = por %p89, %p90
    %s93 = sadd.s32 %s92, 1
    %p96 = scmp.eq.s32.totalorder %s16, 1
    %p97 = scmp.ne.s32.totalorder %s92, %s94
    %p98 = scmp.eq.s32.totalorder %s16, 0
    %p99 = por %p97, %p98
    %p100 = scmp.ne.s32.totalorder %s92, %s94
    %p101 = scmp.eq.s32.totalorder %s21, 1
    %p102 = por %p100, %p101
    %p103 = scmp.ne.s32.totalorder %s94, %s95
    %p104 = scmp.eq.s32.totalorder %s21, 0
    %p105 = por %p103, %p104
    %p106 = scmp.ne.s32.totalorder %s94, %s95
    %p107 = scmp.eq.s32.totalorder %s22, 1
    %p108 = por %p106, %p107
    %p110 = scmp.ne.s32.totalorder %s95, %s109
    %p111 = scmp.eq.s32.totalorder %s22, 0
    %p112 = por %p110, %p111
    %s114 = sadd.s32 %s113, 1
    %p117 = scmp.eq.s32.totalorder %s16, 1
    %p118 = scmp.ne.s32.totalorder %s113, %s115
    %p119 = scmp.eq.s32.totalorder %s16, 0
    %p120 = por %p118, %p119
    %p121 = scmp.ne.s32.totalorder %s113, %s115
    %p122 = scmp.eq.s32.totalorder %s21, 1
    %p123 = por %p121, %p122
    %p124 = scmp.ne.s32.totalorder %s115, %s116
    %p125 = scmp.eq.s32.totalorder %s21, 0
    %p126 = por %p124, %p125
    %p127 = scmp.ne.s32.totalorder %s115, %s116
    %p128 = scmp.eq.s32.totalorder %s22, 1
    %p129 = por %p127, %p128
    %p131 = scmp.ne.s32.totalorder %s116, %s130
    %p132 = scmp.eq.s32.totalorder %s22, 0
    %p133 = por %p131, %p132
    %s135 = sadd.s32 %s134, 1
    %p138 = scmp.eq.s32.totalorder %s16, 1
    %p139 = scmp.ne.s32.totalorder %s134, %s136
    %p140 = scmp.eq.s32.totalorder %s16, 0
    %p141 = por %p139, %p140
    %p142 = scmp.ne.s32.totalorder %s134, %s136
    %p143 = scmp.eq.s32.totalorder %s21, 1
    %p144 = por %p142, %p143
    %p145 = scmp.ne.s32.totalorder %s136, %s137
    %p146 = scmp.eq.s32.totalorder %s21, 0
    %p147 = por %p145, %p146
    %p148 = scmp.ne.s32.totalorder %s136, %s137
    %p149 = scmp.eq.s32.totalorder %s22, 1
    %p150 = por %p148, %p149
    %p152 = scmp.ne.s32.totalorder %s137, %s151
    %p153 = scmp.eq.s32.totalorder %s22, 0
    %p154 = por %p152, %p153
    %s156 = sadd.s32 %s155, 1
    %p159 = scmp.eq.s32.totalorder %s16, 1
    %p160 = scmp.ne.s32.totalorder %s155, %s157
    %p161 = scmp.eq.s32.totalorder %s16, 0
    %p162 = por %p160, %p161
    %p163 = scmp.ne.s32.totalorder %s155, %s157
    %p164 = scmp.eq.s32.totalorder %s21, 1
    %p165 = por %p163, %p164
    %p166 = scmp.ne.s32.totalorder %s157, %s158
    %p167 = scmp.eq.s32.totalorder %s21, 0
    %p168 = por %p166, %p167
    %p169 = scmp.ne.s32.totalorder %s157, %s158
    %p170 = scmp.eq.s32.totalorder %s22, 1
    %p171 = por %p169, %p170
    %p173 = scmp.ne.s32.totalorder %s158, %s172
    %p174 = scmp.eq.s32.totalorder %s22, 0
    %p175 = por %p173, %p174
    %s177 = sadd.s32 %s176, 1
    %p180 = scmp.eq.s32.totalorder %s16, 1
    %p181 = scmp.ne.s32.totalorder %s176, %s178
    %p182 = scmp.eq.s32.totalorder %s16, 0
    %p183 = por %p181, %p182
    %p184 = scmp.ne.s32.totalorder %s176, %s178
    %p185 = scmp.eq.s32.totalorder %s21, 1
    %p186 = por %p184, %p185
    %p187 = scmp.ne.s32.totalorder %s178, %s179
    %p188 = scmp.eq.s32.totalorder %s21, 0
    %p189 = por %p187, %p188
    %p190 = scmp.ne.s32.totalorder %s178, %s179
    %p191 = scmp.eq.s32.totalorder %s22, 1
    %p192 = por %p190, %p191
    %p194 = scmp.ne.s32.totalorder %s179, %s193
    %p195 = scmp.eq.s32.totalorder %s22, 0
    %p196 = por %p194, %p195
    %s197 = ssub.s32 %s16, %s23
    %p198 = scmp.eq.s32.totalorder %s197, 0
    %s200 = sadd.s32 %s199, 1
    %s201 = scalar_select %p198, %s199, %s200
    %p204 = pneg %p198
    %p205 = scmp.eq.s32.totalorder %s16, 1
    %p206 = por %p204, %p205
    %p207 = scmp.ne.s32.totalorder %s199, %s202
    %p208 = scmp.eq.s32.totalorder %s16, 0
    %p209 = por %p207, %p208
    %p210 = scmp.ne.s32.totalorder %s199, %s202
    %p211 = scmp.eq.s32.totalorder %s21, 1
    %p212 = por %p210, %p211
    %p213 = scmp.ne.s32.totalorder %s202, %s203
    %p214 = scmp.eq.s32.totalorder %s21, 0
    %p215 = por %p213, %p214
    %p216 = scmp.ne.s32.totalorder %s202, %s203
    %p217 = scmp.eq.s32.totalorder %s22, 1
    %p218 = por %p216, %p217
    %p220 = scmp.ne.s32.totalorder %s203, %s219
    %p221 = scmp.eq.s32.totalorder %s22, 0
    %p222 = por %p220, %p221
    %p223 = scmp.le.s32.totalorder 1, %s16
    %p224 = scmp.lt.s32.totalorder %s16, 3
    %p225 = pnand %p223, %p224
    %p226 = pneg %p225
    // Predicated region
    $region9: #{discriminator_forward.1} parent=5 // pred_check
      _
    $region10: #{discriminator_forward.1} parent=5 // pred_check_branch
      %228 = sbr.rel (%p225) target = $region12
    $region11: #{discriminator_forward.1} parent=5 // pred_region
      %s229 = ssub.s32 %s16, 1
      // Predicated region
      $region13: #{discriminator_forward.1} parent=11 // pred_check
        %p230 = pneg %p63
      $region14: #{discriminator_forward.1} parent=11 // pred_check_branch
        %232 = sbr.rel (%p230) target = $region16
      $region15: #{discriminator_forward.1} parent=11 // pred_region
        _
      $region16: #{discriminator_forward.1} parent=11 // pred_fallthru
        _
      // Predicated region
      $region17: #{discriminator_forward.1} parent=11 // pred_check
        %p233 = pneg %p84
      $region18: #{discriminator_forward.1} parent=11 // pred_check_branch
        %235 = sbr.rel (%p233) target = $region20
      $region19: #{discriminator_forward.1} parent=11 // pred_region
        _
      $region20: #{discriminator_forward.1} parent=11 // pred_fallthru
        _
      // Predicated region
      $region21: #{discriminator_forward.1} parent=11 // pred_check
        %p236 = pneg %p105
      $region22: #{discriminator_forward.1} parent=11 // pred_check_branch
        %238 = sbr.rel (%p236) target = $region24
      $region23: #{discriminator_forward.1} parent=11 // pred_region
        _
      $region24: #{discriminator_forward.1} parent=11 // pred_fallthru
        _
      // Predicated region
      $region25: #{discriminator_forward.1} parent=11 // pred_check
        %p239 = pneg %p126
      $region26: #{discriminator_forward.1} parent=11 // pred_check_branch
        %241 = sbr.rel (%p239) target = $region28
      $region27: #{discriminator_forward.1} parent=11 // pred_region
        _
      $region28: #{discriminator_forward.1} parent=11 // pred_fallthru
        _
      // Predicated region
      $region29: #{discriminator_forward.1} parent=11 // pred_check
        %p242 = pneg %p147
      $region30: #{discriminator_forward.1} parent=11 // pred_check_branch
        %244 = sbr.rel (%p242) target = $region32
      $region31: #{discriminator_forward.1} parent=11 // pred_region
        _
      $region32: #{discriminator_forward.1} parent=11 // pred_fallthru
        _
      // Predicated region
      $region33: #{discriminator_forward.1} parent=11 // pred_check
        %p245 = pneg %p168
      $region34: #{discriminator_forward.1} parent=11 // pred_check_branch
        %247 = sbr.rel (%p245) target = $region36
      $region35: #{discriminator_forward.1} parent=11 // pred_region
        _
      $region36: #{discriminator_forward.1} parent=11 // pred_fallthru
        _
      // Predicated region
      $region37: #{discriminator_forward.1} parent=11 // pred_check
        %p248 = pneg %p189
      $region38: #{discriminator_forward.1} parent=11 // pred_check_branch
        %250 = sbr.rel (%p248) target = $region40
      $region39: #{discriminator_forward.1} parent=11 // pred_region
        _
      $region40: #{discriminator_forward.1} parent=11 // pred_fallthru
        _
    $region12: #{discriminator_forward.1} parent=5 // pred_fallthru
      _
    %p251 = scmp.lt.s32.totalorder %s16, 2
    // Predicated region
    $region41: #{discriminator_forward.1} parent=5 // pred_check
      %p252 = pneg %p251
    $region42: #{discriminator_forward.1} parent=5 // pred_check_branch
      %254 = sbr.rel (%p252) target = $region44
    $region43: #{discriminator_forward.1} parent=5 // pred_region
      // Predicated region
      $region45: #{discriminator_forward.1} parent=43 // pred_check
        %p255 = pneg %p36
      $region46: #{discriminator_forward.1} parent=43 // pred_check_branch
        %257 = sbr.rel (%p255) target = $region48
      $region47: #{discriminator_forward.1} parent=43 // pred_region
        %p258 = scmp.lt.s32.totalorder %s16, 1
        %s259 = scalar_select %p258, %s16, 1
        %s260 = smul.addr %s259, 32
        %s261 = smul.addr %s260, 4
        %s262 = scalar_lea.vmem %s0, %s261
      $region48: #{discriminator_forward.1} parent=43 // pred_fallthru
        _
    $region44: #{discriminator_forward.1} parent=5 // pred_fallthru
      _
    %p263 = scmp.le.s32.totalorder 1, %s16
    %p264 = scmp.lt.s32.totalorder %s16, 3
    %p265 = pnand %p263, %p264
    %p266 = pneg %p265
    // Predicated region
    $region49: #{discriminator_forward.1} parent=5 // pred_check
      _
    $region50: #{discriminator_forward.1} parent=5 // pred_check_branch
      %268 = sbr.rel (%p265) target = $region52
    $region51: #{discriminator_forward.1} parent=5 // pred_region
      %s269 = ssub.s32 %s16, 1
      %p270 = scmp.lt.s32.totalorder %s21, 1
      %s271 = scalar_select %p270, %s21, 1
      %s272 = smul.addr %s271, 32
      %s273 = smul.addr %s272, 4
      %s274 = scalar_lea.vmem %s0, %s273
      %p275 = pneg %p42
      %p276 = pneg %p39
      %p277 = pneg %p63
      %p278 = pneg %p60
      %p279 = pneg %p84
      %p280 = pneg %p81
      %p281 = pneg %p105
      %p282 = pneg %p102
      %p283 = pneg %p126
      %p284 = pneg %p123
      %p285 = pneg %p147
      %p286 = pneg %p144
      %p287 = pneg %p168
      %p288 = pneg %p165
      %p289 = pneg %p189
      %p290 = pneg %p186
      %p291 = pneg %p215
      %p292 = pneg %p212
      %p293 = scmp.lt.s32.totalorder %s21, 1
      %s294 = scalar_select %p293, %s21, 1
      %s295 = scalar_lea.vmem %s8, %s294
      %p296 = scmp.lt.s32.totalorder %s21, 1
      %s297 = scalar_select %p296, %s21, 1
      %s298 = smul.addr %s297, 32
      %s299 = smul.addr %s298, 4
      %s300 = scalar_lea.vmem %s0, %s299
      %p301 = scmp.lt.s32.totalorder %s21, 1
      %s302 = scalar_select %p301, %s21, 1
      %s303 = scalar_lea.vmem %s8, %s302
      %v305 = vld [vmem:[%s1] sm:$0xf]
      %v306 = vld [vmem:[%s1 + $0x4] sm:$0xf]
      %v307 = vld [vmem:[%s1 + $0x8] sm:$0xf]
      %v308 = vld [vmem:[%s1 + $0xc] sm:$0xf]
      %v309 = vld [vmem:[%s1 + $0x10] sm:$0xf]
      %v310 = vld [vmem:[%s1 + $0x14] sm:$0xf]
      %v311 = vld [vmem:[%s2] sm:$0xff]
      %v312 = vld [vmem:[%s2 + $0x8] sm:$0xff]
      %v313 = vld [vmem:[%s2 + $0x10] sm:$0xff]
      %v314 = vld [vmem:[%s2 + $0x18] sm:$0xff]
      %v315 = vld [vmem:[%s2 + $0x20] sm:$0xff]
      %v316 = vld [vmem:[%s2 + $0x28] sm:$0xff]
      %v317 = vld [vmem:[%s2 + $0x30] sm:$0xff]
      %v318 = vld [vmem:[%s2 + $0x38] sm:$0xff]
      %v319 = vld [vmem:[%s2 + $0x40] sm:$0xff]
      %v320 = vld [vmem:[%s2 + $0x48] sm:$0xff]
      %v321 = vld [vmem:[%s2 + $0x50] sm:$0xff]
      %v322 = vld [vmem:[%s2 + $0x58] sm:$0xff]
      %v323 = vld [vmem:[%s2 + $0x60] sm:$0xff]
      %v324 = vld [vmem:[%s2 + $0x68] sm:$0xff]
      %v325 = vld [vmem:[%s2 + $0x70] sm:$0xff]
      %v326 = vld [vmem:[%s2 + $0x78] sm:$0xff]
      %v327 = vld [vmem:[%s2 + $0x80] sm:$0xff]
      %v328 = vld [vmem:[%s2 + $0x88] sm:$0xff]
      %v329 = vld [vmem:[%s2 + $0x90] sm:$0xff]
      %v330 = vld [vmem:[%s2 + $0x98] sm:$0xff]
      %v331 = vld [vmem:[%s2 + $0xa0] sm:$0xff]
      %v332 = vld [vmem:[%s2 + $0xa8] sm:$0xff]
      %v333 = vld [vmem:[%s2 + $0xb0] sm:$0xff]
      %v334 = vld [vmem:[%s2 + $0xb8] sm:$0xff]
      %v335 = vld [vmem:[%s2 + $0xc0] sm:$0xff]
      %v336 = vld [vmem:[%s2 + $0xc8] sm:$0xff]
      %v337 = vld [vmem:[%s2 + $0xd0] sm:$0xff]
      %v338 = vld [vmem:[%s2 + $0xd8] sm:$0xff]
      %v339 = vld [vmem:[%s2 + $0xe0] sm:$0xff]
      %v340 = vld [vmem:[%s2 + $0xe8] sm:$0xff]
      %v341 = vld [vmem:[%s2 + $0xf0] sm:$0xff]
      %v342 = vld [vmem:[%s2 + $0xf8] sm:$0xff]
      %v343 = vld [vmem:[%s2 + $0x100] sm:$0xff]
      %v344 = vld [vmem:[%s2 + $0x108] sm:$0xff]
      %v345 = vld [vmem:[%s2 + $0x110] sm:$0xff]
      %v346 = vld [vmem:[%s2 + $0x118] sm:$0xff]
      %v347 = vld [vmem:[%s2 + $0x120] sm:$0xff]
      %v348 = vld [vmem:[%s2 + $0x128] sm:$0xff]
      %v349 = vld [vmem:[%s2 + $0x130] sm:$0xff]
      %v350 = vld [vmem:[%s2 + $0x138] sm:$0xff]
      %v351 = vld [vmem:[%s2 + $0x140] sm:$0xff]
      %v352 = vld [vmem:[%s2 + $0x148] sm:$0xff]
      %v353 = vld [vmem:[%s2 + $0x150] sm:$0xff]
      %v354 = vld [vmem:[%s2 + $0x158] sm:$0xff]
      %v355 = vld [vmem:[%s2 + $0x160] sm:$0xff]
      %v356 = vld [vmem:[%s2 + $0x168] sm:$0xff]
      %v357 = vld [vmem:[%s2 + $0x170] sm:$0xff]
      %v358 = vld [vmem:[%s2 + $0x178] sm:$0xff]
      %v359 = vld [vmem:[%s2 + $0x180] sm:$0xff]
      %v360 = vld [vmem:[%s2 + $0x188] sm:$0xff]
      %v361 = vld [vmem:[%s2 + $0x190] sm:$0xff]
      %v362 = vld [vmem:[%s2 + $0x198] sm:$0xff]
      %v363 = vld [vmem:[%s2 + $0x1a0] sm:$0xff]
      %v364 = vld [vmem:[%s2 + $0x1a8] sm:$0xff]
      %v365 = vld [vmem:[%s2 + $0x1b0] sm:$0xff]
      %v366 = vld [vmem:[%s2 + $0x1b8] sm:$0xff]
      %v367 = vld [vmem:[%s2 + $0x1c0] sm:$0xff]
      %v368 = vld [vmem:[%s2 + $0x1c8] sm:$0xff]
      %v369 = vld [vmem:[%s2 + $0x1d0] sm:$0xff]
      %v370 = vld [vmem:[%s2 + $0x1d8] sm:$0xff]
      %v371 = vld [vmem:[%s2 + $0x1e0] sm:$0xff]
      %v372 = vld [vmem:[%s2 + $0x1e8] sm:$0xff]
      %v373 = vld [vmem:[%s2 + $0x1f0] sm:$0xff]
      %v374 = vld [vmem:[%s2 + $0x1f8] sm:$0xff]
      %v375 = vld [vmem:[%s2 + $0x200] sm:$0xff]
      %v376 = vld [vmem:[%s2 + $0x208] sm:$0xff]
      %v377 = vld [vmem:[%s2 + $0x210] sm:$0xff]
      %v378 = vld [vmem:[%s2 + $0x218] sm:$0xff]
      %v379 = vld [vmem:[%s2 + $0x220] sm:$0xff]
      %v380 = vld [vmem:[%s2 + $0x228] sm:$0xff]
      %v381 = vld [vmem:[%s2 + $0x230] sm:$0xff]
      %v382 = vld [vmem:[%s2 + $0x238] sm:$0xff]
      %v383 = vld [vmem:[%s2 + $0x240] sm:$0xff]
      %v384 = vld [vmem:[%s2 + $0x248] sm:$0xff]
      %v385 = vld [vmem:[%s2 + $0x250] sm:$0xff]
      %v386 = vld [vmem:[%s2 + $0x258] sm:$0xff]
      %v387 = vld [vmem:[%s2 + $0x260] sm:$0xff]
      %v388 = vld [vmem:[%s2 + $0x268] sm:$0xff]
      %v389 = vld [vmem:[%s2 + $0x270] sm:$0xff]
      %v390 = vld [vmem:[%s2 + $0x278] sm:$0xff]
      %v391 = vld [vmem:[%s2 + $0x280] sm:$0xff]
      %v392 = vld [vmem:[%s2 + $0x288] sm:$0xff]
      %v393 = vld [vmem:[%s2 + $0x290] sm:$0xff]
      %v394 = vld [vmem:[%s2 + $0x298] sm:$0xff]
      %v395 = vld [vmem:[%s2 + $0x2a0] sm:$0xff]
      %v396 = vld [vmem:[%s2 + $0x2a8] sm:$0xff]
      %v397 = vld [vmem:[%s2 + $0x2b0] sm:$0xff]
      %v398 = vld [vmem:[%s2 + $0x2b8] sm:$0xff]
      %v399 = vld [vmem:[%s2 + $0x2c0] sm:$0xff]
      %v400 = vld [vmem:[%s2 + $0x2c8] sm:$0xff]
      %v401 = vld [vmem:[%s2 + $0x2d0] sm:$0xff]
      %v402 = vld [vmem:[%s2 + $0x2d8] sm:$0xff]
      %v403 = vld [vmem:[%s2 + $0x2e0] sm:$0xff]
      %v404 = vld [vmem:[%s2 + $0x2e8] sm:$0xff]
      %v405 = vld [vmem:[%s2 + $0x2f0] sm:$0xff]
      %v406 = vld [vmem:[%s2 + $0x2f8] sm:$0xff]
      %v407 = vld [vmem:[%s2 + $0x300] sm:$0xff]
      %v408 = vld [vmem:[%s2 + $0x308] sm:$0xff]
      %v409 = vld [vmem:[%s2 + $0x310] sm:$0xff]
      %v410 = vld [vmem:[%s2 + $0x318] sm:$0xff]
      %v411 = vld [vmem:[%s2 + $0x320] sm:$0xff]
      %v412 = vld [vmem:[%s2 + $0x328] sm:$0xff]
      %v413 = vld [vmem:[%s2 + $0x330] sm:$0xff]
      %v414 = vld [vmem:[%s2 + $0x338] sm:$0xff]
      %v415 = vld [vmem:[%s2 + $0x340] sm:$0xff]
      %v416 = vld [vmem:[%s2 + $0x348] sm:$0xff]
      %v417 = vld [vmem:[%s2 + $0x350] sm:$0xff]
      %v418 = vld [vmem:[%s2 + $0x358] sm:$0xff]
      %v419 = vld [vmem:[%s2 + $0x360] sm:$0xff]
      %v420 = vld [vmem:[%s2 + $0x368] sm:$0xff]
      %v421 = vld [vmem:[%s2 + $0x370] sm:$0xff]
      %v422 = vld [vmem:[%s2 + $0x378] sm:$0xff]
      %v423 = vld [vmem:[%s2 + $0x380] sm:$0xff]
      %v424 = vld [vmem:[%s2 + $0x388] sm:$0xff]
      %v425 = vld [vmem:[%s2 + $0x390] sm:$0xff]
      %v426 = vld [vmem:[%s2 + $0x398] sm:$0xff]
      %v427 = vld [vmem:[%s2 + $0x3a0] sm:$0xff]
      %v428 = vld [vmem:[%s2 + $0x3a8] sm:$0xff]
      %v429 = vld [vmem:[%s2 + $0x3b0] sm:$0xff]
      %v430 = vld [vmem:[%s2 + $0x3b8] sm:$0xff]
      %v431 = vld [vmem:[%s2 + $0x3c0] sm:$0xff]
      %v432 = vld [vmem:[%s2 + $0x3c8] sm:$0xff]
      %v433 = vld [vmem:[%s2 + $0x3d0] sm:$0xff]
      %v434 = vld [vmem:[%s2 + $0x3d8] sm:$0xff]
      %v435 = vld [vmem:[%s2 + $0x3e0] sm:$0xff]
      %v436 = vld [vmem:[%s2 + $0x3e8] sm:$0xff]
      %v437 = vld [vmem:[%s2 + $0x3f0] sm:$0xff]
      %v438 = vld [vmem:[%s2 + $0x3f8] sm:$0xff]
      %v439 = vld [vmem:[%s4] sm:$0xf]
      %v440 = vld [vmem:[%s4 + $0x4] sm:$0xf]
      %v441 = vld [vmem:[%s4 + $0x8] sm:$0xf]
      %v442 = vld [vmem:[%s4 + $0xc] sm:$0xf]
      %v443 = vld [vmem:[%s4 + $0x10] sm:$0xf]
      %v444 = vld [vmem:[%s4 + $0x14] sm:$0xf]
      %v445 = vld [vmem:[%s4 + $0x18] sm:$0xf]
      %v446 = vld [vmem:[%s4 + $0x1c] sm:$0xf]
      %v447 = vld [vmem:[%s4 + $0x20] sm:$0xf]
      %v448 = vld [vmem:[%s4 + $0x24] sm:$0xf]
      %v449 = vld [vmem:[%s4 + $0x28] sm:$0xf]
      %v450 = vld [vmem:[%s4 + $0x2c] sm:$0xf]
      %v451 = vld [vmem:[%s4 + $0x30] sm:$0xf]
      %v452 = vld [vmem:[%s4 + $0x34] sm:$0xf]
      %v453 = vld [vmem:[%s4 + $0x38] sm:$0xf]
      %v454 = vld [vmem:[%s4 + $0x3c] sm:$0xf]
      %v455 = vld [vmem:[%s4 + $0x40] sm:$0xf]
      %v456 = vld [vmem:[%s4 + $0x44] sm:$0xf]
      %v457 = vld [vmem:[%s4 + $0x48] sm:$0xf]
      %v458 = vld [vmem:[%s4 + $0x4c] sm:$0xf]
      %v459 = vld [vmem:[%s4 + $0x50] sm:$0xf]
      %v460 = vld [vmem:[%s4 + $0x54] sm:$0xf]
      %v461 = vld [vmem:[%s4 + $0x58] sm:$0xf]
      %v462 = vld [vmem:[%s4 + $0x5c] sm:$0xf]
      %v463 = vld [vmem:[%s4 + $0x60] sm:$0xf]
      %v464 = vld [vmem:[%s4 + $0x64] sm:$0xf]
      %v465 = vld [vmem:[%s4 + $0x68] sm:$0xf]
      %v466 = vld [vmem:[%s4 + $0x6c] sm:$0xf]
      %v467 = vld [vmem:[%s4 + $0x70] sm:$0xf]
      %v468 = vld [vmem:[%s4 + $0x74] sm:$0xf]
      %v469 = vld [vmem:[%s4 + $0x78] sm:$0xf]
      %v470 = vld [vmem:[%s4 + $0x7c] sm:$0xf]
      %v471 = vld [vmem:[%s6] sm:$0xff]
      %v472 = vld [vmem:[%s6 + $0x8] sm:$0xff]
      %v473 = vld [vmem:[#allocation2] sm:$0x1]
      %v474 = vld [vmem:[%s300] sm:$0xf]
      %v475 = vld [vmem:[%s300 + $0x4] sm:$0xf]
      %v476 = vld [vmem:[%s300 + $0x8] sm:$0xf]
      %v477 = vld [vmem:[%s300 + $0xc] sm:$0xf]
      %v478 = vld [vmem:[%s300 + $0x10] sm:$0xf]
      %v479 = vld [vmem:[%s300 + $0x14] sm:$0xf]
      %v480 = vld [vmem:[%s300 + $0x18] sm:$0xf]
      %v481 = vld [vmem:[%s300 + $0x1c] sm:$0xf]
      %v482 = vld [vmem:[%s300 + $0x20] sm:$0xf]
      %v483 = vld [vmem:[%s300 + $0x24] sm:$0xf]
      %v484 = vld [vmem:[%s300 + $0x28] sm:$0xf]
      %v485 = vld [vmem:[%s300 + $0x2c] sm:$0xf]
      %v486 = vld [vmem:[%s300 + $0x30] sm:$0xf]
      %v487 = vld [vmem:[%s300 + $0x34] sm:$0xf]
      %v488 = vld [vmem:[%s300 + $0x38] sm:$0xf]
      %v489 = vld [vmem:[%s300 + $0x3c] sm:$0xf]
      %v490 = vld [vmem:[%s300 + $0x40] sm:$0xf]
      %v491 = vld [vmem:[%s300 + $0x44] sm:$0xf]
      %v492 = vld [vmem:[%s300 + $0x48] sm:$0xf]
      %v493 = vld [vmem:[%s300 + $0x4c] sm:$0xf]
      %v494 = vld [vmem:[%s300 + $0x50] sm:$0xf]
      %v495 = vld [vmem:[%s300 + $0x54] sm:$0xf]
      %v496 = vld [vmem:[%s300 + $0x58] sm:$0xf]
      %v497 = vld [vmem:[%s300 + $0x5c] sm:$0xf]
      %v498 = vld [vmem:[%s300 + $0x60] sm:$0xf]
      %v499 = vld [vmem:[%s300 + $0x64] sm:$0xf]
      %v500 = vld [vmem:[%s300 + $0x68] sm:$0xf]
      %v501 = vld [vmem:[%s300 + $0x6c] sm:$0xf]
      %v502 = vld [vmem:[%s300 + $0x70] sm:$0xf]
      %v503 = vld [vmem:[%s300 + $0x74] sm:$0xf]
      %v504 = vld [vmem:[%s300 + $0x78] sm:$0xf]
      %v505 = vld [vmem:[%s300 + $0x7c] sm:$0xf]
      %v538 = vunpack.c.l.b16 %v474
      %v539 = vunpack.c.l.b16 %v475
      %v540 = vunpack.c.l.b16 %v476
      %v541 = vunpack.c.l.b16 %v477
      %v542 = vunpack.c.l.b16 %v478
      %v543 = vunpack.c.l.b16 %v479
      %v544 = vunpack.c.l.b16 %v480
      %v545 = vunpack.c.l.b16 %v481
      %v546 = vunpack.c.l.b16 %v482
      %v547 = vunpack.c.l.b16 %v483
      %v548 = vunpack.c.l.b16 %v484
      %v549 = vunpack.c.l.b16 %v485
      %v550 = vunpack.c.l.b16 %v486
      %v551 = vunpack.c.l.b16 %v487
      %v552 = vunpack.c.l.b16 %v488
      %v553 = vunpack.c.l.b16 %v489
      %v554 = vunpack.c.l.b16 %v490
      %v555 = vunpack.c.l.b16 %v491
      %v556 = vunpack.c.l.b16 %v492
      %v557 = vunpack.c.l.b16 %v493
      %v558 = vunpack.c.l.b16 %v494
      %v559 = vunpack.c.l.b16 %v495
      %v560 = vunpack.c.l.b16 %v496
      %v561 = vunpack.c.l.b16 %v497
      %v562 = vunpack.c.l.b16 %v498
      %v563 = vunpack.c.l.b16 %v499
      %v564 = vunpack.c.l.b16 %v500
      %v565 = vunpack.c.l.b16 %v501
      %v566 = vunpack.c.l.b16 %v502
      %v567 = vunpack.c.l.b16 %v503
      %v568 = vunpack.c.l.b16 %v504
      %v569 = vunpack.c.l.b16 %v505
      %v570 = vpack.c.b16 %v539, %v538
      %v571 = vpack.c.b16 %v541, %v540
      %v572 = vpack.c.b16 %v543, %v542
      %v573 = vpack.c.b16 %v545, %v544
      %v574 = vpack.c.b16 %v547, %v546
      %v575 = vpack.c.b16 %v549, %v548
      %v576 = vpack.c.b16 %v551, %v550
      %v577 = vpack.c.b16 %v553, %v552
      %v578 = vpack.c.b16 %v555, %v554
      %v579 = vpack.c.b16 %v557, %v556
      %v580 = vpack.c.b16 %v559, %v558
      %v581 = vpack.c.b16 %v561, %v560
      %v582 = vpack.c.b16 %v563, %v562
      %v583 = vpack.c.b16 %v565, %v564
      %v584 = vpack.c.b16 %v567, %v566
      %v585 = vpack.c.b16 %v569, %v568
      %v592 = vunpack.c.l.b16 %v305
      %v593 = vunpack.c.l.b16 %v306
      %v594 = vunpack.c.l.b16 %v307
      %v595 = vunpack.c.l.b16 %v308
      %v596 = vunpack.c.l.b16 %v309
      %v597 = vunpack.c.l.b16 %v310
      %v598 = vpack.c.b16 %v593, %v592
      %v599 = vpack.c.b16 %v595, %v594
      %v600 = vpack.c.b16 %v597, %v596
      %vm604 = vcmask 392192
      %v606 = vsel %vm604, %v570, 0
      %v609 = vsel %vm604, %v571, 0
      %v612 = vsel %vm604, %v572, 0
      %v615 = vsel %vm604, %v573, 0
      %v618 = vsel %vm604, %v574, 0
      %v621 = vsel %vm604, %v575, 0
      %v624 = vsel %vm604, %v576, 0
      %v627 = vsel %vm604, %v577, 0
      %v630 = vsel %vm604, %v578, 0
      %v633 = vsel %vm604, %v579, 0
      %v636 = vsel %vm604, %v580, 0
      %v639 = vsel %vm604, %v581, 0
      %v642 = vsel %vm604, %v582, 0
      %v645 = vsel %vm604, %v583, 0
      %v648 = vsel %vm604, %v584, 0
      %v651 = vsel %vm604, %v585, 0
      %653 = vmatpush.bf16.msra.mxu0 0
      %654 = vmatpush.bf16.msra.mxu0 0
      %655 = vmatpush.bf16.msra.mxu0 0
      %656 = vmatpush.bf16.msra.mxu0 0
      %657 = vmatpush.bf16.msra.mxu0 0
      %658 = vmatpush.bf16.msra.mxu0 %v600
      %659 = vmatpush.bf16.msra.mxu0 %v599
      %660 = vmatpush.bf16.msra.mxu0 %v598
      %661 = vmatmul.bf16.gmra.mxu0 %v606
      %v662 = vpop.f32.mrf.mxu0
      %v663 = vadd.f32 0.0, %v662
      %v664 = vpop.f32.mrf.mxu0
      %v665 = vadd.f32 0.0, %v664
      %666 = vmatmul.bf16.gmra.mxu0 %v609
      %v667 = vpop.f32.mrf.mxu0
      %v668 = vadd.f32 0.0, %v667
      %v669 = vpop.f32.mrf.mxu0
      %v670 = vadd.f32 0.0, %v669
      %671 = vmatmul.bf16.gmra.mxu0 %v612
      %v672 = vpop.f32.mrf.mxu0
      %v673 = vadd.f32 0.0, %v672
      %v674 = vpop.f32.mrf.mxu0
      %v675 = vadd.f32 0.0, %v674
      %676 = vmatmul.bf16.gmra.mxu0 %v615
      %v677 = vpop.f32.mrf.mxu0
      %v678 = vadd.f32 0.0, %v677
      %v679 = vpop.f32.mrf.mxu0
      %v680 = vadd.f32 0.0, %v679
      %681 = vmatmul.bf16.gmra.mxu0 %v618
      %v682 = vpop.f32.mrf.mxu0
      %v683 = vadd.f32 0.0, %v682
      %v684 = vpop.f32.mrf.mxu0
      %v685 = vadd.f32 0.0, %v684
      %686 = vmatmul.bf16.gmra.mxu0 %v621
      %v687 = vpop.f32.mrf.mxu0
      %v688 = vadd.f32 0.0, %v687
      %v689 = vpop.f32.mrf.mxu0
      %v690 = vadd.f32 0.0, %v689
      %691 = vmatmul.bf16.gmra.mxu0 %v624
      %v692 = vpop.f32.mrf.mxu0
      %v693 = vadd.f32 0.0, %v692
      %v694 = vpop.f32.mrf.mxu0
      %v695 = vadd.f32 0.0, %v694
      %696 = vmatmul.bf16.gmra.mxu0 %v627
      %v697 = vpop.f32.mrf.mxu0
      %v698 = vadd.f32 0.0, %v697
      %v699 = vpop.f32.mrf.mxu0
      %v700 = vadd.f32 0.0, %v699
      %701 = vmatmul.bf16.gmra.mxu0 %v630
      %v702 = vpop.f32.mrf.mxu0
      %v703 = vadd.f32 0.0, %v702
      %v704 = vpop.f32.mrf.mxu0
      %v705 = vadd.f32 0.0, %v704
      %706 = vmatmul.bf16.gmra.mxu0 %v633
      %v707 = vpop.f32.mrf.mxu0
      %v708 = vadd.f32 0.0, %v707
      %v709 = vpop.f32.mrf.mxu0
      %v710 = vadd.f32 0.0, %v709
      %711 = vmatmul.bf16.gmra.mxu0 %v636
      %v712 = vpop.f32.mrf.mxu0
      %v713 = vadd.f32 0.0, %v712
      %v714 = vpop.f32.mrf.mxu0
      %v715 = vadd.f32 0.0, %v714
      %716 = vmatmul.bf16.gmra.mxu0 %v639
      %v717 = vpop.f32.mrf.mxu0
      %v718 = vadd.f32 0.0, %v717
      %v719 = vpop.f32.mrf.mxu0
      %v720 = vadd.f32 0.0, %v719
      %721 = vmatmul.bf16.gmra.mxu0 %v642
      %v722 = vpop.f32.mrf.mxu0
      %v723 = vadd.f32 0.0, %v722
      %v724 = vpop.f32.mrf.mxu0
      %v725 = vadd.f32 0.0, %v724
      %726 = vmatmul.bf16.gmra.mxu0 %v645
      %v727 = vpop.f32.mrf.mxu0
      %v728 = vadd.f32 0.0, %v727
      %v729 = vpop.f32.mrf.mxu0
      %v730 = vadd.f32 0.0, %v729
      %731 = vmatmul.bf16.gmra.mxu0 %v648
      %v732 = vpop.f32.mrf.mxu0
      %v733 = vadd.f32 0.0, %v732
      %v734 = vpop.f32.mrf.mxu0
      %v735 = vadd.f32 0.0, %v734
      %736 = vmatmul.bf16.gmra.mxu0 %v651
      %v737 = vpop.f32.mrf.mxu0
      %v738 = vadd.f32 0.0, %v737
      %v739 = vpop.f32.mrf.mxu0
      %v740 = vadd.f32 0.0, %v739
      %741 = vdwg.mxu0
      %vm742 = vcmask 261120
      %v743 = vsel %vm742, %v663, 0.0
      %v744 = vsel %vm742, %v665, 0.0
      %v745 = vadd.f32 %v743, %v744
      %v746 = vsel %vm742, %v668, 0.0
      %v747 = vadd.f32 %v745, %v746
      %v748 = vsel %vm742, %v670, 0.0
      %v749 = vadd.f32 %v747, %v748
      %v750 = vsel %vm742, %v673, 0.0
      %v751 = vadd.f32 %v749, %v750
      %v752 = vsel %vm742, %v675, 0.0
      %v753 = vadd.f32 %v751, %v752
      %v754 = vsel %vm742, %v678, 0.0
      %v755 = vadd.f32 %v753, %v754
      %v756 = vsel %vm742, %v680, 0.0
      %v757 = vadd.f32 %v755, %v756
      %v758 = vsel %vm742, %v683, 0.0
      %v759 = vadd.f32 %v757, %v758
      %v760 = vsel %vm742, %v685, 0.0
      %v761 = vadd.f32 %v759, %v760
      %v762 = vsel %vm742, %v688, 0.0
      %v763 = vadd.f32 %v761, %v762
      %v764 = vsel %vm742, %v690, 0.0
      %v765 = vadd.f32 %v763, %v764
      %v766 = vsel %vm742, %v693, 0.0
      %v767 = vadd.f32 %v765, %v766
      %v768 = vsel %vm742, %v695, 0.0
      %v769 = vadd.f32 %v767, %v768
      %v770 = vsel %vm742, %v698, 0.0
      %v771 = vadd.f32 %v769, %v770
      %v772 = vsel %vm742, %v700, 0.0
      %v773 = vadd.f32 %v771, %v772
      %v774 = vsel %vm742, %v703, 0.0
      %v775 = vadd.f32 %v773, %v774
      %v776 = vsel %vm742, %v705, 0.0
      %v777 = vadd.f32 %v775, %v776
      %v778 = vsel %vm742, %v708, 0.0
      %v779 = vadd.f32 %v777, %v778
      %v780 = vsel %vm742, %v710, 0.0
      %v781 = vadd.f32 %v779, %v780
      %v782 = vsel %vm742, %v713, 0.0
      %v783 = vadd.f32 %v781, %v782
      %v784 = vsel %vm742, %v715, 0.0
      %v785 = vadd.f32 %v783, %v784
      %v786 = vsel %vm742, %v718, 0.0
      %v787 = vadd.f32 %v785, %v786
      %v788 = vsel %vm742, %v720, 0.0
      %v789 = vadd.f32 %v787, %v788
      %v790 = vsel %vm742, %v723, 0.0
      %v791 = vadd.f32 %v789, %v790
      %v792 = vsel %vm742, %v725, 0.0
      %v793 = vadd.f32 %v791, %v792
      %v794 = vsel %vm742, %v728, 0.0
      %v795 = vadd.f32 %v793, %v794
      %v796 = vsel %vm742, %v730, 0.0
      %v797 = vadd.f32 %v795, %v796
      %v798 = vsel %vm742, %v733, 0.0
      %v799 = vadd.f32 %v797, %v798
      %v800 = vsel %vm742, %v735, 0.0
      %v801 = vadd.f32 %v799, %v800
      %v802 = vsel %vm742, %v738, 0.0
      %v803 = vadd.f32 %v801, %v802
      %v804 = vsel %vm742, %v740, 0.0
      %v805 = vadd.f32 %v803, %v804
      %v806 = vrot.slane %v805, 4
      %v807 = vadd.f32 %v805, %v806
      %v808 = vrot.slane %v807, 2
      %v809 = vadd.f32 %v807, %v808
      %v810 = vrot.slane %v809, 1
      %v811 = vadd.f32 %v809, %v810
      %v812 = vrcp.pop 256.0
      %v813 = vmul.f32 256.0, %v812
      %v814 = vsub.f32 1.0, %v813
      %v815 = vmul.f32 %v812, %v814
      %v816 = vadd.f32 %v812, %v815
      %vm817 = vweird.f32 %v812
      %v818 = vsel %vm817, %v812, %v816
      %v819 = vmul.f32 %v811, %v818
      %v820 = vsub.f32 %v663, %v819
      %v821 = vsub.f32 %v665, %v819
      %v822 = vsub.f32 %v668, %v819
      %v823 = vsub.f32 %v670, %v819
      %v824 = vsub.f32 %v673, %v819
      %v825 = vsub.f32 %v675, %v819
      %v826 = vsub.f32 %v678, %v819
      %v827 = vsub.f32 %v680, %v819
      %v828 = vsub.f32 %v683, %v819
      %v829 = vsub.f32 %v685, %v819
      %v830 = vsub.f32 %v688, %v819
      %v831 = vsub.f32 %v690, %v819
      %v832 = vsub.f32 %v693, %v819
      %v833 = vsub.f32 %v695, %v819
      %v834 = vsub.f32 %v698, %v819
      %v835 = vsub.f32 %v700, %v819
      %v836 = vsub.f32 %v703, %v819
      %v837 = vsub.f32 %v705, %v819
      %v838 = vsub.f32 %v708, %v819
      %v839 = vsub.f32 %v710, %v819
      %v840 = vsub.f32 %v713, %v819
      %v841 = vsub.f32 %v715, %v819
      %v842 = vsub.f32 %v718, %v819
      %v843 = vsub.f32 %v720, %v819
      %v844 = vsub.f32 %v723, %v819
      %v845 = vsub.f32 %v725, %v819
      %v846 = vsub.f32 %v728, %v819
      %v847 = vsub.f32 %v730, %v819
      %v848 = vsub.f32 %v733, %v819
      %v849 = vsub.f32 %v735, %v819
      %v850 = vsub.f32 %v738, %v819
      %v851 = vsub.f32 %v740, %v819
      %v852 = vmul.f32 %v820, %v820
      %v853 = vmul.f32 %v821, %v821
      %v854 = vmul.f32 %v822, %v822
      %v855 = vmul.f32 %v823, %v823
      %v856 = vmul.f32 %v824, %v824
      %v857 = vmul.f32 %v825, %v825
      %v858 = vmul.f32 %v826, %v826
      %v859 = vmul.f32 %v827, %v827
      %v860 = vmul.f32 %v828, %v828
      %v861 = vmul.f32 %v829, %v829
      %v862 = vmul.f32 %v830, %v830
      %v863 = vmul.f32 %v831, %v831
      %v864 = vmul.f32 %v832, %v832
      %v865 = vmul.f32 %v833, %v833
      %v866 = vmul.f32 %v834, %v834
      %v867 = vmul.f32 %v835, %v835
      %v868 = vmul.f32 %v836, %v836
      %v869 = vmul.f32 %v837, %v837
      %v870 = vmul.f32 %v838, %v838
      %v871 = vmul.f32 %v839, %v839
      %v872 = vmul.f32 %v840, %v840
      %v873 = vmul.f32 %v841, %v841
      %v874 = vmul.f32 %v842, %v842
      %v875 = vmul.f32 %v843, %v843
      %v876 = vmul.f32 %v844, %v844
      %v877 = vmul.f32 %v845, %v845
      %v878 = vmul.f32 %v846, %v846
      %v879 = vmul.f32 %v847, %v847
      %v880 = vmul.f32 %v848, %v848
      %v881 = vmul.f32 %v849, %v849
      %v882 = vmul.f32 %v850, %v850
      %v883 = vmul.f32 %v851, %v851
      %v884 = vsel %vm742, %v852, 0.0
      %v885 = vsel %vm742, %v853, 0.0
      %v886 = vadd.f32 %v884, %v885
      %v887 = vsel %vm742, %v854, 0.0
      %v888 = vadd.f32 %v886, %v887
      %v889 = vsel %vm742, %v855, 0.0
      %v890 = vadd.f32 %v888, %v889
      %v891 = vsel %vm742, %v856, 0.0
      %v892 = vadd.f32 %v890, %v891
      %v893 = vsel %vm742, %v857, 0.0
      %v894 = vadd.f32 %v892, %v893
      %v895 = vsel %vm742, %v858, 0.0
      %v896 = vadd.f32 %v894, %v895
      %v897 = vsel %vm742, %v859, 0.0
      %v898 = vadd.f32 %v896, %v897
      %v899 = vsel %vm742, %v860, 0.0
      %v900 = vadd.f32 %v898, %v899
      %v901 = vsel %vm742, %v861, 0.0
      %v902 = vadd.f32 %v900, %v901
      %v903 = vsel %vm742, %v862, 0.0
      %v904 = vadd.f32 %v902, %v903
      %v905 = vsel %vm742, %v863, 0.0
      %v906 = vadd.f32 %v904, %v905
      %v907 = vsel %vm742, %v864, 0.0
      %v908 = vadd.f32 %v906, %v907
      %v909 = vsel %vm742, %v865, 0.0
      %v910 = vadd.f32 %v908, %v909
      %v911 = vsel %vm742, %v866, 0.0
      %v912 = vadd.f32 %v910, %v911
      %v913 = vsel %vm742, %v867, 0.0
      %v914 = vadd.f32 %v912, %v913
      %v915 = vsel %vm742, %v868, 0.0
      %v916 = vadd.f32 %v914, %v915
      %v917 = vsel %vm742, %v869, 0.0
      %v918 = vadd.f32 %v916, %v917
      %v919 = vsel %vm742, %v870, 0.0
      %v920 = vadd.f32 %v918, %v919
      %v921 = vsel %vm742, %v871, 0.0
      %v922 = vadd.f32 %v920, %v921
      %v923 = vsel %vm742, %v872, 0.0
      %v924 = vadd.f32 %v922, %v923
      %v925 = vsel %vm742, %v873, 0.0
      %v926 = vadd.f32 %v924, %v925
      %v927 = vsel %vm742, %v874, 0.0
      %v928 = vadd.f32 %v926, %v927
      %v929 = vsel %vm742, %v875, 0.0
      %v930 = vadd.f32 %v928, %v929
      %v931 = vsel %vm742, %v876, 0.0
      %v932 = vadd.f32 %v930, %v931
      %v933 = vsel %vm742, %v877, 0.0
      %v934 = vadd.f32 %v932, %v933
      %v935 = vsel %vm742, %v878, 0.0
      %v936 = vadd.f32 %v934, %v935
      %v937 = vsel %vm742, %v879, 0.0
      %v938 = vadd.f32 %v936, %v937
      %v939 = vsel %vm742, %v880, 0.0
      %v940 = vadd.f32 %v938, %v939
      %v941 = vsel %vm742, %v881, 0.0
      %v942 = vadd.f32 %v940, %v941
      %v943 = vsel %vm742, %v882, 0.0
      %v944 = vadd.f32 %v942, %v943
      %v945 = vsel %vm742, %v883, 0.0
      %v946 = vadd.f32 %v944, %v945
      %v947 = vrot.slane %v946, 4
      %v948 = vadd.f32 %v946, %v947
      %v949 = vrot.slane %v948, 2
      %v950 = vadd.f32 %v948, %v949
      %v951 = vrot.slane %v950, 1
      %v952 = vadd.f32 %v950, %v951
      %v953 = vmul.f32 %v952, %v818
      %v954 = vadd.f32 %v953, 1e-05
      %v955 = vrsqrt.pop %v954
      %v956 = vmul.f32 %v955, %v954
      %v957 = vmul.f32 %v956, %v955
      %v958 = vmul.f32 0.5, %v957
      %v959 = vsub.f32 1.5, %v958
      %v960 = vmul.f32 %v955, %v959
      %vm961 = vweird.f32 %v954
      %vm962 = vweird.f32 %v955
      %vm963 = vmor %vm961, %vm962
      %v964 = vsel %vm963, %v955, %v960
      %v965 = vmul.f32 %v820, %v964
      %v966 = vmul.f32 %v821, %v964
      %v967 = vmul.f32 %v822, %v964
      %v968 = vmul.f32 %v823, %v964
      %v969 = vmul.f32 %v824, %v964
      %v970 = vmul.f32 %v825, %v964
      %v971 = vmul.f32 %v826, %v964
      %v972 = vmul.f32 %v827, %v964
      %v973 = vmul.f32 %v828, %v964
      %v974 = vmul.f32 %v829, %v964
      %v975 = vmul.f32 %v830, %v964
      %v976 = vmul.f32 %v831, %v964
      %v977 = vmul.f32 %v832, %v964
      %v978 = vmul.f32 %v833, %v964
      %v979 = vmul.f32 %v834, %v964
      %v980 = vmul.f32 %v835, %v964
      %v981 = vmul.f32 %v836, %v964
      %v982 = vmul.f32 %v837, %v964
      %v983 = vmul.f32 %v838, %v964
      %v984 = vmul.f32 %v839, %v964
      %v985 = vmul.f32 %v840, %v964
      %v986 = vmul.f32 %v841, %v964
      %v987 = vmul.f32 %v842, %v964
      %v988 = vmul.f32 %v843, %v964
      %v989 = vmul.f32 %v844, %v964
      %v990 = vmul.f32 %v845, %v964
      %v991 = vmul.f32 %v846, %v964
      %v992 = vmul.f32 %v847, %v964
      %v993 = vmul.f32 %v848, %v964
      %v994 = vmul.f32 %v849, %v964
      %v995 = vmul.f32 %v850, %v964
      %v996 = vmul.f32 %v851, %v964
      %vm997 = vcmp.ge.f32.partialorder %v965, 0.0
      %vm998 = vcmp.ge.f32.partialorder %v966, 0.0
      %vm999 = vcmp.ge.f32.partialorder %v967, 0.0
      %vm1000 = vcmp.ge.f32.partialorder %v968, 0.0
      %vm1001 = vcmp.ge.f32.partialorder %v969, 0.0
      %vm1002 = vcmp.ge.f32.partialorder %v970, 0.0
      %vm1003 = vcmp.ge.f32.partialorder %v971, 0.0
      %vm1004 = vcmp.ge.f32.partialorder %v972, 0.0
      %vm1005 = vcmp.ge.f32.partialorder %v973, 0.0
      %vm1006 = vcmp.ge.f32.partialorder %v974, 0.0
      %vm1007 = vcmp.ge.f32.partialorder %v975, 0.0
      %vm1008 = vcmp.ge.f32.partialorder %v976, 0.0
      %vm1009 = vcmp.ge.f32.partialorder %v977, 0.0
      %vm1010 = vcmp.ge.f32.partialorder %v978, 0.0
      %vm1011 = vcmp.ge.f32.partialorder %v979, 0.0
      %vm1012 = vcmp.ge.f32.partialorder %v980, 0.0
      %vm1013 = vcmp.ge.f32.partialorder %v981, 0.0
      %vm1014 = vcmp.ge.f32.partialorder %v982, 0.0
      %vm1015 = vcmp.ge.f32.partialorder %v983, 0.0
      %vm1016 = vcmp.ge.f32.partialorder %v984, 0.0
      %vm1017 = vcmp.ge.f32.partialorder %v985, 0.0
      %vm1018 = vcmp.ge.f32.partialorder %v986, 0.0
      %vm1019 = vcmp.ge.f32.partialorder %v987, 0.0
      %vm1020 = vcmp.ge.f32.partialorder %v988, 0.0
      %vm1021 = vcmp.ge.f32.partialorder %v989, 0.0
      %vm1022 = vcmp.ge.f32.partialorder %v990, 0.0
      %vm1023 = vcmp.ge.f32.partialorder %v991, 0.0
      %vm1024 = vcmp.ge.f32.partialorder %v992, 0.0
      %vm1025 = vcmp.ge.f32.partialorder %v993, 0.0
      %vm1026 = vcmp.ge.f32.partialorder %v994, 0.0
      %vm1027 = vcmp.ge.f32.partialorder %v995, 0.0
      %vm1028 = vcmp.ge.f32.partialorder %v996, 0.0
      %v1029 = vmul.f32 %v965, 0.2
      %v1030 = vmul.f32 %v966, 0.2
      %v1031 = vmul.f32 %v967, 0.2
      %v1032 = vmul.f32 %v968, 0.2
      %v1033 = vmul.f32 %v969, 0.2
      %v1034 = vmul.f32 %v970, 0.2
      %v1035 = vmul.f32 %v971, 0.2
      %v1036 = vmul.f32 %v972, 0.2
      %v1037 = vmul.f32 %v973, 0.2
      %v1038 = vmul.f32 %v974, 0.2
      %v1039 = vmul.f32 %v975, 0.2
      %v1040 = vmul.f32 %v976, 0.2
      %v1041 = vmul.f32 %v977, 0.2
      %v1042 = vmul.f32 %v978, 0.2
      %v1043 = vmul.f32 %v979, 0.2
      %v1044 = vmul.f32 %v980, 0.2
      %v1045 = vmul.f32 %v981, 0.2
      %v1046 = vmul.f32 %v982, 0.2
      %v1047 = vmul.f32 %v983, 0.2
      %v1048 = vmul.f32 %v984, 0.2
      %v1049 = vmul.f32 %v985, 0.2
      %v1050 = vmul.f32 %v986, 0.2
      %v1051 = vmul.f32 %v987, 0.2
      %v1052 = vmul.f32 %v988, 0.2
      %v1053 = vmul.f32 %v989, 0.2
      %v1054 = vmul.f32 %v990, 0.2
      %v1055 = vmul.f32 %v991, 0.2
      %v1056 = vmul.f32 %v992, 0.2
      %v1057 = vmul.f32 %v993, 0.2
      %v1058 = vmul.f32 %v994, 0.2
      %v1059 = vmul.f32 %v995, 0.2
      %v1060 = vmul.f32 %v996, 0.2
      %v1061 = vsel %vm997, %v965, %v1029
      %v1062 = vsel %vm998, %v966, %v1030
      %v1063 = vsel %vm999, %v967, %v1031
      %v1064 = vsel %vm1000, %v968, %v1032
      %v1065 = vsel %vm1001, %v969, %v1033
      %v1066 = vsel %vm1002, %v970, %v1034
      %v1067 = vsel %vm1003, %v971, %v1035
      %v1068 = vsel %vm1004, %v972, %v1036
      %v1069 = vsel %vm1005, %v973, %v1037
      %v1070 = vsel %vm1006, %v974, %v1038
      %v1071 = vsel %vm1007, %v975, %v1039
      %v1072 = vsel %vm1008, %v976, %v1040
      %v1073 = vsel %vm1009, %v977, %v1041
      %v1074 = vsel %vm1010, %v978, %v1042
      %v1075 = vsel %vm1011, %v979, %v1043
      %v1076 = vsel %vm1012, %v980, %v1044
      %v1077 = vsel %vm1013, %v981, %v1045
      %v1078 = vsel %vm1014, %v982, %v1046
      %v1079 = vsel %vm1015, %v983, %v1047
      %v1080 = vsel %vm1016, %v984, %v1048
      %v1081 = vsel %vm1017, %v985, %v1049
      %v1082 = vsel %vm1018, %v986, %v1050
      %v1083 = vsel %vm1019, %v987, %v1051
      %v1084 = vsel %vm1020, %v988, %v1052
      %v1085 = vsel %vm1021, %v989, %v1053
      %v1086 = vsel %vm1022, %v990, %v1054
      %v1087 = vsel %vm1023, %v991, %v1055
      %v1088 = vsel %vm1024, %v992, %v1056
      %v1089 = vsel %vm1025, %v993, %v1057
      %v1090 = vsel %vm1026, %v994, %v1058
      %v1091 = vsel %vm1027, %v995, %v1059
      %v1092 = vsel %vm1028, %v996, %v1060
      %v1093 = vpack.c.bf16 %v1062, %v1061
      %v1094 = vpack.c.bf16 %v1064, %v1063
      %v1095 = vpack.c.bf16 %v1066, %v1065
      %v1096 = vpack.c.bf16 %v1068, %v1067
      %v1097 = vpack.c.bf16 %v1070, %v1069
      %v1098 = vpack.c.bf16 %v1072, %v1071
      %v1099 = vpack.c.bf16 %v1074, %v1073
      %v1100 = vpack.c.bf16 %v1076, %v1075
      %v1101 = vpack.c.bf16 %v1078, %v1077
      %v1102 = vpack.c.bf16 %v1080, %v1079
      %v1103 = vpack.c.bf16 %v1082, %v1081
      %v1104 = vpack.c.bf16 %v1084, %v1083
      %v1105 = vpack.c.bf16 %v1086, %v1085
      %v1106 = vpack.c.bf16 %v1088, %v1087
      %v1107 = vpack.c.bf16 %v1090, %v1089
      %v1108 = vpack.c.bf16 %v1092, %v1091
      %v1237 = vunpack.c.l.b16 %v311
      %v1238 = vunpack.c.h.b16 %v311
      %v1239 = vunpack.c.l.b16 %v312
      %v1240 = vunpack.c.h.b16 %v312
      %v1241 = vunpack.c.l.b16 %v313
      %v1242 = vunpack.c.h.b16 %v313
      %v1243 = vunpack.c.l.b16 %v314
      %v1244 = vunpack.c.h.b16 %v314
      %v1245 = vunpack.c.l.b16 %v315
      %v1246 = vunpack.c.h.b16 %v315
      %v1247 = vunpack.c.l.b16 %v316
      %v1248 = vunpack.c.h.b16 %v316
      %v1249 = vunpack.c.l.b16 %v317
      %v1250 = vunpack.c.h.b16 %v317
      %v1251 = vunpack.c.l.b16 %v318
      %v1252 = vunpack.c.h.b16 %v318
      %v1253 = vunpack.c.l.b16 %v319
      %v1254 = vunpack.c.h.b16 %v319
      %v1255 = vunpack.c.l.b16 %v320
      %v1256 = vunpack.c.h.b16 %v320
      %v1257 = vunpack.c.l.b16 %v321
      %v1258 = vunpack.c.h.b16 %v321
      %v1259 = vunpack.c.l.b16 %v322
      %v1260 = vunpack.c.h.b16 %v322
      %v1261 = vunpack.c.l.b16 %v323
      %v1262 = vunpack.c.h.b16 %v323
      %v1263 = vunpack.c.l.b16 %v324
      %v1264 = vunpack.c.h.b16 %v324
      %v1265 = vunpack.c.l.b16 %v325
      %v1266 = vunpack.c.h.b16 %v325
      %v1267 = vunpack.c.l.b16 %v326
      %v1268 = vunpack.c.h.b16 %v326
      %v1269 = vunpack.c.l.b16 %v327
      %v1270 = vunpack.c.h.b16 %v327
      %v1271 = vunpack.c.l.b16 %v328
      %v1272 = vunpack.c.h.b16 %v328
      %v1273 = vunpack.c.l.b16 %v329
      %v1274 = vunpack.c.h.b16 %v329
      %v1275 = vunpack.c.l.b16 %v330
      %v1276 = vunpack.c.h.b16 %v330
      %v1277 = vunpack.c.l.b16 %v331
      %v1278 = vunpack.c.h.b16 %v331
      %v1279 = vunpack.c.l.b16 %v332
      %v1280 = vunpack.c.h.b16 %v332
      %v1281 = vunpack.c.l.b16 %v333
      %v1282 = vunpack.c.h.b16 %v333
      %v1283 = vunpack.c.l.b16 %v334
      %v1284 = vunpack.c.h.b16 %v334
      %v1285 = vunpack.c.l.b16 %v335
      %v1286 = vunpack.c.h.b16 %v335
      %v1287 = vunpack.c.l.b16 %v336
      %v1288 = vunpack.c.h.b16 %v336
      %v1289 = vunpack.c.l.b16 %v337
      %v1290 = vunpack.c.h.b16 %v337
      %v1291 = vunpack.c.l.b16 %v338
      %v1292 = vunpack.c.h.b16 %v338
      %v1293 = vunpack.c.l.b16 %v339
      %v1294 = vunpack.c.h.b16 %v339
      %v1295 = vunpack.c.l.b16 %v340
      %v1296 = vunpack.c.h.b16 %v340
      %v1297 = vunpack.c.l.b16 %v341
      %v1298 = vunpack.c.h.b16 %v341
      %v1299 = vunpack.c.l.b16 %v342
      %v1300 = vunpack.c.h.b16 %v342
      %v1301 = vunpack.c.l.b16 %v343
      %v1302 = vunpack.c.h.b16 %v343
      %v1303 = vunpack.c.l.b16 %v344
      %v1304 = vunpack.c.h.b16 %v344
      %v1305 = vunpack.c.l.b16 %v345
      %v1306 = vunpack.c.h.b16 %v345
      %v1307 = vunpack.c.l.b16 %v346
      %v1308 = vunpack.c.h.b16 %v346
      %v1309 = vunpack.c.l.b16 %v347
      %v1310 = vunpack.c.h.b16 %v347
      %v1311 = vunpack.c.l.b16 %v348
      %v1312 = vunpack.c.h.b16 %v348
      %v1313 = vunpack.c.l.b16 %v349
      %v1314 = vunpack.c.h.b16 %v349
      %v1315 = vunpack.c.l.b16 %v350
      %v1316 = vunpack.c.h.b16 %v350
      %v1317 = vunpack.c.l.b16 %v351
      %v1318 = vunpack.c.h.b16 %v351
      %v1319 = vunpack.c.l.b16 %v352
      %v1320 = vunpack.c.h.b16 %v352
      %v1321 = vunpack.c.l.b16 %v353
      %v1322 = vunpack.c.h.b16 %v353
      %v1323 = vunpack.c.l.b16 %v354
      %v1324 = vunpack.c.h.b16 %v354
      %v1325 = vunpack.c.l.b16 %v355
      %v1326 = vunpack.c.h.b16 %v355
      %v1327 = vunpack.c.l.b16 %v356
      %v1328 = vunpack.c.h.b16 %v356
      %v1329 = vunpack.c.l.b16 %v357
      %v1330 = vunpack.c.h.b16 %v357
      %v1331 = vunpack.c.l.b16 %v358
      %v1332 = vunpack.c.h.b16 %v358
      %v1333 = vunpack.c.l.b16 %v359
      %v1334 = vunpack.c.h.b16 %v359
      %v1335 = vunpack.c.l.b16 %v360
      %v1336 = vunpack.c.h.b16 %v360
      %v1337 = vunpack.c.l.b16 %v361
      %v1338 = vunpack.c.h.b16 %v361
      %v1339 = vunpack.c.l.b16 %v362
      %v1340 = vunpack.c.h.b16 %v362
      %v1341 = vunpack.c.l.b16 %v363
      %v1342 = vunpack.c.h.b16 %v363
      %v1343 = vunpack.c.l.b16 %v364
      %v1344 = vunpack.c.h.b16 %v364
      %v1345 = vunpack.c.l.b16 %v365
      %v1346 = vunpack.c.h.b16 %v365
      %v1347 = vunpack.c.l.b16 %v366
      %v1348 = vunpack.c.h.b16 %v366
      %v1349 = vunpack.c.l.b16 %v367
      %v1350 = vunpack.c.h.b16 %v367
      %v1351 = vunpack.c.l.b16 %v368
      %v1352 = vunpack.c.h.b16 %v368
      %v1353 = vunpack.c.l.b16 %v369
      %v1354 = vunpack.c.h.b16 %v369
      %v1355 = vunpack.c.l.b16 %v370
      %v1356 = vunpack.c.h.b16 %v370
      %v1357 = vunpack.c.l.b16 %v371
      %v1358 = vunpack.c.h.b16 %v371
      %v1359 = vunpack.c.l.b16 %v372
      %v1360 = vunpack.c.h.b16 %v372
      %v1361 = vunpack.c.l.b16 %v373
      %v1362 = vunpack.c.h.b16 %v373
      %v1363 = vunpack.c.l.b16 %v374
      %v1364 = vunpack.c.h.b16 %v374
      %v1365 = vunpack.c.l.b16 %v375
      %v1366 = vunpack.c.h.b16 %v375
      %v1367 = vunpack.c.l.b16 %v376
      %v1368 = vunpack.c.h.b16 %v376
      %v1369 = vunpack.c.l.b16 %v377
      %v1370 = vunpack.c.h.b16 %v377
      %v1371 = vunpack.c.l.b16 %v378
      %v1372 = vunpack.c.h.b16 %v378
      %v1373 = vunpack.c.l.b16 %v379
      %v1374 = vunpack.c.h.b16 %v379
      %v1375 = vunpack.c.l.b16 %v380
      %v1376 = vunpack.c.h.b16 %v380
      %v1377 = vunpack.c.l.b16 %v381
      %v1378 = vunpack.c.h.b16 %v381
      %v1379 = vunpack.c.l.b16 %v382
      %v1380 = vunpack.c.h.b16 %v382
      %v1381 = vunpack.c.l.b16 %v383
      %v1382 = vunpack.c.h.b16 %v383
      %v1383 = vunpack.c.l.b16 %v384
      %v1384 = vunpack.c.h.b16 %v384
      %v1385 = vunpack.c.l.b16 %v385
      %v1386 = vunpack.c.h.b16 %v385
      %v1387 = vunpack.c.l.b16 %v386
      %v1388 = vunpack.c.h.b16 %v386
      %v1389 = vunpack.c.l.b16 %v387
      %v1390 = vunpack.c.h.b16 %v387
      %v1391 = vunpack.c.l.b16 %v388
      %v1392 = vunpack.c.h.b16 %v388
      %v1393 = vunpack.c.l.b16 %v389
      %v1394 = vunpack.c.h.b16 %v389
      %v1395 = vunpack.c.l.b16 %v390
      %v1396 = vunpack.c.h.b16 %v390
      %v1397 = vunpack.c.l.b16 %v391
      %v1398 = vunpack.c.h.b16 %v391
      %v1399 = vunpack.c.l.b16 %v392
      %v1400 = vunpack.c.h.b16 %v392
      %v1401 = vunpack.c.l.b16 %v393
      %v1402 = vunpack.c.h.b16 %v393
      %v1403 = vunpack.c.l.b16 %v394
      %v1404 = vunpack.c.h.b16 %v394
      %v1405 = vunpack.c.l.b16 %v395
      %v1406 = vunpack.c.h.b16 %v395
      %v1407 = vunpack.c.l.b16 %v396
      %v1408 = vunpack.c.h.b16 %v396
      %v1409 = vunpack.c.l.b16 %v397
      %v1410 = vunpack.c.h.b16 %v397
      %v1411 = vunpack.c.l.b16 %v398
      %v1412 = vunpack.c.h.b16 %v398
      %v1413 = vunpack.c.l.b16 %v399
      %v1414 = vunpack.c.h.b16 %v399
      %v1415 = vunpack.c.l.b16 %v400
      %v1416 = vunpack.c.h.b16 %v400
      %v1417 = vunpack.c.l.b16 %v401
      %v1418 = vunpack.c.h.b16 %v401
      %v1419 = vunpack.c.l.b16 %v402
      %v1420 = vunpack.c.h.b16 %v402
      %v1421 = vunpack.c.l.b16 %v403
      %v1422 = vunpack.c.h.b16 %v403
      %v1423 = vunpack.c.l.b16 %v404
      %v1424 = vunpack.c.h.b16 %v404
      %v1425 = vunpack.c.l.b16 %v405
      %v1426 = vunpack.c.h.b16 %v405
      %v1427 = vunpack.c.l.b16 %v406
      %v1428 = vunpack.c.h.b16 %v406
      %v1429 = vunpack.c.l.b16 %v407
      %v1430 = vunpack.c.h.b16 %v407
      %v1431 = vunpack.c.l.b16 %v408
      %v1432 = vunpack.c.h.b16 %v408
      %v1433 = vunpack.c.l.b16 %v409
      %v1434 = vunpack.c.h.b16 %v409
      %v1435 = vunpack.c.l.b16 %v410
      %v1436 = vunpack.c.h.b16 %v410
      %v1437 = vunpack.c.l.b16 %v411
      %v1438 = vunpack.c.h.b16 %v411
      %v1439 = vunpack.c.l.b16 %v412
      %v1440 = vunpack.c.h.b16 %v412
      %v1441 = vunpack.c.l.b16 %v413
      %v1442 = vunpack.c.h.b16 %v413
      %v1443 = vunpack.c.l.b16 %v414
      %v1444 = vunpack.c.h.b16 %v414
      %v1445 = vunpack.c.l.b16 %v415
      %v1446 = vunpack.c.h.b16 %v415
      %v1447 = vunpack.c.l.b16 %v416
      %v1448 = vunpack.c.h.b16 %v416
      %v1449 = vunpack.c.l.b16 %v417
      %v1450 = vunpack.c.h.b16 %v417
      %v1451 = vunpack.c.l.b16 %v418
      %v1452 = vunpack.c.h.b16 %v418
      %v1453 = vunpack.c.l.b16 %v419
      %v1454 = vunpack.c.h.b16 %v419
      %v1455 = vunpack.c.l.b16 %v420
      %v1456 = vunpack.c.h.b16 %v420
      %v1457 = vunpack.c.l.b16 %v421
      %v1458 = vunpack.c.h.b16 %v421
      %v1459 = vunpack.c.l.b16 %v422
      %v1460 = vunpack.c.h.b16 %v422
      %v1461 = vunpack.c.l.b16 %v423
      %v1462 = vunpack.c.h.b16 %v423
      %v1463 = vunpack.c.l.b16 %v424
      %v1464 = vunpack.c.h.b16 %v424
      %v1465 = vunpack.c.l.b16 %v425
      %v1466 = vunpack.c.h.b16 %v425
      %v1467 = vunpack.c.l.b16 %v426
      %v1468 = vunpack.c.h.b16 %v426
      %v1469 = vunpack.c.l.b16 %v427
      %v1470 = vunpack.c.h.b16 %v427
      %v1471 = vunpack.c.l.b16 %v428
      %v1472 = vunpack.c.h.b16 %v428
      %v1473 = vunpack.c.l.b16 %v429
      %v1474 = vunpack.c.h.b16 %v429
      %v1475 = vunpack.c.l.b16 %v430
      %v1476 = vunpack.c.h.b16 %v430
      %v1477 = vunpack.c.l.b16 %v431
      %v1478 = vunpack.c.h.b16 %v431
      %v1479 = vunpack.c.l.b16 %v432
      %v1480 = vunpack.c.h.b16 %v432
      %v1481 = vunpack.c.l.b16 %v433
      %v1482 = vunpack.c.h.b16 %v433
      %v1483 = vunpack.c.l.b16 %v434
      %v1484 = vunpack.c.h.b16 %v434
      %v1485 = vunpack.c.l.b16 %v435
      %v1486 = vunpack.c.h.b16 %v435
      %v1487 = vunpack.c.l.b16 %v436
      %v1488 = vunpack.c.h.b16 %v436
      %v1489 = vunpack.c.l.b16 %v437
      %v1490 = vunpack.c.h.b16 %v437
      %v1491 = vunpack.c.l.b16 %v438
      %v1492 = vunpack.c.h.b16 %v438
      %v1493 = vpack.c.b16 %v1239, %v1237
      %v1494 = vpack.c.b16 %v1240, %v1238
      %v1495 = vpack.c.b16 %v1243, %v1241
      %v1496 = vpack.c.b16 %v1244, %v1242
      %v1497 = vpack.c.b16 %v1247, %v1245
      %v1498 = vpack.c.b16 %v1248, %v1246
      %v1499 = vpack.c.b16 %v1251, %v1249
      %v1500 = vpack.c.b16 %v1252, %v1250
      %v1501 = vpack.c.b16 %v1255, %v1253
      %v1502 = vpack.c.b16 %v1256, %v1254
      %v1503 = vpack.c.b16 %v1259, %v1257
      %v1504 = vpack.c.b16 %v1260, %v1258
      %v1505 = vpack.c.b16 %v1263, %v1261
      %v1506 = vpack.c.b16 %v1264, %v1262
      %v1507 = vpack.c.b16 %v1267, %v1265
      %v1508 = vpack.c.b16 %v1268, %v1266
      %v1509 = vpack.c.b16 %v1271, %v1269
      %v1510 = vpack.c.b16 %v1272, %v1270
      %v1511 = vpack.c.b16 %v1275, %v1273
      %v1512 = vpack.c.b16 %v1276, %v1274
      %v1513 = vpack.c.b16 %v1279, %v1277
      %v1514 = vpack.c.b16 %v1280, %v1278
      %v1515 = vpack.c.b16 %v1283, %v1281
      %v1516 = vpack.c.b16 %v1284, %v1282
      %v1517 = vpack.c.b16 %v1287, %v1285
      %v1518 = vpack.c.b16 %v1288, %v1286
      %v1519 = vpack.c.b16 %v1291, %v1289
      %v1520 = vpack.c.b16 %v1292, %v1290
      %v1521 = vpack.c.b16 %v1295, %v1293
      %v1522 = vpack.c.b16 %v1296, %v1294
      %v1523 = vpack.c.b16 %v1299, %v1297
      %v1524 = vpack.c.b16 %v1300, %v1298
      %v1525 = vpack.c.b16 %v1303, %v1301
      %v1526 = vpack.c.b16 %v1304, %v1302
      %v1527 = vpack.c.b16 %v1307, %v1305
      %v1528 = vpack.c.b16 %v1308, %v1306
      %v1529 = vpack.c.b16 %v1311, %v1309
      %v1530 = vpack.c.b16 %v1312, %v1310
      %v1531 = vpack.c.b16 %v1315, %v1313
      %v1532 = vpack.c.b16 %v1316, %v1314
      %v1533 = vpack.c.b16 %v1319, %v1317
      %v1534 = vpack.c.b16 %v1320, %v1318
      %v1535 = vpack.c.b16 %v1323, %v1321
      %v1536 = vpack.c.b16 %v1324, %v1322
      %v1537 = vpack.c.b16 %v1327, %v1325
      %v1538 = vpack.c.b16 %v1328, %v1326
      %v1539 = vpack.c.b16 %v1331, %v1329
      %v1540 = vpack.c.b16 %v1332, %v1330
      %v1541 = vpack.c.b16 %v1335, %v1333
      %v1542 = vpack.c.b16 %v1336, %v1334
      %v1543 = vpack.c.b16 %v1339, %v1337
      %v1544 = vpack.c.b16 %v1340, %v1338
      %v1545 = vpack.c.b16 %v1343, %v1341
      %v1546 = vpack.c.b16 %v1344, %v1342
      %v1547 = vpack.c.b16 %v1347, %v1345
      %v1548 = vpack.c.b16 %v1348, %v1346
      %v1549 = vpack.c.b16 %v1351, %v1349
      %v1550 = vpack.c.b16 %v1352, %v1350
      %v1551 = vpack.c.b16 %v1355, %v1353
      %v1552 = vpack.c.b16 %v1356, %v1354
      %v1553 = vpack.c.b16 %v1359, %v1357
      %v1554 = vpack.c.b16 %v1360, %v1358
      %v1555 = vpack.c.b16 %v1363, %v1361
      %v1556 = vpack.c.b16 %v1364, %v1362
      %v1557 = vpack.c.b16 %v1367, %v1365
      %v1558 = vpack.c.b16 %v1368, %v1366
      %v1559 = vpack.c.b16 %v1371, %v1369
      %v1560 = vpack.c.b16 %v1372, %v1370
      %v1561 = vpack.c.b16 %v1375, %v1373
      %v1562 = vpack.c.b16 %v1376, %v1374
      %v1563 = vpack.c.b16 %v1379, %v1377
      %v1564 = vpack.c.b16 %v1380, %v1378
      %v1565 = vpack.c.b16 %v1383, %v1381
      %v1566 = vpack.c.b16 %v1384, %v1382
      %v1567 = vpack.c.b16 %v1387, %v1385
      %v1568 = vpack.c.b16 %v1388, %v1386
      %v1569 = vpack.c.b16 %v1391, %v1389
      %v1570 = vpack.c.b16 %v1392, %v1390
      %v1571 = vpack.c.b16 %v1395, %v1393
      %v1572 = vpack.c.b16 %v1396, %v1394
      %v1573 = vpack.c.b16 %v1399, %v1397
      %v1574 = vpack.c.b16 %v1400, %v1398
      %v1575 = vpack.c.b16 %v1403, %v1401
      %v1576 = vpack.c.b16 %v1404, %v1402
      %v1577 = vpack.c.b16 %v1407, %v1405
      %v1578 = vpack.c.b16 %v1408, %v1406
      %v1579 = vpack.c.b16 %v1411, %v1409
      %v1580 = vpack.c.b16 %v1412, %v1410
      %v1581 = vpack.c.b16 %v1415, %v1413
      %v1582 = vpack.c.b16 %v1416, %v1414
      %v1583 = vpack.c.b16 %v1419, %v1417
      %v1584 = vpack.c.b16 %v1420, %v1418
      %v1585 = vpack.c.b16 %v1423, %v1421
      %v1586 = vpack.c.b16 %v1424, %v1422
      %v1587 = vpack.c.b16 %v1427, %v1425
      %v1588 = vpack.c.b16 %v1428, %v1426
      %v1589 = vpack.c.b16 %v1431, %v1429
      %v1590 = vpack.c.b16 %v1432, %v1430
      %v1591 = vpack.c.b16 %v1435, %v1433
      %v1592 = vpack.c.b16 %v1436, %v1434
      %v1593 = vpack.c.b16 %v1439, %v1437
      %v1594 = vpack.c.b16 %v1440, %v1438
      %v1595 = vpack.c.b16 %v1443, %v1441
      %v1596 = vpack.c.b16 %v1444, %v1442
      %v1597 = vpack.c.b16 %v1447, %v1445
      %v1598 = vpack.c.b16 %v1448, %v1446
      %v1599 = vpack.c.b16 %v1451, %v1449
      %v1600 = vpack.c.b16 %v1452, %v1450
      %v1601 = vpack.c.b16 %v1455, %v1453
      %v1602 = vpack.c.b16 %v1456, %v1454
      %v1603 = vpack.c.b16 %v1459, %v1457
      %v1604 = vpack.c.b16 %v1460, %v1458
      %v1605 = vpack.c.b16 %v1463, %v1461
      %v1606 = vpack.c.b16 %v1464, %v1462
      %v1607 = vpack.c.b16 %v1467, %v1465
      %v1608 = vpack.c.b16 %v1468, %v1466
      %v1609 = vpack.c.b16 %v1471, %v1469
      %v1610 = vpack.c.b16 %v1472, %v1470
      %v1611 = vpack.c.b16 %v1475, %v1473
      %v1612 = vpack.c.b16 %v1476, %v1474
      %v1613 = vpack.c.b16 %v1479, %v1477
      %v1614 = vpack.c.b16 %v1480, %v1478
      %v1615 = vpack.c.b16 %v1483, %v1481
      %v1616 = vpack.c.b16 %v1484, %v1482
      %v1617 = vpack.c.b16 %v1487, %v1485
      %v1618 = vpack.c.b16 %v1488, %v1486
      %v1619 = vpack.c.b16 %v1491, %v1489
      %v1620 = vpack.c.b16 %v1492, %v1490
      %1749 = vmatpush.bf16.msra.mxu0 %v1100
      %1750 = vmatpush.bf16.msra.mxu0 %v1099
      %1751 = vmatpush.bf16.msra.mxu0 %v1098
      %1752 = vmatpush.bf16.msra.mxu0 %v1097
      %1753 = vmatpush.bf16.msra.mxu0 %v1096
      %1754 = vmatpush.bf16.msra.mxu0 %v1095
      %1755 = vmatpush.bf16.msra.mxu0 %v1094
      %1756 = vmatpush.bf16.msra.mxu0 %v1093
      %1757 = vmatmul.bf16.gmra.mxu0 %v1493
      %v1758 = vpop.f32.mrf.mxu0
      %v1759 = vadd.f32 0.0, %v1758
      %v1760 = vpop.f32.mrf.mxu0
      %v1761 = vadd.f32 0.0, %v1760
      %1762 = vmatmul.bf16.gmra.mxu0 %v1495
      %v1763 = vpop.f32.mrf.mxu0
      %v1764 = vadd.f32 0.0, %v1763
      %v1765 = vpop.f32.mrf.mxu0
      %v1766 = vadd.f32 0.0, %v1765
      %1767 = vmatmul.bf16.gmra.mxu0 %v1497
      %v1768 = vpop.f32.mrf.mxu0
      %v1769 = vadd.f32 0.0, %v1768
      %v1770 = vpop.f32.mrf.mxu0
      %v1771 = vadd.f32 0.0, %v1770
      %1772 = vmatmul.bf16.gmra.mxu0 %v1499
      %v1773 = vpop.f32.mrf.mxu0
      %v1774 = vadd.f32 0.0, %v1773
      %v1775 = vpop.f32.mrf.mxu0
      %v1776 = vadd.f32 0.0, %v1775
      %1777 = vmatmul.bf16.gmra.mxu0 %v1501
      %v1778 = vpop.f32.mrf.mxu0
      %v1779 = vadd.f32 0.0, %v1778
      %v1780 = vpop.f32.mrf.mxu0
      %v1781 = vadd.f32 0.0, %v1780
      %1782 = vmatmul.bf16.gmra.mxu0 %v1503
      %v1783 = vpop.f32.mrf.mxu0
      %v1784 = vadd.f32 0.0, %v1783
      %v1785 = vpop.f32.mrf.mxu0
      %v1786 = vadd.f32 0.0, %v1785
      %1787 = vmatmul.bf16.gmra.mxu0 %v1505
      %v1788 = vpop.f32.mrf.mxu0
      %v1789 = vadd.f32 0.0, %v1788
      %v1790 = vpop.f32.mrf.mxu0
      %v1791 = vadd.f32 0.0, %v1790
      %1792 = vmatmul.bf16.gmra.mxu0 %v1507
      %v1793 = vpop.f32.mrf.mxu0
      %v1794 = vadd.f32 0.0, %v1793
      %v1795 = vpop.f32.mrf.mxu0
      %v1796 = vadd.f32 0.0, %v1795
      %1797 = vmatmul.bf16.gmra.mxu0 %v1509
      %v1798 = vpop.f32.mrf.mxu0
      %v1799 = vadd.f32 0.0, %v1798
      %v1800 = vpop.f32.mrf.mxu0
      %v1801 = vadd.f32 0.0, %v1800
      %1802 = vmatmul.bf16.gmra.mxu0 %v1511
      %v1803 = vpop.f32.mrf.mxu0
      %v1804 = vadd.f32 0.0, %v1803
      %v1805 = vpop.f32.mrf.mxu0
      %v1806 = vadd.f32 0.0, %v1805
      %1807 = vmatmul.bf16.gmra.mxu0 %v1513
      %v1808 = vpop.f32.mrf.mxu0
      %v1809 = vadd.f32 0.0, %v1808
      %v1810 = vpop.f32.mrf.mxu0
      %v1811 = vadd.f32 0.0, %v1810
      %1812 = vmatmul.bf16.gmra.mxu0 %v1515
      %v1813 = vpop.f32.mrf.mxu0
      %v1814 = vadd.f32 0.0, %v1813
      %v1815 = vpop.f32.mrf.mxu0
      %v1816 = vadd.f32 0.0, %v1815
      %1817 = vmatmul.bf16.gmra.mxu0 %v1517
      %v1818 = vpop.f32.mrf.mxu0
      %v1819 = vadd.f32 0.0, %v1818
      %v1820 = vpop.f32.mrf.mxu0
      %v1821 = vadd.f32 0.0, %v1820
      %1822 = vmatmul.bf16.gmra.mxu0 %v1519
      %v1823 = vpop.f32.mrf.mxu0
      %v1824 = vadd.f32 0.0, %v1823
      %v1825 = vpop.f32.mrf.mxu0
      %v1826 = vadd.f32 0.0, %v1825
      %1827 = vmatmul.bf16.gmra.mxu0 %v1521
      %v1828 = vpop.f32.mrf.mxu0
      %v1829 = vadd.f32 0.0, %v1828
      %v1830 = vpop.f32.mrf.mxu0
      %v1831 = vadd.f32 0.0, %v1830
      %1832 = vmatmul.bf16.gmra.mxu0 %v1523
      %v1833 = vpop.f32.mrf.mxu0
      %v1834 = vadd.f32 0.0, %v1833
      %v1835 = vpop.f32.mrf.mxu0
      %v1836 = vadd.f32 0.0, %v1835
      %1837 = vmatmul.bf16.gmra.mxu0 %v1525
      %v1838 = vpop.f32.mrf.mxu0
      %v1839 = vadd.f32 0.0, %v1838
      %v1840 = vpop.f32.mrf.mxu0
      %v1841 = vadd.f32 0.0, %v1840
      %1842 = vmatmul.bf16.gmra.mxu0 %v1527
      %v1843 = vpop.f32.mrf.mxu0
      %v1844 = vadd.f32 0.0, %v1843
      %v1845 = vpop.f32.mrf.mxu0
      %v1846 = vadd.f32 0.0, %v1845
      %1847 = vmatmul.bf16.gmra.mxu0 %v1529
      %v1848 = vpop.f32.mrf.mxu0
      %v1849 = vadd.f32 0.0, %v1848
      %v1850 = vpop.f32.mrf.mxu0
      %v1851 = vadd.f32 0.0, %v1850
      %1852 = vmatmul.bf16.gmra.mxu0 %v1531
      %v1853 = vpop.f32.mrf.mxu0
      %v1854 = vadd.f32 0.0, %v1853
      %v1855 = vpop.f32.mrf.mxu0
      %v1856 = vadd.f32 0.0, %v1855
      %1857 = vmatmul.bf16.gmra.mxu0 %v1533
      %v1858 = vpop.f32.mrf.mxu0
      %v1859 = vadd.f32 0.0, %v1858
      %v1860 = vpop.f32.mrf.mxu0
      %v1861 = vadd.f32 0.0, %v1860
      %1862 = vmatmul.bf16.gmra.mxu0 %v1535
      %v1863 = vpop.f32.mrf.mxu0
      %v1864 = vadd.f32 0.0, %v1863
      %v1865 = vpop.f32.mrf.mxu0
      %v1866 = vadd.f32 0.0, %v1865
      %1867 = vmatmul.bf16.gmra.mxu0 %v1537
      %v1868 = vpop.f32.mrf.mxu0
      %v1869 = vadd.f32 0.0, %v1868
      %v1870 = vpop.f32.mrf.mxu0
      %v1871 = vadd.f32 0.0, %v1870
      %1872 = vmatmul.bf16.gmra.mxu0 %v1539
      %v1873 = vpop.f32.mrf.mxu0
      %v1874 = vadd.f32 0.0, %v1873
      %v1875 = vpop.f32.mrf.mxu0
      %v1876 = vadd.f32 0.0, %v1875
      %1877 = vmatmul.bf16.gmra.mxu0 %v1541
      %v1878 = vpop.f32.mrf.mxu0
      %v1879 = vadd.f32 0.0, %v1878
      %v1880 = vpop.f32.mrf.mxu0
      %v1881 = vadd.f32 0.0, %v1880
      %1882 = vmatmul.bf16.gmra.mxu0 %v1543
      %v1883 = vpop.f32.mrf.mxu0
      %v1884 = vadd.f32 0.0, %v1883
      %v1885 = vpop.f32.mrf.mxu0
      %v1886 = vadd.f32 0.0, %v1885
      %1887 = vmatmul.bf16.gmra.mxu0 %v1545
      %v1888 = vpop.f32.mrf.mxu0
      %v1889 = vadd.f32 0.0, %v1888
      %v1890 = vpop.f32.mrf.mxu0
      %v1891 = vadd.f32 0.0, %v1890
      %1892 = vmatmul.bf16.gmra.mxu0 %v1547
      %v1893 = vpop.f32.mrf.mxu0
      %v1894 = vadd.f32 0.0, %v1893
      %v1895 = vpop.f32.mrf.mxu0
      %v1896 = vadd.f32 0.0, %v1895
      %1897 = vmatmul.bf16.gmra.mxu0 %v1549
      %v1898 = vpop.f32.mrf.mxu0
      %v1899 = vadd.f32 0.0, %v1898
      %v1900 = vpop.f32.mrf.mxu0
      %v1901 = vadd.f32 0.0, %v1900
      %1902 = vmatmul.bf16.gmra.mxu0 %v1551
      %v1903 = vpop.f32.mrf.mxu0
      %v1904 = vadd.f32 0.0, %v1903
      %v1905 = vpop.f32.mrf.mxu0
      %v1906 = vadd.f32 0.0, %v1905
      %1907 = vmatmul.bf16.gmra.mxu0 %v1553
      %v1908 = vpop.f32.mrf.mxu0
      %v1909 = vadd.f32 0.0, %v1908
      %v1910 = vpop.f32.mrf.mxu0
      %v1911 = vadd.f32 0.0, %v1910
      %1912 = vmatmul.bf16.gmra.mxu0 %v1555
      %v1913 = vpop.f32.mrf.mxu0
      %v1914 = vadd.f32 0.0, %v1913
      %v1915 = vpop.f32.mrf.mxu0
      %v1916 = vadd.f32 0.0, %v1915
      %1917 = vmatmul.bf16.gmra.mxu0 %v1557
      %v1918 = vpop.f32.mrf.mxu0
      %v1919 = vadd.f32 0.0, %v1918
      %v1920 = vpop.f32.mrf.mxu0
      %v1921 = vadd.f32 0.0, %v1920
      %1922 = vmatmul.bf16.gmra.mxu0 %v1559
      %v1923 = vpop.f32.mrf.mxu0
      %v1924 = vadd.f32 0.0, %v1923
      %v1925 = vpop.f32.mrf.mxu0
      %v1926 = vadd.f32 0.0, %v1925
      %1927 = vmatmul.bf16.gmra.mxu0 %v1561
      %v1928 = vpop.f32.mrf.mxu0
      %v1929 = vadd.f32 0.0, %v1928
      %v1930 = vpop.f32.mrf.mxu0
      %v1931 = vadd.f32 0.0, %v1930
      %1932 = vmatmul.bf16.gmra.mxu0 %v1563
      %v1933 = vpop.f32.mrf.mxu0
      %v1934 = vadd.f32 0.0, %v1933
      %v1935 = vpop.f32.mrf.mxu0
      %v1936 = vadd.f32 0.0, %v1935
      %1937 = vmatmul.bf16.gmra.mxu0 %v1565
      %v1938 = vpop.f32.mrf.mxu0
      %v1939 = vadd.f32 0.0, %v1938
      %v1940 = vpop.f32.mrf.mxu0
      %v1941 = vadd.f32 0.0, %v1940
      %1942 = vmatmul.bf16.gmra.mxu0 %v1567
      %v1943 = vpop.f32.mrf.mxu0
      %v1944 = vadd.f32 0.0, %v1943
      %v1945 = vpop.f32.mrf.mxu0
      %v1946 = vadd.f32 0.0, %v1945
      %1947 = vmatmul.bf16.gmra.mxu0 %v1569
      %v1948 = vpop.f32.mrf.mxu0
      %v1949 = vadd.f32 0.0, %v1948
      %v1950 = vpop.f32.mrf.mxu0
      %v1951 = vadd.f32 0.0, %v1950
      %1952 = vmatmul.bf16.gmra.mxu0 %v1571
      %v1953 = vpop.f32.mrf.mxu0
      %v1954 = vadd.f32 0.0, %v1953
      %v1955 = vpop.f32.mrf.mxu0
      %v1956 = vadd.f32 0.0, %v1955
      %1957 = vmatmul.bf16.gmra.mxu0 %v1573
      %v1958 = vpop.f32.mrf.mxu0
      %v1959 = vadd.f32 0.0, %v1958
      %v1960 = vpop.f32.mrf.mxu0
      %v1961 = vadd.f32 0.0, %v1960
      %1962 = vmatmul.bf16.gmra.mxu0 %v1575
      %v1963 = vpop.f32.mrf.mxu0
      %v1964 = vadd.f32 0.0, %v1963
      %v1965 = vpop.f32.mrf.mxu0
      %v1966 = vadd.f32 0.0, %v1965
      %1967 = vmatmul.bf16.gmra.mxu0 %v1577
      %v1968 = vpop.f32.mrf.mxu0
      %v1969 = vadd.f32 0.0, %v1968
      %v1970 = vpop.f32.mrf.mxu0
      %v1971 = vadd.f32 0.0, %v1970
      %1972 = vmatmul.bf16.gmra.mxu0 %v1579
      %v1973 = vpop.f32.mrf.mxu0
      %v1974 = vadd.f32 0.0, %v1973
      %v1975 = vpop.f32.mrf.mxu0
      %v1976 = vadd.f32 0.0, %v1975
      %1977 = vmatmul.bf16.gmra.mxu0 %v1581
      %v1978 = vpop.f32.mrf.mxu0
      %v1979 = vadd.f32 0.0, %v1978
      %v1980 = vpop.f32.mrf.mxu0
      %v1981 = vadd.f32 0.0, %v1980
      %1982 = vmatmul.bf16.gmra.mxu0 %v1583
      %v1983 = vpop.f32.mrf.mxu0
      %v1984 = vadd.f32 0.0, %v1983
      %v1985 = vpop.f32.mrf.mxu0
      %v1986 = vadd.f32 0.0, %v1985
      %1987 = vmatmul.bf16.gmra.mxu0 %v1585
      %v1988 = vpop.f32.mrf.mxu0
      %v1989 = vadd.f32 0.0, %v1988
      %v1990 = vpop.f32.mrf.mxu0
      %v1991 = vadd.f32 0.0, %v1990
      %1992 = vmatmul.bf16.gmra.mxu0 %v1587
      %v1993 = vpop.f32.mrf.mxu0
      %v1994 = vadd.f32 0.0, %v1993
      %v1995 = vpop.f32.mrf.mxu0
      %v1996 = vadd.f32 0.0, %v1995
      %1997 = vmatmul.bf16.gmra.mxu0 %v1589
      %v1998 = vpop.f32.mrf.mxu0
      %v1999 = vadd.f32 0.0, %v1998
      %v2000 = vpop.f32.mrf.mxu0
      %v2001 = vadd.f32 0.0, %v2000
      %2002 = vmatmul.bf16.gmra.mxu0 %v1591
      %v2003 = vpop.f32.mrf.mxu0
      %v2004 = vadd.f32 0.0, %v2003
      %v2005 = vpop.f32.mrf.mxu0
      %v2006 = vadd.f32 0.0, %v2005
      %2007 = vmatmul.bf16.gmra.mxu0 %v1593
      %v2008 = vpop.f32.mrf.mxu0
      %v2009 = vadd.f32 0.0, %v2008
      %v2010 = vpop.f32.mrf.mxu0
      %v2011 = vadd.f32 0.0, %v2010
      %2012 = vmatmul.bf16.gmra.mxu0 %v1595
      %v2013 = vpop.f32.mrf.mxu0
      %v2014 = vadd.f32 0.0, %v2013
      %v2015 = vpop.f32.mrf.mxu0
      %v2016 = vadd.f32 0.0, %v2015
      %2017 = vmatmul.bf16.gmra.mxu0 %v1597
      %v2018 = vpop.f32.mrf.mxu0
      %v2019 = vadd.f32 0.0, %v2018
      %v2020 = vpop.f32.mrf.mxu0
      %v2021 = vadd.f32 0.0, %v2020
      %2022 = vmatmul.bf16.gmra.mxu0 %v1599
      %v2023 = vpop.f32.mrf.mxu0
      %v2024 = vadd.f32 0.0, %v2023
      %v2025 = vpop.f32.mrf.mxu0
      %v2026 = vadd.f32 0.0, %v2025
      %2027 = vmatmul.bf16.gmra.mxu0 %v1601
      %v2028 = vpop.f32.mrf.mxu0
      %v2029 = vadd.f32 0.0, %v2028
      %v2030 = vpop.f32.mrf.mxu0
      %v2031 = vadd.f32 0.0, %v2030
      %2032 = vmatmul.bf16.gmra.mxu0 %v1603
      %v2033 = vpop.f32.mrf.mxu0
      %v2034 = vadd.f32 0.0, %v2033
      %v2035 = vpop.f32.mrf.mxu0
      %v2036 = vadd.f32 0.0, %v2035
      %2037 = vmatmul.bf16.gmra.mxu0 %v1605
      %v2038 = vpop.f32.mrf.mxu0
      %v2039 = vadd.f32 0.0, %v2038
      %v2040 = vpop.f32.mrf.mxu0
      %v2041 = vadd.f32 0.0, %v2040
      %2042 = vmatmul.bf16.gmra.mxu0 %v1607
      %v2043 = vpop.f32.mrf.mxu0
      %v2044 = vadd.f32 0.0, %v2043
      %v2045 = vpop.f32.mrf.mxu0
      %v2046 = vadd.f32 0.0, %v2045
      %2047 = vmatmul.bf16.gmra.mxu0 %v1609
      %v2048 = vpop.f32.mrf.mxu0
      %v2049 = vadd.f32 0.0, %v2048
      %v2050 = vpop.f32.mrf.mxu0
      %v2051 = vadd.f32 0.0, %v2050
      %2052 = vmatmul.bf16.gmra.mxu0 %v1611
      %v2053 = vpop.f32.mrf.mxu0
      %v2054 = vadd.f32 0.0, %v2053
      %v2055 = vpop.f32.mrf.mxu0
      %v2056 = vadd.f32 0.0, %v2055
      %2057 = vmatmul.bf16.gmra.mxu0 %v1613
      %v2058 = vpop.f32.mrf.mxu0
      %v2059 = vadd.f32 0.0, %v2058
      %v2060 = vpop.f32.mrf.mxu0
      %v2061 = vadd.f32 0.0, %v2060
      %2062 = vmatmul.bf16.gmra.mxu0 %v1615
      %v2063 = vpop.f32.mrf.mxu0
      %v2064 = vadd.f32 0.0, %v2063
      %v2065 = vpop.f32.mrf.mxu0
      %v2066 = vadd.f32 0.0, %v2065
      %2067 = vmatmul.bf16.gmra.mxu0 %v1617
      %v2068 = vpop.f32.mrf.mxu0
      %v2069 = vadd.f32 0.0, %v2068
      %v2070 = vpop.f32.mrf.mxu0
      %v2071 = vadd.f32 0.0, %v2070
      %2072 = vmatmul.bf16.gmra.mxu0 %v1619
      %v2073 = vpop.f32.mrf.mxu0
      %v2074 = vadd.f32 0.0, %v2073
      %v2075 = vpop.f32.mrf.mxu0
      %v2076 = vadd.f32 0.0, %v2075
      %2077 = vdwg.mxu0
      %2078 = vmatpush.bf16.msra.mxu0 %v1108
      %2079 = vmatpush.bf16.msra.mxu0 %v1107
      %2080 = vmatpush.bf16.msra.mxu0 %v1106
      %2081 = vmatpush.bf16.msra.mxu0 %v1105
      %2082 = vmatpush.bf16.msra.mxu0 %v1104
      %2083 = vmatpush.bf16.msra.mxu0 %v1103
      %2084 = vmatpush.bf16.msra.mxu0 %v1102
      %2085 = vmatpush.bf16.msra.mxu0 %v1101
      %2086 = vmatmul.bf16.gmra.mxu0 %v1494
      %v2087 = vpop.f32.mrf.mxu0
      %v2088 = vadd.f32 %v1759, %v2087
      %v2089 = vpop.f32.mrf.mxu0
      %v2090 = vadd.f32 %v1761, %v2089
      %2091 = vmatmul.bf16.gmra.mxu0 %v1496
      %v2092 = vpop.f32.mrf.mxu0
      %v2093 = vadd.f32 %v1764, %v2092
      %v2094 = vpop.f32.mrf.mxu0
      %v2095 = vadd.f32 %v1766, %v2094
      %2096 = vmatmul.bf16.gmra.mxu0 %v1498
      %v2097 = vpop.f32.mrf.mxu0
      %v2098 = vadd.f32 %v1769, %v2097
      %v2099 = vpop.f32.mrf.mxu0
      %v2100 = vadd.f32 %v1771, %v2099
      %2101 = vmatmul.bf16.gmra.mxu0 %v1500
      %v2102 = vpop.f32.mrf.mxu0
      %v2103 = vadd.f32 %v1774, %v2102
      %v2104 = vpop.f32.mrf.mxu0
      %v2105 = vadd.f32 %v1776, %v2104
      %2106 = vmatmul.bf16.gmra.mxu0 %v1502
      %v2107 = vpop.f32.mrf.mxu0
      %v2108 = vadd.f32 %v1779, %v2107
      %v2109 = vpop.f32.mrf.mxu0
      %v2110 = vadd.f32 %v1781, %v2109
      %2111 = vmatmul.bf16.gmra.mxu0 %v1504
      %v2112 = vpop.f32.mrf.mxu0
      %v2113 = vadd.f32 %v1784, %v2112
      %v2114 = vpop.f32.mrf.mxu0
      %v2115 = vadd.f32 %v1786, %v2114
      %2116 = vmatmul.bf16.gmra.mxu0 %v1506
      %v2117 = vpop.f32.mrf.mxu0
      %v2118 = vadd.f32 %v1789, %v2117
      %v2119 = vpop.f32.mrf.mxu0
      %v2120 = vadd.f32 %v1791, %v2119
      %2121 = vmatmul.bf16.gmra.mxu0 %v1508
      %v2122 = vpop.f32.mrf.mxu0
      %v2123 = vadd.f32 %v1794, %v2122
      %v2124 = vpop.f32.mrf.mxu0
      %v2125 = vadd.f32 %v1796, %v2124
      %2126 = vmatmul.bf16.gmra.mxu0 %v1510
      %v2127 = vpop.f32.mrf.mxu0
      %v2128 = vadd.f32 %v1799, %v2127
      %v2129 = vpop.f32.mrf.mxu0
      %v2130 = vadd.f32 %v1801, %v2129
      %2131 = vmatmul.bf16.gmra.mxu0 %v1512
      %v2132 = vpop.f32.mrf.mxu0
      %v2133 = vadd.f32 %v1804, %v2132
      %v2134 = vpop.f32.mrf.mxu0
      %v2135 = vadd.f32 %v1806, %v2134
      %2136 = vmatmul.bf16.gmra.mxu0 %v1514
      %v2137 = vpop.f32.mrf.mxu0
      %v2138 = vadd.f32 %v1809, %v2137
      %v2139 = vpop.f32.mrf.mxu0
      %v2140 = vadd.f32 %v1811, %v2139
      %2141 = vmatmul.bf16.gmra.mxu0 %v1516
      %v2142 = vpop.f32.mrf.mxu0
      %v2143 = vadd.f32 %v1814, %v2142
      %v2144 = vpop.f32.mrf.mxu0
      %v2145 = vadd.f32 %v1816, %v2144
      %2146 = vmatmul.bf16.gmra.mxu0 %v1518
      %v2147 = vpop.f32.mrf.mxu0
      %v2148 = vadd.f32 %v1819, %v2147
      %v2149 = vpop.f32.mrf.mxu0
      %v2150 = vadd.f32 %v1821, %v2149
      %2151 = vmatmul.bf16.gmra.mxu0 %v1520
      %v2152 = vpop.f32.mrf.mxu0
      %v2153 = vadd.f32 %v1824, %v2152
      %v2154 = vpop.f32.mrf.mxu0
      %v2155 = vadd.f32 %v1826, %v2154
      %2156 = vmatmul.bf16.gmra.mxu0 %v1522
      %v2157 = vpop.f32.mrf.mxu0
      %v2158 = vadd.f32 %v1829, %v2157
      %v2159 = vpop.f32.mrf.mxu0
      %v2160 = vadd.f32 %v1831, %v2159
      %2161 = vmatmul.bf16.gmra.mxu0 %v1524
      %v2162 = vpop.f32.mrf.mxu0
      %v2163 = vadd.f32 %v1834, %v2162
      %v2164 = vpop.f32.mrf.mxu0
      %v2165 = vadd.f32 %v1836, %v2164
      %2166 = vmatmul.bf16.gmra.mxu0 %v1526
      %v2167 = vpop.f32.mrf.mxu0
      %v2168 = vadd.f32 %v1839, %v2167
      %v2169 = vpop.f32.mrf.mxu0
      %v2170 = vadd.f32 %v1841, %v2169
      %2171 = vmatmul.bf16.gmra.mxu0 %v1528
      %v2172 = vpop.f32.mrf.mxu0
      %v2173 = vadd.f32 %v1844, %v2172
      %v2174 = vpop.f32.mrf.mxu0
      %v2175 = vadd.f32 %v1846, %v2174
      %2176 = vmatmul.bf16.gmra.mxu0 %v1530
      %v2177 = vpop.f32.mrf.mxu0
      %v2178 = vadd.f32 %v1849, %v2177
      %v2179 = vpop.f32.mrf.mxu0
      %v2180 = vadd.f32 %v1851, %v2179
      %2181 = vmatmul.bf16.gmra.mxu0 %v1532
      %v2182 = vpop.f32.mrf.mxu0
      %v2183 = vadd.f32 %v1854, %v2182
      %v2184 = vpop.f32.mrf.mxu0
      %v2185 = vadd.f32 %v1856, %v2184
      %2186 = vmatmul.bf16.gmra.mxu0 %v1534
      %v2187 = vpop.f32.mrf.mxu0
      %v2188 = vadd.f32 %v1859, %v2187
      %v2189 = vpop.f32.mrf.mxu0
      %v2190 = vadd.f32 %v1861, %v2189
      %2191 = vmatmul.bf16.gmra.mxu0 %v1536
      %v2192 = vpop.f32.mrf.mxu0
      %v2193 = vadd.f32 %v1864, %v2192
      %v2194 = vpop.f32.mrf.mxu0
      %v2195 = vadd.f32 %v1866, %v2194
      %2196 = vmatmul.bf16.gmra.mxu0 %v1538
      %v2197 = vpop.f32.mrf.mxu0
      %v2198 = vadd.f32 %v1869, %v2197
      %v2199 = vpop.f32.mrf.mxu0
      %v2200 = vadd.f32 %v1871, %v2199
      %2201 = vmatmul.bf16.gmra.mxu0 %v1540
      %v2202 = vpop.f32.mrf.mxu0
      %v2203 = vadd.f32 %v1874, %v2202
      %v2204 = vpop.f32.mrf.mxu0
      %v2205 = vadd.f32 %v1876, %v2204
      %2206 = vmatmul.bf16.gmra.mxu0 %v1542
      %v2207 = vpop.f32.mrf.mxu0
      %v2208 = vadd.f32 %v1879, %v2207
      %v2209 = vpop.f32.mrf.mxu0
      %v2210 = vadd.f32 %v1881, %v2209
      %2211 = vmatmul.bf16.gmra.mxu0 %v1544
      %v2212 = vpop.f32.mrf.mxu0
      %v2213 = vadd.f32 %v1884, %v2212
      %v2214 = vpop.f32.mrf.mxu0
      %v2215 = vadd.f32 %v1886, %v2214
      %2216 = vmatmul.bf16.gmra.mxu0 %v1546
      %v2217 = vpop.f32.mrf.mxu0
      %v2218 = vadd.f32 %v1889, %v2217
      %v2219 = vpop.f32.mrf.mxu0
      %v2220 = vadd.f32 %v1891, %v2219
      %2221 = vmatmul.bf16.gmra.mxu0 %v1548
      %v2222 = vpop.f32.mrf.mxu0
      %v2223 = vadd.f32 %v1894, %v2222
      %v2224 = vpop.f32.mrf.mxu0
      %v2225 = vadd.f32 %v1896, %v2224
      %2226 = vmatmul.bf16.gmra.mxu0 %v1550
      %v2227 = vpop.f32.mrf.mxu0
      %v2228 = vadd.f32 %v1899, %v2227
      %v2229 = vpop.f32.mrf.mxu0
      %v2230 = vadd.f32 %v1901, %v2229
      %2231 = vmatmul.bf16.gmra.mxu0 %v1552
      %v2232 = vpop.f32.mrf.mxu0
      %v2233 = vadd.f32 %v1904, %v2232
      %v2234 = vpop.f32.mrf.mxu0
      %v2235 = vadd.f32 %v1906, %v2234
      %2236 = vmatmul.bf16.gmra.mxu0 %v1554
      %v2237 = vpop.f32.mrf.mxu0
      %v2238 = vadd.f32 %v1909, %v2237
      %v2239 = vpop.f32.mrf.mxu0
      %v2240 = vadd.f32 %v1911, %v2239
      %2241 = vmatmul.bf16.gmra.mxu0 %v1556
      %v2242 = vpop.f32.mrf.mxu0
      %v2243 = vadd.f32 %v1914, %v2242
      %v2244 = vpop.f32.mrf.mxu0
      %v2245 = vadd.f32 %v1916, %v2244
      %2246 = vmatmul.bf16.gmra.mxu0 %v1558
      %v2247 = vpop.f32.mrf.mxu0
      %v2248 = vadd.f32 %v1919, %v2247
      %v2249 = vpop.f32.mrf.mxu0
      %v2250 = vadd.f32 %v1921, %v2249
      %2251 = vmatmul.bf16.gmra.mxu0 %v1560
      %v2252 = vpop.f32.mrf.mxu0
      %v2253 = vadd.f32 %v1924, %v2252
      %v2254 = vpop.f32.mrf.mxu0
      %v2255 = vadd.f32 %v1926, %v2254
      %2256 = vmatmul.bf16.gmra.mxu0 %v1562
      %v2257 = vpop.f32.mrf.mxu0
      %v2258 = vadd.f32 %v1929, %v2257
      %v2259 = vpop.f32.mrf.mxu0
      %v2260 = vadd.f32 %v1931, %v2259
      %2261 = vmatmul.bf16.gmra.mxu0 %v1564
      %v2262 = vpop.f32.mrf.mxu0
      %v2263 = vadd.f32 %v1934, %v2262
      %v2264 = vpop.f32.mrf.mxu0
      %v2265 = vadd.f32 %v1936, %v2264
      %2266 = vmatmul.bf16.gmra.mxu0 %v1566
      %v2267 = vpop.f32.mrf.mxu0
      %v2268 = vadd.f32 %v1939, %v2267
      %v2269 = vpop.f32.mrf.mxu0
      %v2270 = vadd.f32 %v1941, %v2269
      %2271 = vmatmul.bf16.gmra.mxu0 %v1568
      %v2272 = vpop.f32.mrf.mxu0
      %v2273 = vadd.f32 %v1944, %v2272
      %v2274 = vpop.f32.mrf.mxu0
      %v2275 = vadd.f32 %v1946, %v2274
      %2276 = vmatmul.bf16.gmra.mxu0 %v1570
      %v2277 = vpop.f32.mrf.mxu0
      %v2278 = vadd.f32 %v1949, %v2277
      %v2279 = vpop.f32.mrf.mxu0
      %v2280 = vadd.f32 %v1951, %v2279
      %2281 = vmatmul.bf16.gmra.mxu0 %v1572
      %v2282 = vpop.f32.mrf.mxu0
      %v2283 = vadd.f32 %v1954, %v2282
      %v2284 = vpop.f32.mrf.mxu0
      %v2285 = vadd.f32 %v1956, %v2284
      %2286 = vmatmul.bf16.gmra.mxu0 %v1574
      %v2287 = vpop.f32.mrf.mxu0
      %v2288 = vadd.f32 %v1959, %v2287
      %v2289 = vpop.f32.mrf.mxu0
      %v2290 = vadd.f32 %v1961, %v2289
      %2291 = vmatmul.bf16.gmra.mxu0 %v1576
      %v2292 = vpop.f32.mrf.mxu0
      %v2293 = vadd.f32 %v1964, %v2292
      %v2294 = vpop.f32.mrf.mxu0
      %v2295 = vadd.f32 %v1966, %v2294
      %2296 = vmatmul.bf16.gmra.mxu0 %v1578
      %v2297 = vpop.f32.mrf.mxu0
      %v2298 = vadd.f32 %v1969, %v2297
      %v2299 = vpop.f32.mrf.mxu0
      %v2300 = vadd.f32 %v1971, %v2299
      %2301 = vmatmul.bf16.gmra.mxu0 %v1580
      %v2302 = vpop.f32.mrf.mxu0
      %v2303 = vadd.f32 %v1974, %v2302
      %v2304 = vpop.f32.mrf.mxu0
      %v2305 = vadd.f32 %v1976, %v2304
      %2306 = vmatmul.bf16.gmra.mxu0 %v1582
      %v2307 = vpop.f32.mrf.mxu0
      %v2308 = vadd.f32 %v1979, %v2307
      %v2309 = vpop.f32.mrf.mxu0
      %v2310 = vadd.f32 %v1981, %v2309
      %2311 = vmatmul.bf16.gmra.mxu0 %v1584
      %v2312 = vpop.f32.mrf.mxu0
      %v2313 = vadd.f32 %v1984, %v2312
      %v2314 = vpop.f32.mrf.mxu0
      %v2315 = vadd.f32 %v1986, %v2314
      %2316 = vmatmul.bf16.gmra.mxu0 %v1586
      %v2317 = vpop.f32.mrf.mxu0
      %v2318 = vadd.f32 %v1989, %v2317
      %v2319 = vpop.f32.mrf.mxu0
      %v2320 = vadd.f32 %v1991, %v2319
      %2321 = vmatmul.bf16.gmra.mxu0 %v1588
      %v2322 = vpop.f32.mrf.mxu0
      %v2323 = vadd.f32 %v1994, %v2322
      %v2324 = vpop.f32.mrf.mxu0
      %v2325 = vadd.f32 %v1996, %v2324
      %2326 = vmatmul.bf16.gmra.mxu0 %v1590
      %v2327 = vpop.f32.mrf.mxu0
      %v2328 = vadd.f32 %v1999, %v2327
      %v2329 = vpop.f32.mrf.mxu0
      %v2330 = vadd.f32 %v2001, %v2329
      %2331 = vmatmul.bf16.gmra.mxu0 %v1592
      %v2332 = vpop.f32.mrf.mxu0
      %v2333 = vadd.f32 %v2004, %v2332
      %v2334 = vpop.f32.mrf.mxu0
      %v2335 = vadd.f32 %v2006, %v2334
      %2336 = vmatmul.bf16.gmra.mxu0 %v1594
      %v2337 = vpop.f32.mrf.mxu0
      %v2338 = vadd.f32 %v2009, %v2337
      %v2339 = vpop.f32.mrf.mxu0
      %v2340 = vadd.f32 %v2011, %v2339
      %2341 = vmatmul.bf16.gmra.mxu0 %v1596
      %v2342 = vpop.f32.mrf.mxu0
      %v2343 = vadd.f32 %v2014, %v2342
      %v2344 = vpop.f32.mrf.mxu0
      %v2345 = vadd.f32 %v2016, %v2344
      %2346 = vmatmul.bf16.gmra.mxu0 %v1598
      %v2347 = vpop.f32.mrf.mxu0
      %v2348 = vadd.f32 %v2019, %v2347
      %v2349 = vpop.f32.mrf.mxu0
      %v2350 = vadd.f32 %v2021, %v2349
      %2351 = vmatmul.bf16.gmra.mxu0 %v1600
      %v2352 = vpop.f32.mrf.mxu0
      %v2353 = vadd.f32 %v2024, %v2352
      %v2354 = vpop.f32.mrf.mxu0
      %v2355 = vadd.f32 %v2026, %v2354
      %2356 = vmatmul.bf16.gmra.mxu0 %v1602
      %v2357 = vpop.f32.mrf.mxu0
      %v2358 = vadd.f32 %v2029, %v2357
      %v2359 = vpop.f32.mrf.mxu0
      %v2360 = vadd.f32 %v2031, %v2359
      %2361 = vmatmul.bf16.gmra.mxu0 %v1604
      %v2362 = vpop.f32.mrf.mxu0
      %v2363 = vadd.f32 %v2034, %v2362
      %v2364 = vpop.f32.mrf.mxu0
      %v2365 = vadd.f32 %v2036, %v2364
      %2366 = vmatmul.bf16.gmra.mxu0 %v1606
      %v2367 = vpop.f32.mrf.mxu0
      %v2368 = vadd.f32 %v2039, %v2367
      %v2369 = vpop.f32.mrf.mxu0
      %v2370 = vadd.f32 %v2041, %v2369
      %2371 = vmatmul.bf16.gmra.mxu0 %v1608
      %v2372 = vpop.f32.mrf.mxu0
      %v2373 = vadd.f32 %v2044, %v2372
      %v2374 = vpop.f32.mrf.mxu0
      %v2375 = vadd.f32 %v2046, %v2374
      %2376 = vmatmul.bf16.gmra.mxu0 %v1610
      %v2377 = vpop.f32.mrf.mxu0
      %v2378 = vadd.f32 %v2049, %v2377
      %v2379 = vpop.f32.mrf.mxu0
      %v2380 = vadd.f32 %v2051, %v2379
      %2381 = vmatmul.bf16.gmra.mxu0 %v1612
      %v2382 = vpop.f32.mrf.mxu0
      %v2383 = vadd.f32 %v2054, %v2382
      %v2384 = vpop.f32.mrf.mxu0
      %v2385 = vadd.f32 %v2056, %v2384
      %2386 = vmatmul.bf16.gmra.mxu0 %v1614
      %v2387 = vpop.f32.mrf.mxu0
      %v2388 = vadd.f32 %v2059, %v2387
      %v2389 = vpop.f32.mrf.mxu0
      %v2390 = vadd.f32 %v2061, %v2389
      %2391 = vmatmul.bf16.gmra.mxu0 %v1616
      %v2392 = vpop.f32.mrf.mxu0
      %v2393 = vadd.f32 %v2064, %v2392
      %v2394 = vpop.f32.mrf.mxu0
      %v2395 = vadd.f32 %v2066, %v2394
      %2396 = vmatmul.bf16.gmra.mxu0 %v1618
      %v2397 = vpop.f32.mrf.mxu0
      %v2398 = vadd.f32 %v2069, %v2397
      %v2399 = vpop.f32.mrf.mxu0
      %v2400 = vadd.f32 %v2071, %v2399
      %2401 = vmatmul.bf16.gmra.mxu0 %v1620
      %v2402 = vpop.f32.mrf.mxu0
      %v2403 = vadd.f32 %v2074, %v2402
      %v2404 = vpop.f32.mrf.mxu0
      %v2405 = vadd.f32 %v2076, %v2404
      %2406 = vdwg.mxu0
      %v2407 = vpack.c.bf16 %v2088, %v2088
      %v2408 = vpack.c.bf16 %v2090, %v2090
      %v2409 = vpack.c.bf16 %v2093, %v2093
      %v2410 = vpack.c.bf16 %v2095, %v2095
      %v2411 = vpack.c.bf16 %v2098, %v2098
      %v2412 = vpack.c.bf16 %v2100, %v2100
      %v2413 = vpack.c.bf16 %v2103, %v2103
      %v2414 = vpack.c.bf16 %v2105, %v2105
      %v2415 = vpack.c.bf16 %v2108, %v2108
      %v2416 = vpack.c.bf16 %v2110, %v2110
      %v2417 = vpack.c.bf16 %v2113, %v2113
      %v2418 = vpack.c.bf16 %v2115, %v2115
      %v2419 = vpack.c.bf16 %v2118, %v2118
      %v2420 = vpack.c.bf16 %v2120, %v2120
      %v2421 = vpack.c.bf16 %v2123, %v2123
      %v2422 = vpack.c.bf16 %v2125, %v2125
      %v2423 = vpack.c.bf16 %v2128, %v2128
      %v2424 = vpack.c.bf16 %v2130, %v2130
      %v2425 = vpack.c.bf16 %v2133, %v2133
      %v2426 = vpack.c.bf16 %v2135, %v2135
      %v2427 = vpack.c.bf16 %v2138, %v2138
      %v2428 = vpack.c.bf16 %v2140, %v2140
      %v2429 = vpack.c.bf16 %v2143, %v2143
      %v2430 = vpack.c.bf16 %v2145, %v2145
      %v2431 = vpack.c.bf16 %v2148, %v2148
      %v2432 = vpack.c.bf16 %v2150, %v2150
      %v2433 = vpack.c.bf16 %v2153, %v2153
      %v2434 = vpack.c.bf16 %v2155, %v2155
      %v2435 = vpack.c.bf16 %v2158, %v2158
      %v2436 = vpack.c.bf16 %v2160, %v2160
      %v2437 = vpack.c.bf16 %v2163, %v2163
      %v2438 = vpack.c.bf16 %v2165, %v2165
      %v2439 = vpack.c.bf16 %v2168, %v2168
      %v2440 = vpack.c.bf16 %v2170, %v2170
      %v2441 = vpack.c.bf16 %v2173, %v2173
      %v2442 = vpack.c.bf16 %v2175, %v2175
      %v2443 = vpack.c.bf16 %v2178, %v2178
      %v2444 = vpack.c.bf16 %v2180, %v2180
      %v2445 = vpack.c.bf16 %v2183, %v2183
      %v2446 = vpack.c.bf16 %v2185, %v2185
      %v2447 = vpack.c.bf16 %v2188, %v2188
      %v2448 = vpack.c.bf16 %v2190, %v2190
      %v2449 = vpack.c.bf16 %v2193, %v2193
      %v2450 = vpack.c.bf16 %v2195, %v2195
      %v2451 = vpack.c.bf16 %v2198, %v2198
      %v2452 = vpack.c.bf16 %v2200, %v2200
      %v2453 = vpack.c.bf16 %v2203, %v2203
      %v2454 = vpack.c.bf16 %v2205, %v2205
      %v2455 = vpack.c.bf16 %v2208, %v2208
      %v2456 = vpack.c.bf16 %v2210, %v2210
      %v2457 = vpack.c.bf16 %v2213, %v2213
      %v2458 = vpack.c.bf16 %v2215, %v2215
      %v2459 = vpack.c.bf16 %v2218, %v2218
      %v2460 = vpack.c.bf16 %v2220, %v2220
      %v2461 = vpack.c.bf16 %v2223, %v2223
      %v2462 = vpack.c.bf16 %v2225, %v2225
      %v2463 = vpack.c.bf16 %v2228, %v2228
      %v2464 = vpack.c.bf16 %v2230, %v2230
      %v2465 = vpack.c.bf16 %v2233, %v2233
      %v2466 = vpack.c.bf16 %v2235, %v2235
      %v2467 = vpack.c.bf16 %v2238, %v2238
      %v2468 = vpack.c.bf16 %v2240, %v2240
      %v2469 = vpack.c.bf16 %v2243, %v2243
      %v2470 = vpack.c.bf16 %v2245, %v2245
      %v2471 = vpack.c.bf16 %v2248, %v2248
      %v2472 = vpack.c.bf16 %v2250, %v2250
      %v2473 = vpack.c.bf16 %v2253, %v2253
      %v2474 = vpack.c.bf16 %v2255, %v2255
      %v2475 = vpack.c.bf16 %v2258, %v2258
      %v2476 = vpack.c.bf16 %v2260, %v2260
      %v2477 = vpack.c.bf16 %v2263, %v2263
      %v2478 = vpack.c.bf16 %v2265, %v2265
      %v2479 = vpack.c.bf16 %v2268, %v2268
      %v2480 = vpack.c.bf16 %v2270, %v2270
      %v2481 = vpack.c.bf16 %v2273, %v2273
      %v2482 = vpack.c.bf16 %v2275, %v2275
      %v2483 = vpack.c.bf16 %v2278, %v2278
      %v2484 = vpack.c.bf16 %v2280, %v2280
      %v2485 = vpack.c.bf16 %v2283, %v2283
      %v2486 = vpack.c.bf16 %v2285, %v2285
      %v2487 = vpack.c.bf16 %v2288, %v2288
      %v2488 = vpack.c.bf16 %v2290, %v2290
      %v2489 = vpack.c.bf16 %v2293, %v2293
      %v2490 = vpack.c.bf16 %v2295, %v2295
      %v2491 = vpack.c.bf16 %v2298, %v2298
      %v2492 = vpack.c.bf16 %v2300, %v2300
      %v2493 = vpack.c.bf16 %v2303, %v2303
      %v2494 = vpack.c.bf16 %v2305, %v2305
      %v2495 = vpack.c.bf16 %v2308, %v2308
      %v2496 = vpack.c.bf16 %v2310, %v2310
      %v2497 = vpack.c.bf16 %v2313, %v2313
      %v2498 = vpack.c.bf16 %v2315, %v2315
      %v2499 = vpack.c.bf16 %v2318, %v2318
      %v2500 = vpack.c.bf16 %v2320, %v2320
      %v2501 = vpack.c.bf16 %v2323, %v2323
      %v2502 = vpack.c.bf16 %v2325, %v2325
      %v2503 = vpack.c.bf16 %v2328, %v2328
      %v2504 = vpack.c.bf16 %v2330, %v2330
      %v2505 = vpack.c.bf16 %v2333, %v2333
      %v2506 = vpack.c.bf16 %v2335, %v2335
      %v2507 = vpack.c.bf16 %v2338, %v2338
      %v2508 = vpack.c.bf16 %v2340, %v2340
      %v2509 = vpack.c.bf16 %v2343, %v2343
      %v2510 = vpack.c.bf16 %v2345, %v2345
      %v2511 = vpack.c.bf16 %v2348, %v2348
      %v2512 = vpack.c.bf16 %v2350, %v2350
      %v2513 = vpack.c.bf16 %v2353, %v2353
      %v2514 = vpack.c.bf16 %v2355, %v2355
      %v2515 = vpack.c.bf16 %v2358, %v2358
      %v2516 = vpack.c.bf16 %v2360, %v2360
      %v2517 = vpack.c.bf16 %v2363, %v2363
      %v2518 = vpack.c.bf16 %v2365, %v2365
      %v2519 = vpack.c.bf16 %v2368, %v2368
      %v2520 = vpack.c.bf16 %v2370, %v2370
      %v2521 = vpack.c.bf16 %v2373, %v2373
      %v2522 = vpack.c.bf16 %v2375, %v2375
      %v2523 = vpack.c.bf16 %v2378, %v2378
      %v2524 = vpack.c.bf16 %v2380, %v2380
      %v2525 = vpack.c.bf16 %v2383, %v2383
      %v2526 = vpack.c.bf16 %v2385, %v2385
      %v2527 = vpack.c.bf16 %v2388, %v2388
      %v2528 = vpack.c.bf16 %v2390, %v2390
      %v2529 = vpack.c.bf16 %v2393, %v2393
      %v2530 = vpack.c.bf16 %v2395, %v2395
      %v2531 = vpack.c.bf16 %v2398, %v2398
      %v2532 = vpack.c.bf16 %v2400, %v2400
      %v2533 = vpack.c.bf16 %v2403, %v2403
      %v2534 = vpack.c.bf16 %v2405, %v2405
      %v2535 = vld [vmem:[%s3] sm:$0xf]
      %v2536 = vld [vmem:[%s3 + $0x4] sm:$0xf]
      %v2537 = vld [vmem:[%s3 + $0x8] sm:$0xf]
      %v2538 = vld [vmem:[%s3 + $0xc] sm:$0xf]
      %s2539 = scalar_lea.vmem %s3, 16
      %v2540 = vld [vmem:[%s2539] sm:$0xf]
      %v2541 = vld [vmem:[%s2539 + $0x4] sm:$0xf]
      %v2542 = vld [vmem:[%s2539 + $0x8] sm:$0xf]
      %v2543 = vld [vmem:[%s2539 + $0xc] sm:$0xf]
      %v2552 = vunpack.c.l.b16 %v2415
      %v2553 = vunpack.c.l.b16 %v2416
      %v2554 = vunpack.c.l.b16 %v2417
      %v2555 = vunpack.c.l.b16 %v2418
      %v2556 = vunpack.c.l.b16 %v2419
      %v2557 = vunpack.c.l.b16 %v2420
      %v2558 = vunpack.c.l.b16 %v2421
      %v2559 = vunpack.c.l.b16 %v2422
      %v2560 = vpack.c.b16 %v2553, %v2552
      %v2561 = vpack.c.b16 %v2555, %v2554
      %v2562 = vpack.c.b16 %v2557, %v2556
      %v2563 = vpack.c.b16 %v2559, %v2558
      %v2568 = vunpack.c.l.b16 %v2540
      %v2569 = vunpack.c.l.b16 %v2541
      %v2570 = vunpack.c.l.b16 %v2542
      %v2571 = vunpack.c.l.b16 %v2543
      %v2572 = vpack.c.b16 %v2569, %v2568
      %v2573 = vpack.c.b16 %v2571, %v2570
      %v2577 = vsel %vm742, %v2560, 0
      %v2580 = vsel %vm742, %v2561, 0
      %v2583 = vsel %vm742, %v2562, 0
      %v2586 = vsel %vm742, %v2563, 0
      %2588 = vmatpush.bf16.msra.mxu0 0
      %2589 = vmatpush.bf16.msra.mxu0 0
      %2590 = vmatpush.bf16.msra.mxu0 0
      %2591 = vmatpush.bf16.msra.mxu0 0
      %2592 = vmatpush.bf16.msra.mxu0 0
      %2593 = vmatpush.bf16.msra.mxu0 0
      %2594 = vmatpush.bf16.msra.mxu0 %v2573
      %2595 = vmatpush.bf16.msra.mxu0 %v2572
      %2596 = vmatmul.bf16.gmra.mxu0 %v2577
      %v2597 = vpop.f32.mrf.mxu0
      %v2598 = vadd.f32 0.0, %v2597
      %v2599 = vpop.f32.mrf.mxu0
      %v2600 = vadd.f32 0.0, %v2599
      %2601 = vmatmul.bf16.gmra.mxu0 %v2580
      %v2602 = vpop.f32.mrf.mxu0
      %v2603 = vadd.f32 0.0, %v2602
      %v2604 = vpop.f32.mrf.mxu0
      %v2605 = vadd.f32 0.0, %v2604
      %2606 = vmatmul.bf16.gmra.mxu0 %v2583
      %v2607 = vpop.f32.mrf.mxu0
      %v2608 = vadd.f32 0.0, %v2607
      %v2609 = vpop.f32.mrf.mxu0
      %v2610 = vadd.f32 0.0, %v2609
      %2611 = vmatmul.bf16.gmra.mxu0 %v2586
      %v2612 = vpop.f32.mrf.mxu0
      %v2613 = vadd.f32 0.0, %v2612
      %v2614 = vpop.f32.mrf.mxu0
      %v2615 = vadd.f32 0.0, %v2614
      %2616 = vdwg.mxu0
      %v2625 = vunpack.c.l.b16 %v2407
      %v2626 = vunpack.c.l.b16 %v2408
      %v2627 = vunpack.c.l.b16 %v2409
      %v2628 = vunpack.c.l.b16 %v2410
      %v2629 = vunpack.c.l.b16 %v2411
      %v2630 = vunpack.c.l.b16 %v2412
      %v2631 = vunpack.c.l.b16 %v2413
      %v2632 = vunpack.c.l.b16 %v2414
      %v2633 = vpack.c.b16 %v2626, %v2625
      %v2634 = vpack.c.b16 %v2628, %v2627
      %v2635 = vpack.c.b16 %v2630, %v2629
      %v2636 = vpack.c.b16 %v2632, %v2631
      %v2641 = vunpack.c.l.b16 %v2535
      %v2642 = vunpack.c.l.b16 %v2536
      %v2643 = vunpack.c.l.b16 %v2537
      %v2644 = vunpack.c.l.b16 %v2538
      %v2645 = vpack.c.b16 %v2642, %v2641
      %v2646 = vpack.c.b16 %v2644, %v2643
      %v2650 = vsel %vm742, %v2633, 0
      %v2653 = vsel %vm742, %v2634, 0
      %v2656 = vsel %vm742, %v2635, 0
      %v2659 = vsel %vm742, %v2636, 0
      %2661 = vmatpush.bf16.msra.mxu0 0
      %2662 = vmatpush.bf16.msra.mxu0 0
      %2663 = vmatpush.bf16.msra.mxu0 0
      %2664 = vmatpush.bf16.msra.mxu0 0
      %2665 = vmatpush.bf16.msra.mxu0 0
      %2666 = vmatpush.bf16.msra.mxu0 0
      %2667 = vmatpush.bf16.msra.mxu0 %v2646
      %2668 = vmatpush.bf16.msra.mxu0 %v2645
      %2669 = vmatmul.bf16.gmra.mxu0 %v2650
      %v2670 = vpop.f32.mrf.mxu0
      %v2671 = vadd.f32 %v2598, %v2670
      %v2672 = vpop.f32.mrf.mxu0
      %v2673 = vadd.f32 %v2600, %v2672
      %2674 = vmatmul.bf16.gmra.mxu0 %v2653
      %v2675 = vpop.f32.mrf.mxu0
      %v2676 = vadd.f32 %v2603, %v2675
      %v2677 = vpop.f32.mrf.mxu0
      %v2678 = vadd.f32 %v2605, %v2677
      %2679 = vmatmul.bf16.gmra.mxu0 %v2656
      %v2680 = vpop.f32.mrf.mxu0
      %v2681 = vadd.f32 %v2608, %v2680
      %v2682 = vpop.f32.mrf.mxu0
      %v2683 = vadd.f32 %v2610, %v2682
      %2684 = vmatmul.bf16.gmra.mxu0 %v2659
      %v2685 = vpop.f32.mrf.mxu0
      %v2686 = vadd.f32 %v2613, %v2685
      %v2687 = vpop.f32.mrf.mxu0
      %v2688 = vadd.f32 %v2615, %v2687
      %2689 = vdwg.mxu0
      %s2690 = scalar_lea.vmem %s3, 32
      %v2691 = vld [vmem:[%s2690] sm:$0xf]
      %v2692 = vld [vmem:[%s2690 + $0x4] sm:$0xf]
      %v2693 = vld [vmem:[%s2690 + $0x8] sm:$0xf]
      %v2694 = vld [vmem:[%s2690 + $0xc] sm:$0xf]
      %v2703 = vunpack.c.l.b16 %v2423
      %v2704 = vunpack.c.l.b16 %v2424
      %v2705 = vunpack.c.l.b16 %v2425
      %v2706 = vunpack.c.l.b16 %v2426
      %v2707 = vunpack.c.l.b16 %v2427
      %v2708 = vunpack.c.l.b16 %v2428
      %v2709 = vunpack.c.l.b16 %v2429
      %v2710 = vunpack.c.l.b16 %v2430
      %v2711 = vpack.c.b16 %v2704, %v2703
      %v2712 = vpack.c.b16 %v2706, %v2705
      %v2713 = vpack.c.b16 %v2708, %v2707
      %v2714 = vpack.c.b16 %v2710, %v2709
      %v2719 = vunpack.c.l.b16 %v2691
      %v2720 = vunpack.c.l.b16 %v2692
      %v2721 = vunpack.c.l.b16 %v2693
      %v2722 = vunpack.c.l.b16 %v2694
      %v2723 = vpack.c.b16 %v2720, %v2719
      %v2724 = vpack.c.b16 %v2722, %v2721
      %v2728 = vsel %vm742, %v2711, 0
      %v2731 = vsel %vm742, %v2712, 0
      %v2734 = vsel %vm742, %v2713, 0
      %v2737 = vsel %vm742, %v2714, 0
      %2739 = vmatpush.bf16.msra.mxu0 0
      %2740 = vmatpush.bf16.msra.mxu0 0
      %2741 = vmatpush.bf16.msra.mxu0 0
      %2742 = vmatpush.bf16.msra.mxu0 0
      %2743 = vmatpush.bf16.msra.mxu0 0
      %2744 = vmatpush.bf16.msra.mxu0 0
      %2745 = vmatpush.bf16.msra.mxu0 %v2724
      %2746 = vmatpush.bf16.msra.mxu0 %v2723
      %2747 = vmatmul.bf16.gmra.mxu0 %v2728
      %v2748 = vpop.f32.mrf.mxu0
      %v2749 = vadd.f32 0.0, %v2748
      %v2750 = vpop.f32.mrf.mxu0
      %v2751 = vadd.f32 0.0, %v2750
      %2752 = vmatmul.bf16.gmra.mxu0 %v2731
      %v2753 = vpop.f32.mrf.mxu0
      %v2754 = vadd.f32 0.0, %v2753
      %v2755 = vpop.f32.mrf.mxu0
      %v2756 = vadd.f32 0.0, %v2755
      %2757 = vmatmul.bf16.gmra.mxu0 %v2734
      %v2758 = vpop.f32.mrf.mxu0
      %v2759 = vadd.f32 0.0, %v2758
      %v2760 = vpop.f32.mrf.mxu0
      %v2761 = vadd.f32 0.0, %v2760
      %2762 = vmatmul.bf16.gmra.mxu0 %v2737
      %v2763 = vpop.f32.mrf.mxu0
      %v2764 = vadd.f32 0.0, %v2763
      %v2765 = vpop.f32.mrf.mxu0
      %v2766 = vadd.f32 0.0, %v2765
      %2767 = vdwg.mxu0
      %v2768 = vadd.f32 %v2671, %v2749
      %v2769 = vadd.f32 %v2673, %v2751
      %v2770 = vadd.f32 %v2676, %v2754
      %v2771 = vadd.f32 %v2678, %v2756
      %v2772 = vadd.f32 %v2681, %v2759
      %v2773 = vadd.f32 %v2683, %v2761
      %v2774 = vadd.f32 %v2686, %v2764
      %v2775 = vadd.f32 %v2688, %v2766
      %s2776 = scalar_lea.vmem %s3, 48
      %v2777 = vld [vmem:[%s2776] sm:$0xf]
      %v2778 = vld [vmem:[%s2776 + $0x4] sm:$0xf]
      %v2779 = vld [vmem:[%s2776 + $0x8] sm:$0xf]
      %v2780 = vld [vmem:[%s2776 + $0xc] sm:$0xf]
      %v2789 = vunpack.c.l.b16 %v2431
      %v2790 = vunpack.c.l.b16 %v2432
      %v2791 = vunpack.c.l.b16 %v2433
      %v2792 = vunpack.c.l.b16 %v2434
      %v2793 = vunpack.c.l.b16 %v2435
      %v2794 = vunpack.c.l.b16 %v2436
      %v2795 = vunpack.c.l.b16 %v2437
      %v2796 = vunpack.c.l.b16 %v2438
      %v2797 = vpack.c.b16 %v2790, %v2789
      %v2798 = vpack.c.b16 %v2792, %v2791
      %v2799 = vpack.c.b16 %v2794, %v2793
      %v2800 = vpack.c.b16 %v2796, %v2795
      %v2805 = vunpack.c.l.b16 %v2777
      %v2806 = vunpack.c.l.b16 %v2778
      %v2807 = vunpack.c.l.b16 %v2779
      %v2808 = vunpack.c.l.b16 %v2780
      %v2809 = vpack.c.b16 %v2806, %v2805
      %v2810 = vpack.c.b16 %v2808, %v2807
      %v2814 = vsel %vm742, %v2797, 0
      %v2817 = vsel %vm742, %v2798, 0
      %v2820 = vsel %vm742, %v2799, 0
      %v2823 = vsel %vm742, %v2800, 0
      %2825 = vmatpush.bf16.msra.mxu0 0
      %2826 = vmatpush.bf16.msra.mxu0 0
      %2827 = vmatpush.bf16.msra.mxu0 0
      %2828 = vmatpush.bf16.msra.mxu0 0
      %2829 = vmatpush.bf16.msra.mxu0 0
      %2830 = vmatpush.bf16.msra.mxu0 0
      %2831 = vmatpush.bf16.msra.mxu0 %v2810
      %2832 = vmatpush.bf16.msra.mxu0 %v2809
      %2833 = vmatmul.bf16.gmra.mxu0 %v2814
      %v2834 = vpop.f32.mrf.mxu0
      %v2835 = vadd.f32 0.0, %v2834
      %v2836 = vpop.f32.mrf.mxu0
      %v2837 = vadd.f32 0.0, %v2836
      %2838 = vmatmul.bf16.gmra.mxu0 %v2817
      %v2839 = vpop.f32.mrf.mxu0
      %v2840 = vadd.f32 0.0, %v2839
      %v2841 = vpop.f32.mrf.mxu0
      %v2842 = vadd.f32 0.0, %v2841
      %2843 = vmatmul.bf16.gmra.mxu0 %v2820
      %v2844 = vpop.f32.mrf.mxu0
      %v2845 = vadd.f32 0.0, %v2844
      %v2846 = vpop.f32.mrf.mxu0
      %v2847 = vadd.f32 0.0, %v2846
      %2848 = vmatmul.bf16.gmra.mxu0 %v2823
      %v2849 = vpop.f32.mrf.mxu0
      %v2850 = vadd.f32 0.0, %v2849
      %v2851 = vpop.f32.mrf.mxu0
      %v2852 = vadd.f32 0.0, %v2851
      %2853 = vdwg.mxu0
      %v2854 = vadd.f32 %v2768, %v2835
      %v2855 = vadd.f32 %v2769, %v2837
      %v2856 = vadd.f32 %v2770, %v2840
      %v2857 = vadd.f32 %v2771, %v2842
      %v2858 = vadd.f32 %v2772, %v2845
      %v2859 = vadd.f32 %v2773, %v2847
      %v2860 = vadd.f32 %v2774, %v2850
      %v2861 = vadd.f32 %v2775, %v2852
      %s2862 = scalar_lea.vmem %s3, 64
      %v2863 = vld [vmem:[%s2862] sm:$0xf]
      %v2864 = vld [vmem:[%s2862 + $0x4] sm:$0xf]
      %v2865 = vld [vmem:[%s2862 + $0x8] sm:$0xf]
      %v2866 = vld [vmem:[%s2862 + $0xc] sm:$0xf]
      %v2875 = vunpack.c.l.b16 %v2439
      %v2876 = vunpack.c.l.b16 %v2440
      %v2877 = vunpack.c.l.b16 %v2441
      %v2878 = vunpack.c.l.b16 %v2442
      %v2879 = vunpack.c.l.b16 %v2443
      %v2880 = vunpack.c.l.b16 %v2444
      %v2881 = vunpack.c.l.b16 %v2445
      %v2882 = vunpack.c.l.b16 %v2446
      %v2883 = vpack.c.b16 %v2876, %v2875
      %v2884 = vpack.c.b16 %v2878, %v2877
      %v2885 = vpack.c.b16 %v2880, %v2879
      %v2886 = vpack.c.b16 %v2882, %v2881
      %v2891 = vunpack.c.l.b16 %v2863
      %v2892 = vunpack.c.l.b16 %v2864
      %v2893 = vunpack.c.l.b16 %v2865
      %v2894 = vunpack.c.l.b16 %v2866
      %v2895 = vpack.c.b16 %v2892, %v2891
      %v2896 = vpack.c.b16 %v2894, %v2893
      %v2900 = vsel %vm742, %v2883, 0
      %v2903 = vsel %vm742, %v2884, 0
      %v2906 = vsel %vm742, %v2885, 0
      %v2909 = vsel %vm742, %v2886, 0
      %2911 = vmatpush.bf16.msra.mxu0 0
      %2912 = vmatpush.bf16.msra.mxu0 0
      %2913 = vmatpush.bf16.msra.mxu0 0
      %2914 = vmatpush.bf16.msra.mxu0 0
      %2915 = vmatpush.bf16.msra.mxu0 0
      %2916 = vmatpush.bf16.msra.mxu0 0
      %2917 = vmatpush.bf16.msra.mxu0 %v2896
      %2918 = vmatpush.bf16.msra.mxu0 %v2895
      %2919 = vmatmul.bf16.gmra.mxu0 %v2900
      %v2920 = vpop.f32.mrf.mxu0
      %v2921 = vadd.f32 0.0, %v2920
      %v2922 = vpop.f32.mrf.mxu0
      %v2923 = vadd.f32 0.0, %v2922
      %2924 = vmatmul.bf16.gmra.mxu0 %v2903
      %v2925 = vpop.f32.mrf.mxu0
      %v2926 = vadd.f32 0.0, %v2925
      %v2927 = vpop.f32.mrf.mxu0
      %v2928 = vadd.f32 0.0, %v2927
      %2929 = vmatmul.bf16.gmra.mxu0 %v2906
      %v2930 = vpop.f32.mrf.mxu0
      %v2931 = vadd.f32 0.0, %v2930
      %v2932 = vpop.f32.mrf.mxu0
      %v2933 = vadd.f32 0.0, %v2932
      %2934 = vmatmul.bf16.gmra.mxu0 %v2909
      %v2935 = vpop.f32.mrf.mxu0
      %v2936 = vadd.f32 0.0, %v2935
      %v2937 = vpop.f32.mrf.mxu0
      %v2938 = vadd.f32 0.0, %v2937
      %2939 = vdwg.mxu0
      %v2940 = vadd.f32 %v2854, %v2921
      %v2941 = vadd.f32 %v2855, %v2923
      %v2942 = vadd.f32 %v2856, %v2926
      %v2943 = vadd.f32 %v2857, %v2928
      %v2944 = vadd.f32 %v2858, %v2931
      %v2945 = vadd.f32 %v2859, %v2933
      %v2946 = vadd.f32 %v2860, %v2936
      %v2947 = vadd.f32 %v2861, %v2938
      %s2948 = scalar_lea.vmem %s3, 80
      %v2949 = vld [vmem:[%s2948] sm:$0xf]
      %v2950 = vld [vmem:[%s2948 + $0x4] sm:$0xf]
      %v2951 = vld [vmem:[%s2948 + $0x8] sm:$0xf]
      %v2952 = vld [vmem:[%s2948 + $0xc] sm:$0xf]
      %v2961 = vunpack.c.l.b16 %v2447
      %v2962 = vunpack.c.l.b16 %v2448
      %v2963 = vunpack.c.l.b16 %v2449
      %v2964 = vunpack.c.l.b16 %v2450
      %v2965 = vunpack.c.l.b16 %v2451
      %v2966 = vunpack.c.l.b16 %v2452
      %v2967 = vunpack.c.l.b16 %v2453
      %v2968 = vunpack.c.l.b16 %v2454
      %v2969 = vpack.c.b16 %v2962, %v2961
      %v2970 = vpack.c.b16 %v2964, %v2963
      %v2971 = vpack.c.b16 %v2966, %v2965
      %v2972 = vpack.c.b16 %v2968, %v2967
      %v2977 = vunpack.c.l.b16 %v2949
      %v2978 = vunpack.c.l.b16 %v2950
      %v2979 = vunpack.c.l.b16 %v2951
      %v2980 = vunpack.c.l.b16 %v2952
      %v2981 = vpack.c.b16 %v2978, %v2977
      %v2982 = vpack.c.b16 %v2980, %v2979
      %v2986 = vsel %vm742, %v2969, 0
      %v2989 = vsel %vm742, %v2970, 0
      %v2992 = vsel %vm742, %v2971, 0
      %v2995 = vsel %vm742, %v2972, 0
      %2997 = vmatpush.bf16.msra.mxu0 0
      %2998 = vmatpush.bf16.msra.mxu0 0
      %2999 = vmatpush.bf16.msra.mxu0 0
      %3000 = vmatpush.bf16.msra.mxu0 0
      %3001 = vmatpush.bf16.msra.mxu0 0
      %3002 = vmatpush.bf16.msra.mxu0 0
      %3003 = vmatpush.bf16.msra.mxu0 %v2982
      %3004 = vmatpush.bf16.msra.mxu0 %v2981
      %3005 = vmatmul.bf16.gmra.mxu0 %v2986
      %v3006 = vpop.f32.mrf.mxu0
      %v3007 = vadd.f32 0.0, %v3006
      %v3008 = vpop.f32.mrf.mxu0
      %v3009 = vadd.f32 0.0, %v3008
      %3010 = vmatmul.bf16.gmra.mxu0 %v2989
      %v3011 = vpop.f32.mrf.mxu0
      %v3012 = vadd.f32 0.0, %v3011
      %v3013 = vpop.f32.mrf.mxu0
      %v3014 = vadd.f32 0.0, %v3013
      %3015 = vmatmul.bf16.gmra.mxu0 %v2992
      %v3016 = vpop.f32.mrf.mxu0
      %v3017 = vadd.f32 0.0, %v3016
      %v3018 = vpop.f32.mrf.mxu0
      %v3019 = vadd.f32 0.0, %v3018
      %3020 = vmatmul.bf16.gmra.mxu0 %v2995
      %v3021 = vpop.f32.mrf.mxu0
      %v3022 = vadd.f32 0.0, %v3021
      %v3023 = vpop.f32.mrf.mxu0
      %v3024 = vadd.f32 0.0, %v3023
      %3025 = vdwg.mxu0
      %v3026 = vadd.f32 %v2940, %v3007
      %v3027 = vadd.f32 %v2941, %v3009
      %v3028 = vadd.f32 %v2942, %v3012
      %v3029 = vadd.f32 %v2943, %v3014
      %v3030 = vadd.f32 %v2944, %v3017
      %v3031 = vadd.f32 %v2945, %v3019
      %v3032 = vadd.f32 %v2946, %v3022
      %v3033 = vadd.f32 %v2947, %v3024
      %s3034 = scalar_lea.vmem %s3, 96
      %v3035 = vld [vmem:[%s3034] sm:$0xf]
      %v3036 = vld [vmem:[%s3034 + $0x4] sm:$0xf]
      %v3037 = vld [vmem:[%s3034 + $0x8] sm:$0xf]
      %v3038 = vld [vmem:[%s3034 + $0xc] sm:$0xf]
      %v3047 = vunpack.c.l.b16 %v2455
      %v3048 = vunpack.c.l.b16 %v2456
      %v3049 = vunpack.c.l.b16 %v2457
      %v3050 = vunpack.c.l.b16 %v2458
      %v3051 = vunpack.c.l.b16 %v2459
      %v3052 = vunpack.c.l.b16 %v2460
      %v3053 = vunpack.c.l.b16 %v2461
      %v3054 = vunpack.c.l.b16 %v2462
      %v3055 = vpack.c.b16 %v3048, %v3047
      %v3056 = vpack.c.b16 %v3050, %v3049
      %v3057 = vpack.c.b16 %v3052, %v3051
      %v3058 = vpack.c.b16 %v3054, %v3053
      %v3063 = vunpack.c.l.b16 %v3035
      %v3064 = vunpack.c.l.b16 %v3036
      %v3065 = vunpack.c.l.b16 %v3037
      %v3066 = vunpack.c.l.b16 %v3038
      %v3067 = vpack.c.b16 %v3064, %v3063
      %v3068 = vpack.c.b16 %v3066, %v3065
      %v3072 = vsel %vm742, %v3055, 0
      %v3075 = vsel %vm742, %v3056, 0
      %v3078 = vsel %vm742, %v3057, 0
      %v3081 = vsel %vm742, %v3058, 0
      %3083 = vmatpush.bf16.msra.mxu0 0
      %3084 = vmatpush.bf16.msra.mxu0 0
      %3085 = vmatpush.bf16.msra.mxu0 0
      %3086 = vmatpush.bf16.msra.mxu0 0
      %3087 = vmatpush.bf16.msra.mxu0 0
      %3088 = vmatpush.bf16.msra.mxu0 0
      %3089 = vmatpush.bf16.msra.mxu0 %v3068
      %3090 = vmatpush.bf16.msra.mxu0 %v3067
      %3091 = vmatmul.bf16.gmra.mxu0 %v3072
      %v3092 = vpop.f32.mrf.mxu0
      %v3093 = vadd.f32 0.0, %v3092
      %v3094 = vpop.f32.mrf.mxu0
      %v3095 = vadd.f32 0.0, %v3094
      %3096 = vmatmul.bf16.gmra.mxu0 %v3075
      %v3097 = vpop.f32.mrf.mxu0
      %v3098 = vadd.f32 0.0, %v3097
      %v3099 = vpop.f32.mrf.mxu0
      %v3100 = vadd.f32 0.0, %v3099
      %3101 = vmatmul.bf16.gmra.mxu0 %v3078
      %v3102 = vpop.f32.mrf.mxu0
      %v3103 = vadd.f32 0.0, %v3102
      %v3104 = vpop.f32.mrf.mxu0
      %v3105 = vadd.f32 0.0, %v3104
      %3106 = vmatmul.bf16.gmra.mxu0 %v3081
      %v3107 = vpop.f32.mrf.mxu0
      %v3108 = vadd.f32 0.0, %v3107
      %v3109 = vpop.f32.mrf.mxu0
      %v3110 = vadd.f32 0.0, %v3109
      %3111 = vdwg.mxu0
      %v3112 = vadd.f32 %v3026, %v3093
      %v3113 = vadd.f32 %v3027, %v3095
      %v3114 = vadd.f32 %v3028, %v3098
      %v3115 = vadd.f32 %v3029, %v3100
      %v3116 = vadd.f32 %v3030, %v3103
      %v3117 = vadd.f32 %v3031, %v3105
      %v3118 = vadd.f32 %v3032, %v3108
      %v3119 = vadd.f32 %v3033, %v3110
      %s3120 = scalar_lea.vmem %s3, 112
      %v3121 = vld [vmem:[%s3120] sm:$0xf]
      %v3122 = vld [vmem:[%s3120 + $0x4] sm:$0xf]
      %v3123 = vld [vmem:[%s3120 + $0x8] sm:$0xf]
      %v3124 = vld [vmem:[%s3120 + $0xc] sm:$0xf]
      %v3133 = vunpack.c.l.b16 %v2463
      %v3134 = vunpack.c.l.b16 %v2464
      %v3135 = vunpack.c.l.b16 %v2465
      %v3136 = vunpack.c.l.b16 %v2466
      %v3137 = vunpack.c.l.b16 %v2467
      %v3138 = vunpack.c.l.b16 %v2468
      %v3139 = vunpack.c.l.b16 %v2469
      %v3140 = vunpack.c.l.b16 %v2470
      %v3141 = vpack.c.b16 %v3134, %v3133
      %v3142 = vpack.c.b16 %v3136, %v3135
      %v3143 = vpack.c.b16 %v3138, %v3137
      %v3144 = vpack.c.b16 %v3140, %v3139
      %v3149 = vunpack.c.l.b16 %v3121
      %v3150 = vunpack.c.l.b16 %v3122
      %v3151 = vunpack.c.l.b16 %v3123
      %v3152 = vunpack.c.l.b16 %v3124
      %v3153 = vpack.c.b16 %v3150, %v3149
      %v3154 = vpack.c.b16 %v3152, %v3151
      %v3158 = vsel %vm742, %v3141, 0
      %v3161 = vsel %vm742, %v3142, 0
      %v3164 = vsel %vm742, %v3143, 0
      %v3167 = vsel %vm742, %v3144, 0
      %3169 = vmatpush.bf16.msra.mxu0 0
      %3170 = vmatpush.bf16.msra.mxu0 0
      %3171 = vmatpush.bf16.msra.mxu0 0
      %3172 = vmatpush.bf16.msra.mxu0 0
      %3173 = vmatpush.bf16.msra.mxu0 0
      %3174 = vmatpush.bf16.msra.mxu0 0
      %3175 = vmatpush.bf16.msra.mxu0 %v3154
      %3176 = vmatpush.bf16.msra.mxu0 %v3153
      %3177 = vmatmul.bf16.gmra.mxu0 %v3158
      %v3178 = vpop.f32.mrf.mxu0
      %v3179 = vadd.f32 0.0, %v3178
      %v3180 = vpop.f32.mrf.mxu0
      %v3181 = vadd.f32 0.0, %v3180
      %3182 = vmatmul.bf16.gmra.mxu0 %v3161
      %v3183 = vpop.f32.mrf.mxu0
      %v3184 = vadd.f32 0.0, %v3183
      %v3185 = vpop.f32.mrf.mxu0
      %v3186 = vadd.f32 0.0, %v3185
      %3187 = vmatmul.bf16.gmra.mxu0 %v3164
      %v3188 = vpop.f32.mrf.mxu0
      %v3189 = vadd.f32 0.0, %v3188
      %v3190 = vpop.f32.mrf.mxu0
      %v3191 = vadd.f32 0.0, %v3190
      %3192 = vmatmul.bf16.gmra.mxu0 %v3167
      %v3193 = vpop.f32.mrf.mxu0
      %v3194 = vadd.f32 0.0, %v3193
      %v3195 = vpop.f32.mrf.mxu0
      %v3196 = vadd.f32 0.0, %v3195
      %3197 = vdwg.mxu0
      %v3198 = vadd.f32 %v3112, %v3179
      %v3199 = vadd.f32 %v3113, %v3181
      %v3200 = vadd.f32 %v3114, %v3184
      %v3201 = vadd.f32 %v3115, %v3186
      %v3202 = vadd.f32 %v3116, %v3189
      %v3203 = vadd.f32 %v3117, %v3191
      %v3204 = vadd.f32 %v3118, %v3194
      %v3205 = vadd.f32 %v3119, %v3196
      %s3206 = scalar_lea.vmem %s3, 128
      %v3207 = vld [vmem:[%s3206] sm:$0xf]
      %v3208 = vld [vmem:[%s3206 + $0x4] sm:$0xf]
      %v3209 = vld [vmem:[%s3206 + $0x8] sm:$0xf]
      %v3210 = vld [vmem:[%s3206 + $0xc] sm:$0xf]
      %v3219 = vunpack.c.l.b16 %v2471
      %v3220 = vunpack.c.l.b16 %v2472
      %v3221 = vunpack.c.l.b16 %v2473
      %v3222 = vunpack.c.l.b16 %v2474
      %v3223 = vunpack.c.l.b16 %v2475
      %v3224 = vunpack.c.l.b16 %v2476
      %v3225 = vunpack.c.l.b16 %v2477
      %v3226 = vunpack.c.l.b16 %v2478
      %v3227 = vpack.c.b16 %v3220, %v3219
      %v3228 = vpack.c.b16 %v3222, %v3221
      %v3229 = vpack.c.b16 %v3224, %v3223
      %v3230 = vpack.c.b16 %v3226, %v3225
      %v3235 = vunpack.c.l.b16 %v3207
      %v3236 = vunpack.c.l.b16 %v3208
      %v3237 = vunpack.c.l.b16 %v3209
      %v3238 = vunpack.c.l.b16 %v3210
      %v3239 = vpack.c.b16 %v3236, %v3235
      %v3240 = vpack.c.b16 %v3238, %v3237
      %v3244 = vsel %vm742, %v3227, 0
      %v3247 = vsel %vm742, %v3228, 0
      %v3250 = vsel %vm742, %v3229, 0
      %v3253 = vsel %vm742, %v3230, 0
      %3255 = vmatpush.bf16.msra.mxu0 0
      %3256 = vmatpush.bf16.msra.mxu0 0
      %3257 = vmatpush.bf16.msra.mxu0 0
      %3258 = vmatpush.bf16.msra.mxu0 0
      %3259 = vmatpush.bf16.msra.mxu0 0
      %3260 = vmatpush.bf16.msra.mxu0 0
      %3261 = vmatpush.bf16.msra.mxu0 %v3240
      %3262 = vmatpush.bf16.msra.mxu0 %v3239
      %3263 = vmatmul.bf16.gmra.mxu0 %v3244
      %v3264 = vpop.f32.mrf.mxu0
      %v3265 = vadd.f32 0.0, %v3264
      %v3266 = vpop.f32.mrf.mxu0
      %v3267 = vadd.f32 0.0, %v3266
      %3268 = vmatmul.bf16.gmra.mxu0 %v3247
      %v3269 = vpop.f32.mrf.mxu0
      %v3270 = vadd.f32 0.0, %v3269
      %v3271 = vpop.f32.mrf.mxu0
      %v3272 = vadd.f32 0.0, %v3271
      %3273 = vmatmul.bf16.gmra.mxu0 %v3250
      %v3274 = vpop.f32.mrf.mxu0
      %v3275 = vadd.f32 0.0, %v3274
      %v3276 = vpop.f32.mrf.mxu0
      %v3277 = vadd.f32 0.0, %v3276
      %3278 = vmatmul.bf16.gmra.mxu0 %v3253
      %v3279 = vpop.f32.mrf.mxu0
      %v3280 = vadd.f32 0.0, %v3279
      %v3281 = vpop.f32.mrf.mxu0
      %v3282 = vadd.f32 0.0, %v3281
      %3283 = vdwg.mxu0
      %v3284 = vadd.f32 %v3198, %v3265
      %v3285 = vadd.f32 %v3199, %v3267
      %v3286 = vadd.f32 %v3200, %v3270
      %v3287 = vadd.f32 %v3201, %v3272
      %v3288 = vadd.f32 %v3202, %v3275
      %v3289 = vadd.f32 %v3203, %v3277
      %v3290 = vadd.f32 %v3204, %v3280
      %v3291 = vadd.f32 %v3205, %v3282
      %s3292 = scalar_lea.vmem %s3, 144
      %v3293 = vld [vmem:[%s3292] sm:$0xf]
      %v3294 = vld [vmem:[%s3292 + $0x4] sm:$0xf]
      %v3295 = vld [vmem:[%s3292 + $0x8] sm:$0xf]
      %v3296 = vld [vmem:[%s3292 + $0xc] sm:$0xf]
      %v3305 = vunpack.c.l.b16 %v2479
      %v3306 = vunpack.c.l.b16 %v2480
      %v3307 = vunpack.c.l.b16 %v2481
      %v3308 = vunpack.c.l.b16 %v2482
      %v3309 = vunpack.c.l.b16 %v2483
      %v3310 = vunpack.c.l.b16 %v2484
      %v3311 = vunpack.c.l.b16 %v2485
      %v3312 = vunpack.c.l.b16 %v2486
      %v3313 = vpack.c.b16 %v3306, %v3305
      %v3314 = vpack.c.b16 %v3308, %v3307
      %v3315 = vpack.c.b16 %v3310, %v3309
      %v3316 = vpack.c.b16 %v3312, %v3311
      %v3321 = vunpack.c.l.b16 %v3293
      %v3322 = vunpack.c.l.b16 %v3294
      %v3323 = vunpack.c.l.b16 %v3295
      %v3324 = vunpack.c.l.b16 %v3296
      %v3325 = vpack.c.b16 %v3322, %v3321
      %v3326 = vpack.c.b16 %v3324, %v3323
      %v3330 = vsel %vm742, %v3313, 0
      %v3333 = vsel %vm742, %v3314, 0
      %v3336 = vsel %vm742, %v3315, 0
      %v3339 = vsel %vm742, %v3316, 0
      %3341 = vmatpush.bf16.msra.mxu0 0
      %3342 = vmatpush.bf16.msra.mxu0 0
      %3343 = vmatpush.bf16.msra.mxu0 0
      %3344 = vmatpush.bf16.msra.mxu0 0
      %3345 = vmatpush.bf16.msra.mxu0 0
      %3346 = vmatpush.bf16.msra.mxu0 0
      %3347 = vmatpush.bf16.msra.mxu0 %v3326
      %3348 = vmatpush.bf16.msra.mxu0 %v3325
      %3349 = vmatmul.bf16.gmra.mxu0 %v3330
      %v3350 = vpop.f32.mrf.mxu0
      %v3351 = vadd.f32 0.0, %v3350
      %v3352 = vpop.f32.mrf.mxu0
      %v3353 = vadd.f32 0.0, %v3352
      %3354 = vmatmul.bf16.gmra.mxu0 %v3333
      %v3355 = vpop.f32.mrf.mxu0
      %v3356 = vadd.f32 0.0, %v3355
      %v3357 = vpop.f32.mrf.mxu0
      %v3358 = vadd.f32 0.0, %v3357
      %3359 = vmatmul.bf16.gmra.mxu0 %v3336
      %v3360 = vpop.f32.mrf.mxu0
      %v3361 = vadd.f32 0.0, %v3360
      %v3362 = vpop.f32.mrf.mxu0
      %v3363 = vadd.f32 0.0, %v3362
      %3364 = vmatmul.bf16.gmra.mxu0 %v3339
      %v3365 = vpop.f32.mrf.mxu0
      %v3366 = vadd.f32 0.0, %v3365
      %v3367 = vpop.f32.mrf.mxu0
      %v3368 = vadd.f32 0.0, %v3367
      %3369 = vdwg.mxu0
      %v3370 = vadd.f32 %v3284, %v3351
      %v3371 = vadd.f32 %v3285, %v3353
      %v3372 = vadd.f32 %v3286, %v3356
      %v3373 = vadd.f32 %v3287, %v3358
      %v3374 = vadd.f32 %v3288, %v3361
      %v3375 = vadd.f32 %v3289, %v3363
      %v3376 = vadd.f32 %v3290, %v3366
      %v3377 = vadd.f32 %v3291, %v3368
      %s3378 = scalar_lea.vmem %s3, 160
      %v3379 = vld [vmem:[%s3378] sm:$0xf]
      %v3380 = vld [vmem:[%s3378 + $0x4] sm:$0xf]
      %v3381 = vld [vmem:[%s3378 + $0x8] sm:$0xf]
      %v3382 = vld [vmem:[%s3378 + $0xc] sm:$0xf]
      %v3391 = vunpack.c.l.b16 %v2487
      %v3392 = vunpack.c.l.b16 %v2488
      %v3393 = vunpack.c.l.b16 %v2489
      %v3394 = vunpack.c.l.b16 %v2490
      %v3395 = vunpack.c.l.b16 %v2491
      %v3396 = vunpack.c.l.b16 %v2492
      %v3397 = vunpack.c.l.b16 %v2493
      %v3398 = vunpack.c.l.b16 %v2494
      %v3399 = vpack.c.b16 %v3392, %v3391
      %v3400 = vpack.c.b16 %v3394, %v3393
      %v3401 = vpack.c.b16 %v3396, %v3395
      %v3402 = vpack.c.b16 %v3398, %v3397
      %v3407 = vunpack.c.l.b16 %v3379
      %v3408 = vunpack.c.l.b16 %v3380
      %v3409 = vunpack.c.l.b16 %v3381
      %v3410 = vunpack.c.l.b16 %v3382
      %v3411 = vpack.c.b16 %v3408, %v3407
      %v3412 = vpack.c.b16 %v3410, %v3409
      %v3416 = vsel %vm742, %v3399, 0
      %v3419 = vsel %vm742, %v3400, 0
      %v3422 = vsel %vm742, %v3401, 0
      %v3425 = vsel %vm742, %v3402, 0
      %3427 = vmatpush.bf16.msra.mxu0 0
      %3428 = vmatpush.bf16.msra.mxu0 0
      %3429 = vmatpush.bf16.msra.mxu0 0
      %3430 = vmatpush.bf16.msra.mxu0 0
      %3431 = vmatpush.bf16.msra.mxu0 0
      %3432 = vmatpush.bf16.msra.mxu0 0
      %3433 = vmatpush.bf16.msra.mxu0 %v3412
      %3434 = vmatpush.bf16.msra.mxu0 %v3411
      %3435 = vmatmul.bf16.gmra.mxu0 %v3416
      %v3436 = vpop.f32.mrf.mxu0
      %v3437 = vadd.f32 0.0, %v3436
      %v3438 = vpop.f32.mrf.mxu0
      %v3439 = vadd.f32 0.0, %v3438
      %3440 = vmatmul.bf16.gmra.mxu0 %v3419
      %v3441 = vpop.f32.mrf.mxu0
      %v3442 = vadd.f32 0.0, %v3441
      %v3443 = vpop.f32.mrf.mxu0
      %v3444 = vadd.f32 0.0, %v3443
      %3445 = vmatmul.bf16.gmra.mxu0 %v3422
      %v3446 = vpop.f32.mrf.mxu0
      %v3447 = vadd.f32 0.0, %v3446
      %v3448 = vpop.f32.mrf.mxu0
      %v3449 = vadd.f32 0.0, %v3448
      %3450 = vmatmul.bf16.gmra.mxu0 %v3425
      %v3451 = vpop.f32.mrf.mxu0
      %v3452 = vadd.f32 0.0, %v3451
      %v3453 = vpop.f32.mrf.mxu0
      %v3454 = vadd.f32 0.0, %v3453
      %3455 = vdwg.mxu0
      %v3456 = vadd.f32 %v3370, %v3437
      %v3457 = vadd.f32 %v3371, %v3439
      %v3458 = vadd.f32 %v3372, %v3442
      %v3459 = vadd.f32 %v3373, %v3444
      %v3460 = vadd.f32 %v3374, %v3447
      %v3461 = vadd.f32 %v3375, %v3449
      %v3462 = vadd.f32 %v3376, %v3452
      %v3463 = vadd.f32 %v3377, %v3454
      %s3464 = scalar_lea.vmem %s3, 176
      %v3465 = vld [vmem:[%s3464] sm:$0xf]
      %v3466 = vld [vmem:[%s3464 + $0x4] sm:$0xf]
      %v3467 = vld [vmem:[%s3464 + $0x8] sm:$0xf]
      %v3468 = vld [vmem:[%s3464 + $0xc] sm:$0xf]
      %v3477 = vunpack.c.l.b16 %v2495
      %v3478 = vunpack.c.l.b16 %v2496
      %v3479 = vunpack.c.l.b16 %v2497
      %v3480 = vunpack.c.l.b16 %v2498
      %v3481 = vunpack.c.l.b16 %v2499
      %v3482 = vunpack.c.l.b16 %v2500
      %v3483 = vunpack.c.l.b16 %v2501
      %v3484 = vunpack.c.l.b16 %v2502
      %v3485 = vpack.c.b16 %v3478, %v3477
      %v3486 = vpack.c.b16 %v3480, %v3479
      %v3487 = vpack.c.b16 %v3482, %v3481
      %v3488 = vpack.c.b16 %v3484, %v3483
      %v3493 = vunpack.c.l.b16 %v3465
      %v3494 = vunpack.c.l.b16 %v3466
      %v3495 = vunpack.c.l.b16 %v3467
      %v3496 = vunpack.c.l.b16 %v3468
      %v3497 = vpack.c.b16 %v3494, %v3493
      %v3498 = vpack.c.b16 %v3496, %v3495
      %v3502 = vsel %vm742, %v3485, 0
      %v3505 = vsel %vm742, %v3486, 0
      %v3508 = vsel %vm742, %v3487, 0
      %v3511 = vsel %vm742, %v3488, 0
      %3513 = vmatpush.bf16.msra.mxu0 0
      %3514 = vmatpush.bf16.msra.mxu0 0
      %3515 = vmatpush.bf16.msra.mxu0 0
      %3516 = vmatpush.bf16.msra.mxu0 0
      %3517 = vmatpush.bf16.msra.mxu0 0
      %3518 = vmatpush.bf16.msra.mxu0 0
      %3519 = vmatpush.bf16.msra.mxu0 %v3498
      %3520 = vmatpush.bf16.msra.mxu0 %v3497
      %3521 = vmatmul.bf16.gmra.mxu0 %v3502
      %v3522 = vpop.f32.mrf.mxu0
      %v3523 = vadd.f32 0.0, %v3522
      %v3524 = vpop.f32.mrf.mxu0
      %v3525 = vadd.f32 0.0, %v3524
      %3526 = vmatmul.bf16.gmra.mxu0 %v3505
      %v3527 = vpop.f32.mrf.mxu0
      %v3528 = vadd.f32 0.0, %v3527
      %v3529 = vpop.f32.mrf.mxu0
      %v3530 = vadd.f32 0.0, %v3529
      %3531 = vmatmul.bf16.gmra.mxu0 %v3508
      %v3532 = vpop.f32.mrf.mxu0
      %v3533 = vadd.f32 0.0, %v3532
      %v3534 = vpop.f32.mrf.mxu0
      %v3535 = vadd.f32 0.0, %v3534
      %3536 = vmatmul.bf16.gmra.mxu0 %v3511
      %v3537 = vpop.f32.mrf.mxu0
      %v3538 = vadd.f32 0.0, %v3537
      %v3539 = vpop.f32.mrf.mxu0
      %v3540 = vadd.f32 0.0, %v3539
      %3541 = vdwg.mxu0
      %v3542 = vadd.f32 %v3456, %v3523
      %v3543 = vadd.f32 %v3457, %v3525
      %v3544 = vadd.f32 %v3458, %v3528
      %v3545 = vadd.f32 %v3459, %v3530
      %v3546 = vadd.f32 %v3460, %v3533
      %v3547 = vadd.f32 %v3461, %v3535
      %v3548 = vadd.f32 %v3462, %v3538
      %v3549 = vadd.f32 %v3463, %v3540
      %s3550 = scalar_lea.vmem %s3, 192
      %v3551 = vld [vmem:[%s3550] sm:$0xf]
      %v3552 = vld [vmem:[%s3550 + $0x4] sm:$0xf]
      %v3553 = vld [vmem:[%s3550 + $0x8] sm:$0xf]
      %v3554 = vld [vmem:[%s3550 + $0xc] sm:$0xf]
      %v3563 = vunpack.c.l.b16 %v2503
      %v3564 = vunpack.c.l.b16 %v2504
      %v3565 = vunpack.c.l.b16 %v2505
      %v3566 = vunpack.c.l.b16 %v2506
      %v3567 = vunpack.c.l.b16 %v2507
      %v3568 = vunpack.c.l.b16 %v2508
      %v3569 = vunpack.c.l.b16 %v2509
      %v3570 = vunpack.c.l.b16 %v2510
      %v3571 = vpack.c.b16 %v3564, %v3563
      %v3572 = vpack.c.b16 %v3566, %v3565
      %v3573 = vpack.c.b16 %v3568, %v3567
      %v3574 = vpack.c.b16 %v3570, %v3569
      %v3579 = vunpack.c.l.b16 %v3551
      %v3580 = vunpack.c.l.b16 %v3552
      %v3581 = vunpack.c.l.b16 %v3553
      %v3582 = vunpack.c.l.b16 %v3554
      %v3583 = vpack.c.b16 %v3580, %v3579
      %v3584 = vpack.c.b16 %v3582, %v3581
      %v3588 = vsel %vm742, %v3571, 0
      %v3591 = vsel %vm742, %v3572, 0
      %v3594 = vsel %vm742, %v3573, 0
      %v3597 = vsel %vm742, %v3574, 0
      %3599 = vmatpush.bf16.msra.mxu0 0
      %3600 = vmatpush.bf16.msra.mxu0 0
      %3601 = vmatpush.bf16.msra.mxu0 0
      %3602 = vmatpush.bf16.msra.mxu0 0
      %3603 = vmatpush.bf16.msra.mxu0 0
      %3604 = vmatpush.bf16.msra.mxu0 0
      %3605 = vmatpush.bf16.msra.mxu0 %v3584
      %3606 = vmatpush.bf16.msra.mxu0 %v3583
      %3607 = vmatmul.bf16.gmra.mxu0 %v3588
      %v3608 = vpop.f32.mrf.mxu0
      %v3609 = vadd.f32 0.0, %v3608
      %v3610 = vpop.f32.mrf.mxu0
      %v3611 = vadd.f32 0.0, %v3610
      %3612 = vmatmul.bf16.gmra.mxu0 %v3591
      %v3613 = vpop.f32.mrf.mxu0
      %v3614 = vadd.f32 0.0, %v3613
      %v3615 = vpop.f32.mrf.mxu0
      %v3616 = vadd.f32 0.0, %v3615
      %3617 = vmatmul.bf16.gmra.mxu0 %v3594
      %v3618 = vpop.f32.mrf.mxu0
      %v3619 = vadd.f32 0.0, %v3618
      %v3620 = vpop.f32.mrf.mxu0
      %v3621 = vadd.f32 0.0, %v3620
      %3622 = vmatmul.bf16.gmra.mxu0 %v3597
      %v3623 = vpop.f32.mrf.mxu0
      %v3624 = vadd.f32 0.0, %v3623
      %v3625 = vpop.f32.mrf.mxu0
      %v3626 = vadd.f32 0.0, %v3625
      %3627 = vdwg.mxu0
      %v3628 = vadd.f32 %v3542, %v3609
      %v3629 = vadd.f32 %v3543, %v3611
      %v3630 = vadd.f32 %v3544, %v3614
      %v3631 = vadd.f32 %v3545, %v3616
      %v3632 = vadd.f32 %v3546, %v3619
      %v3633 = vadd.f32 %v3547, %v3621
      %v3634 = vadd.f32 %v3548, %v3624
      %v3635 = vadd.f32 %v3549, %v3626
      %s3636 = scalar_lea.vmem %s3, 208
      %v3637 = vld [vmem:[%s3636] sm:$0xf]
      %v3638 = vld [vmem:[%s3636 + $0x4] sm:$0xf]
      %v3639 = vld [vmem:[%s3636 + $0x8] sm:$0xf]
      %v3640 = vld [vmem:[%s3636 + $0xc] sm:$0xf]
      %v3649 = vunpack.c.l.b16 %v2511
      %v3650 = vunpack.c.l.b16 %v2512
      %v3651 = vunpack.c.l.b16 %v2513
      %v3652 = vunpack.c.l.b16 %v2514
      %v3653 = vunpack.c.l.b16 %v2515
      %v3654 = vunpack.c.l.b16 %v2516
      %v3655 = vunpack.c.l.b16 %v2517
      %v3656 = vunpack.c.l.b16 %v2518
      %v3657 = vpack.c.b16 %v3650, %v3649
      %v3658 = vpack.c.b16 %v3652, %v3651
      %v3659 = vpack.c.b16 %v3654, %v3653
      %v3660 = vpack.c.b16 %v3656, %v3655
      %v3665 = vunpack.c.l.b16 %v3637
      %v3666 = vunpack.c.l.b16 %v3638
      %v3667 = vunpack.c.l.b16 %v3639
      %v3668 = vunpack.c.l.b16 %v3640
      %v3669 = vpack.c.b16 %v3666, %v3665
      %v3670 = vpack.c.b16 %v3668, %v3667
      %v3674 = vsel %vm742, %v3657, 0
      %v3677 = vsel %vm742, %v3658, 0
      %v3680 = vsel %vm742, %v3659, 0
      %v3683 = vsel %vm742, %v3660, 0
      %3685 = vmatpush.bf16.msra.mxu0 0
      %3686 = vmatpush.bf16.msra.mxu0 0
      %3687 = vmatpush.bf16.msra.mxu0 0
      %3688 = vmatpush.bf16.msra.mxu0 0
      %3689 = vmatpush.bf16.msra.mxu0 0
      %3690 = vmatpush.bf16.msra.mxu0 0
      %3691 = vmatpush.bf16.msra.mxu0 %v3670
      %3692 = vmatpush.bf16.msra.mxu0 %v3669
      %3693 = vmatmul.bf16.gmra.mxu0 %v3674
      %v3694 = vpop.f32.mrf.mxu0
      %v3695 = vadd.f32 0.0, %v3694
      %v3696 = vpop.f32.mrf.mxu0
      %v3697 = vadd.f32 0.0, %v3696
      %3698 = vmatmul.bf16.gmra.mxu0 %v3677
      %v3699 = vpop.f32.mrf.mxu0
      %v3700 = vadd.f32 0.0, %v3699
      %v3701 = vpop.f32.mrf.mxu0
      %v3702 = vadd.f32 0.0, %v3701
      %3703 = vmatmul.bf16.gmra.mxu0 %v3680
      %v3704 = vpop.f32.mrf.mxu0
      %v3705 = vadd.f32 0.0, %v3704
      %v3706 = vpop.f32.mrf.mxu0
      %v3707 = vadd.f32 0.0, %v3706
      %3708 = vmatmul.bf16.gmra.mxu0 %v3683
      %v3709 = vpop.f32.mrf.mxu0
      %v3710 = vadd.f32 0.0, %v3709
      %v3711 = vpop.f32.mrf.mxu0
      %v3712 = vadd.f32 0.0, %v3711
      %3713 = vdwg.mxu0
      %v3714 = vadd.f32 %v3628, %v3695
      %v3715 = vadd.f32 %v3629, %v3697
      %v3716 = vadd.f32 %v3630, %v3700
      %v3717 = vadd.f32 %v3631, %v3702
      %v3718 = vadd.f32 %v3632, %v3705
      %v3719 = vadd.f32 %v3633, %v3707
      %v3720 = vadd.f32 %v3634, %v3710
      %v3721 = vadd.f32 %v3635, %v3712
      %s3722 = scalar_lea.vmem %s3, 224
      %v3723 = vld [vmem:[%s3722] sm:$0xf]
      %v3724 = vld [vmem:[%s3722 + $0x4] sm:$0xf]
      %v3725 = vld [vmem:[%s3722 + $0x8] sm:$0xf]
      %v3726 = vld [vmem:[%s3722 + $0xc] sm:$0xf]
      %v3735 = vunpack.c.l.b16 %v2519
      %v3736 = vunpack.c.l.b16 %v2520
      %v3737 = vunpack.c.l.b16 %v2521
      %v3738 = vunpack.c.l.b16 %v2522
      %v3739 = vunpack.c.l.b16 %v2523
      %v3740 = vunpack.c.l.b16 %v2524
      %v3741 = vunpack.c.l.b16 %v2525
      %v3742 = vunpack.c.l.b16 %v2526
      %v3743 = vpack.c.b16 %v3736, %v3735
      %v3744 = vpack.c.b16 %v3738, %v3737
      %v3745 = vpack.c.b16 %v3740, %v3739
      %v3746 = vpack.c.b16 %v3742, %v3741
      %v3751 = vunpack.c.l.b16 %v3723
      %v3752 = vunpack.c.l.b16 %v3724
      %v3753 = vunpack.c.l.b16 %v3725
      %v3754 = vunpack.c.l.b16 %v3726
      %v3755 = vpack.c.b16 %v3752, %v3751
      %v3756 = vpack.c.b16 %v3754, %v3753
      %v3760 = vsel %vm742, %v3743, 0
      %v3763 = vsel %vm742, %v3744, 0
      %v3766 = vsel %vm742, %v3745, 0
      %v3769 = vsel %vm742, %v3746, 0
      %3771 = vmatpush.bf16.msra.mxu0 0
      %3772 = vmatpush.bf16.msra.mxu0 0
      %3773 = vmatpush.bf16.msra.mxu0 0
      %3774 = vmatpush.bf16.msra.mxu0 0
      %3775 = vmatpush.bf16.msra.mxu0 0
      %3776 = vmatpush.bf16.msra.mxu0 0
      %3777 = vmatpush.bf16.msra.mxu0 %v3756
      %3778 = vmatpush.bf16.msra.mxu0 %v3755
      %3779 = vmatmul.bf16.gmra.mxu0 %v3760
      %v3780 = vpop.f32.mrf.mxu0
      %v3781 = vadd.f32 0.0, %v3780
      %v3782 = vpop.f32.mrf.mxu0
      %v3783 = vadd.f32 0.0, %v3782
      %3784 = vmatmul.bf16.gmra.mxu0 %v3763
      %v3785 = vpop.f32.mrf.mxu0
      %v3786 = vadd.f32 0.0, %v3785
      %v3787 = vpop.f32.mrf.mxu0
      %v3788 = vadd.f32 0.0, %v3787
      %3789 = vmatmul.bf16.gmra.mxu0 %v3766
      %v3790 = vpop.f32.mrf.mxu0
      %v3791 = vadd.f32 0.0, %v3790
      %v3792 = vpop.f32.mrf.mxu0
      %v3793 = vadd.f32 0.0, %v3792
      %3794 = vmatmul.bf16.gmra.mxu0 %v3769
      %v3795 = vpop.f32.mrf.mxu0
      %v3796 = vadd.f32 0.0, %v3795
      %v3797 = vpop.f32.mrf.mxu0
      %v3798 = vadd.f32 0.0, %v3797
      %3799 = vdwg.mxu0
      %v3800 = vadd.f32 %v3714, %v3781
      %v3801 = vadd.f32 %v3715, %v3783
      %v3802 = vadd.f32 %v3716, %v3786
      %v3803 = vadd.f32 %v3717, %v3788
      %v3804 = vadd.f32 %v3718, %v3791
      %v3805 = vadd.f32 %v3719, %v3793
      %v3806 = vadd.f32 %v3720, %v3796
      %v3807 = vadd.f32 %v3721, %v3798
      %s3808 = scalar_lea.vmem %s3, 240
      %v3809 = vld [vmem:[%s3808] sm:$0xf]
      %v3810 = vld [vmem:[%s3808 + $0x4] sm:$0xf]
      %v3811 = vld [vmem:[%s3808 + $0x8] sm:$0xf]
      %v3812 = vld [vmem:[%s3808 + $0xc] sm:$0xf]
      %v3821 = vunpack.c.l.b16 %v2527
      %v3822 = vunpack.c.l.b16 %v2528
      %v3823 = vunpack.c.l.b16 %v2529
      %v3824 = vunpack.c.l.b16 %v2530
      %v3825 = vunpack.c.l.b16 %v2531
      %v3826 = vunpack.c.l.b16 %v2532
      %v3827 = vunpack.c.l.b16 %v2533
      %v3828 = vunpack.c.l.b16 %v2534
      %v3829 = vpack.c.b16 %v3822, %v3821
      %v3830 = vpack.c.b16 %v3824, %v3823
      %v3831 = vpack.c.b16 %v3826, %v3825
      %v3832 = vpack.c.b16 %v3828, %v3827
      %v3837 = vunpack.c.l.b16 %v3809
      %v3838 = vunpack.c.l.b16 %v3810
      %v3839 = vunpack.c.l.b16 %v3811
      %v3840 = vunpack.c.l.b16 %v3812
      %v3841 = vpack.c.b16 %v3838, %v3837
      %v3842 = vpack.c.b16 %v3840, %v3839
      %v3846 = vsel %vm742, %v3829, 0
      %v3849 = vsel %vm742, %v3830, 0
      %v3852 = vsel %vm742, %v3831, 0
      %v3855 = vsel %vm742, %v3832, 0
      %3857 = vmatpush.bf16.msra.mxu0 0
      %3858 = vmatpush.bf16.msra.mxu0 0
      %3859 = vmatpush.bf16.msra.mxu0 0
      %3860 = vmatpush.bf16.msra.mxu0 0
      %3861 = vmatpush.bf16.msra.mxu0 0
      %3862 = vmatpush.bf16.msra.mxu0 0
      %3863 = vmatpush.bf16.msra.mxu0 %v3842
      %3864 = vmatpush.bf16.msra.mxu0 %v3841
      %3865 = vmatmul.bf16.gmra.mxu0 %v3846
      %v3866 = vpop.f32.mrf.mxu0
      %v3867 = vadd.f32 0.0, %v3866
      %v3868 = vpop.f32.mrf.mxu0
      %v3869 = vadd.f32 0.0, %v3868
      %3870 = vmatmul.bf16.gmra.mxu0 %v3849
      %v3871 = vpop.f32.mrf.mxu0
      %v3872 = vadd.f32 0.0, %v3871
      %v3873 = vpop.f32.mrf.mxu0
      %v3874 = vadd.f32 0.0, %v3873
      %3875 = vmatmul.bf16.gmra.mxu0 %v3852
      %v3876 = vpop.f32.mrf.mxu0
      %v3877 = vadd.f32 0.0, %v3876
      %v3878 = vpop.f32.mrf.mxu0
      %v3879 = vadd.f32 0.0, %v3878
      %3880 = vmatmul.bf16.gmra.mxu0 %v3855
      %v3881 = vpop.f32.mrf.mxu0
      %v3882 = vadd.f32 0.0, %v3881
      %v3883 = vpop.f32.mrf.mxu0
      %v3884 = vadd.f32 0.0, %v3883
      %3885 = vdwg.mxu0
      %v3886 = vadd.f32 %v3800, %v3867
      %v3887 = vadd.f32 %v3801, %v3869
      %v3888 = vadd.f32 %v3802, %v3872
      %v3889 = vadd.f32 %v3803, %v3874
      %v3890 = vadd.f32 %v3804, %v3877
      %v3891 = vadd.f32 %v3805, %v3879
      %v3892 = vadd.f32 %v3806, %v3882
      %v3893 = vadd.f32 %v3807, %v3884
      %vm3894 = vcmask 523264
      %v3895 = vsel %vm3894, %v3886, 0.0
      %v3896 = vsel %vm3894, %v3887, 0.0
      %v3897 = vadd.f32 %v3895, %v3896
      %v3898 = vsel %vm3894, %v3888, 0.0
      %v3899 = vadd.f32 %v3897, %v3898
      %v3900 = vsel %vm3894, %v3889, 0.0
      %v3901 = vadd.f32 %v3899, %v3900
      %v3902 = vsel %vm3894, %v3890, 0.0
      %v3903 = vadd.f32 %v3901, %v3902
      %v3904 = vsel %vm3894, %v3891, 0.0
      %v3905 = vadd.f32 %v3903, %v3904
      %v3906 = vsel %vm3894, %v3892, 0.0
      %v3907 = vadd.f32 %v3905, %v3906
      %v3908 = vsel %vm3894, %v3893, 0.0
      %v3909 = vadd.f32 %v3907, %v3908
      %v3910 = vrot.slane %v3909, 4
      %v3911 = vadd.f32 %v3909, %v3910
      %v3912 = vrot.slane %v3911, 2
      %v3913 = vadd.f32 %v3911, %v3912
      %v3914 = vrot.slane %v3913, 1
      %v3915 = vadd.f32 %v3913, %v3914
      %v3916 = vrcp.pop 64.0
      %v3917 = vmul.f32 64.0, %v3916
      %v3918 = vsub.f32 1.0, %v3917
      %v3919 = vmul.f32 %v3916, %v3918
      %v3920 = vadd.f32 %v3916, %v3919
      %vm3921 = vweird.f32 %v3916
      %v3922 = vsel %vm3921, %v3916, %v3920
      %v3923 = vmul.f32 %v3915, %v3922
      %v3924 = vsub.f32 %v3886, %v3923
      %v3925 = vsub.f32 %v3887, %v3923
      %v3926 = vsub.f32 %v3888, %v3923
      %v3927 = vsub.f32 %v3889, %v3923
      %v3928 = vsub.f32 %v3890, %v3923
      %v3929 = vsub.f32 %v3891, %v3923
      %v3930 = vsub.f32 %v3892, %v3923
      %v3931 = vsub.f32 %v3893, %v3923
      %v3932 = vmul.f32 %v3924, %v3924
      %v3933 = vmul.f32 %v3925, %v3925
      %v3934 = vmul.f32 %v3926, %v3926
      %v3935 = vmul.f32 %v3927, %v3927
      %v3936 = vmul.f32 %v3928, %v3928
      %v3937 = vmul.f32 %v3929, %v3929
      %v3938 = vmul.f32 %v3930, %v3930
      %v3939 = vmul.f32 %v3931, %v3931
      %v3940 = vsel %vm3894, %v3932, 0.0
      %v3941 = vsel %vm3894, %v3933, 0.0
      %v3942 = vadd.f32 %v3940, %v3941
      %v3943 = vsel %vm3894, %v3934, 0.0
      %v3944 = vadd.f32 %v3942, %v3943
      %v3945 = vsel %vm3894, %v3935, 0.0
      %v3946 = vadd.f32 %v3944, %v3945
      %v3947 = vsel %vm3894, %v3936, 0.0
      %v3948 = vadd.f32 %v3946, %v3947
      %v3949 = vsel %vm3894, %v3937, 0.0
      %v3950 = vadd.f32 %v3948, %v3949
      %v3951 = vsel %vm3894, %v3938, 0.0
      %v3952 = vadd.f32 %v3950, %v3951
      %v3953 = vsel %vm3894, %v3939, 0.0
      %v3954 = vadd.f32 %v3952, %v3953
      %v3955 = vrot.slane %v3954, 4
      %v3956 = vadd.f32 %v3954, %v3955
      %v3957 = vrot.slane %v3956, 2
      %v3958 = vadd.f32 %v3956, %v3957
      %v3959 = vrot.slane %v3958, 1
      %v3960 = vadd.f32 %v3958, %v3959
      %v3961 = vmul.f32 %v3960, %v3922
      %v3962 = vadd.f32 %v3961, 1e-05
      %v3963 = vrsqrt.pop %v3962
      %v3964 = vmul.f32 %v3963, %v3962
      %v3965 = vmul.f32 %v3964, %v3963
      %v3966 = vmul.f32 0.5, %v3965
      %v3967 = vsub.f32 1.5, %v3966
      %v3968 = vmul.f32 %v3963, %v3967
      %vm3969 = vweird.f32 %v3962
      %vm3970 = vweird.f32 %v3963
      %vm3971 = vmor %vm3969, %vm3970
      %v3972 = vsel %vm3971, %v3963, %v3968
      %v3973 = vmul.f32 %v3924, %v3972
      %v3974 = vmul.f32 %v3925, %v3972
      %v3975 = vmul.f32 %v3926, %v3972
      %v3976 = vmul.f32 %v3927, %v3972
      %v3977 = vmul.f32 %v3928, %v3972
      %v3978 = vmul.f32 %v3929, %v3972
      %v3979 = vmul.f32 %v3930, %v3972
      %v3980 = vmul.f32 %v3931, %v3972
      %vm3981 = vcmp.ge.f32.partialorder %v3973, 0.0
      %vm3982 = vcmp.ge.f32.partialorder %v3974, 0.0
      %vm3983 = vcmp.ge.f32.partialorder %v3975, 0.0
      %vm3984 = vcmp.ge.f32.partialorder %v3976, 0.0
      %vm3985 = vcmp.ge.f32.partialorder %v3977, 0.0
      %vm3986 = vcmp.ge.f32.partialorder %v3978, 0.0
      %vm3987 = vcmp.ge.f32.partialorder %v3979, 0.0
      %vm3988 = vcmp.ge.f32.partialorder %v3980, 0.0
      %v3989 = vmul.f32 %v3973, 0.2
      %v3990 = vmul.f32 %v3974, 0.2
      %v3991 = vmul.f32 %v3975, 0.2
      %v3992 = vmul.f32 %v3976, 0.2
      %v3993 = vmul.f32 %v3977, 0.2
      %v3994 = vmul.f32 %v3978, 0.2
      %v3995 = vmul.f32 %v3979, 0.2
      %v3996 = vmul.f32 %v3980, 0.2
      %v3997 = vsel %vm3981, %v3973, %v3989
      %v3998 = vsel %vm3982, %v3974, %v3990
      %v3999 = vsel %vm3983, %v3975, %v3991
      %v4000 = vsel %vm3984, %v3976, %v3992
      %v4001 = vsel %vm3985, %v3977, %v3993
      %v4002 = vsel %vm3986, %v3978, %v3994
      %v4003 = vsel %vm3987, %v3979, %v3995
      %v4004 = vsel %vm3988, %v3980, %v3996
      %v4005 = vpack.c.bf16 %v3998, %v3997
      %v4006 = vpack.c.bf16 %v4000, %v3999
      %v4007 = vpack.c.bf16 %v4002, %v4001
      %v4008 = vpack.c.bf16 %v4004, %v4003
      %v4041 = vunpack.c.l.b16 %v439
      %v4042 = vunpack.c.l.b16 %v440
      %v4043 = vunpack.c.l.b16 %v441
      %v4044 = vunpack.c.l.b16 %v442
      %v4045 = vunpack.c.l.b16 %v443
      %v4046 = vunpack.c.l.b16 %v444
      %v4047 = vunpack.c.l.b16 %v445
      %v4048 = vunpack.c.l.b16 %v446
      %v4049 = vunpack.c.l.b16 %v447
      %v4050 = vunpack.c.l.b16 %v448
      %v4051 = vunpack.c.l.b16 %v449
      %v4052 = vunpack.c.l.b16 %v450
      %v4053 = vunpack.c.l.b16 %v451
      %v4054 = vunpack.c.l.b16 %v452
      %v4055 = vunpack.c.l.b16 %v453
      %v4056 = vunpack.c.l.b16 %v454
      %v4057 = vunpack.c.l.b16 %v455
      %v4058 = vunpack.c.l.b16 %v456
      %v4059 = vunpack.c.l.b16 %v457
      %v4060 = vunpack.c.l.b16 %v458
      %v4061 = vunpack.c.l.b16 %v459
      %v4062 = vunpack.c.l.b16 %v460
      %v4063 = vunpack.c.l.b16 %v461
      %v4064 = vunpack.c.l.b16 %v462
      %v4065 = vunpack.c.l.b16 %v463
      %v4066 = vunpack.c.l.b16 %v464
      %v4067 = vunpack.c.l.b16 %v465
      %v4068 = vunpack.c.l.b16 %v466
      %v4069 = vunpack.c.l.b16 %v467
      %v4070 = vunpack.c.l.b16 %v468
      %v4071 = vunpack.c.l.b16 %v469
      %v4072 = vunpack.c.l.b16 %v470
      %v4073 = vpack.c.b16 %v4042, %v4041
      %v4074 = vpack.c.b16 %v4044, %v4043
      %v4075 = vpack.c.b16 %v4046, %v4045
      %v4076 = vpack.c.b16 %v4048, %v4047
      %v4077 = vpack.c.b16 %v4050, %v4049
      %v4078 = vpack.c.b16 %v4052, %v4051
      %v4079 = vpack.c.b16 %v4054, %v4053
      %v4080 = vpack.c.b16 %v4056, %v4055
      %v4081 = vpack.c.b16 %v4058, %v4057
      %v4082 = vpack.c.b16 %v4060, %v4059
      %v4083 = vpack.c.b16 %v4062, %v4061
      %v4084 = vpack.c.b16 %v4064, %v4063
      %v4085 = vpack.c.b16 %v4066, %v4065
      %v4086 = vpack.c.b16 %v4068, %v4067
      %v4087 = vpack.c.b16 %v4070, %v4069
      %v4088 = vpack.c.b16 %v4072, %v4071
      %v4090 = vsel %vm3894, %v4073, 0
      %v4093 = vsel %vm3894, %v4074, 0
      %v4096 = vsel %vm3894, %v4075, 0
      %v4099 = vsel %vm3894, %v4076, 0
      %v4102 = vsel %vm3894, %v4077, 0
      %v4105 = vsel %vm3894, %v4078, 0
      %v4108 = vsel %vm3894, %v4079, 0
      %v4111 = vsel %vm3894, %v4080, 0
      %v4114 = vsel %vm3894, %v4081, 0
      %v4117 = vsel %vm3894, %v4082, 0
      %v4120 = vsel %vm3894, %v4083, 0
      %v4123 = vsel %vm3894, %v4084, 0
      %v4126 = vsel %vm3894, %v4085, 0
      %v4129 = vsel %vm3894, %v4086, 0
      %v4132 = vsel %vm3894, %v4087, 0
      %v4135 = vsel %vm3894, %v4088, 0
      %4137 = vmatpush.bf16.msra.mxu0 0
      %4138 = vmatpush.bf16.msra.mxu0 0
      %4139 = vmatpush.bf16.msra.mxu0 0
      %4140 = vmatpush.bf16.msra.mxu0 0
      %4141 = vmatpush.bf16.msra.mxu0 %v4008
      %4142 = vmatpush.bf16.msra.mxu0 %v4007
      %4143 = vmatpush.bf16.msra.mxu0 %v4006
      %4144 = vmatpush.bf16.msra.mxu0 %v4005
      %4145 = vmatmul.bf16.gmra.mxu0 %v4090
      %v4146 = vpop.f32.mrf.mxu0
      %v4147 = vadd.f32 0.0, %v4146
      %v4148 = vpop.f32.mrf.mxu0
      %v4149 = vadd.f32 0.0, %v4148
      %4150 = vmatmul.bf16.gmra.mxu0 %v4093
      %v4151 = vpop.f32.mrf.mxu0
      %v4152 = vadd.f32 0.0, %v4151
      %v4153 = vpop.f32.mrf.mxu0
      %v4154 = vadd.f32 0.0, %v4153
      %4155 = vmatmul.bf16.gmra.mxu0 %v4096
      %v4156 = vpop.f32.mrf.mxu0
      %v4157 = vadd.f32 0.0, %v4156
      %v4158 = vpop.f32.mrf.mxu0
      %v4159 = vadd.f32 0.0, %v4158
      %4160 = vmatmul.bf16.gmra.mxu0 %v4099
      %v4161 = vpop.f32.mrf.mxu0
      %v4162 = vadd.f32 0.0, %v4161
      %v4163 = vpop.f32.mrf.mxu0
      %v4164 = vadd.f32 0.0, %v4163
      %4165 = vmatmul.bf16.gmra.mxu0 %v4102
      %v4166 = vpop.f32.mrf.mxu0
      %v4167 = vadd.f32 0.0, %v4166
      %v4168 = vpop.f32.mrf.mxu0
      %v4169 = vadd.f32 0.0, %v4168
      %4170 = vmatmul.bf16.gmra.mxu0 %v4105
      %v4171 = vpop.f32.mrf.mxu0
      %v4172 = vadd.f32 0.0, %v4171
      %v4173 = vpop.f32.mrf.mxu0
      %v4174 = vadd.f32 0.0, %v4173
      %4175 = vmatmul.bf16.gmra.mxu0 %v4108
      %v4176 = vpop.f32.mrf.mxu0
      %v4177 = vadd.f32 0.0, %v4176
      %v4178 = vpop.f32.mrf.mxu0
      %v4179 = vadd.f32 0.0, %v4178
      %4180 = vmatmul.bf16.gmra.mxu0 %v4111
      %v4181 = vpop.f32.mrf.mxu0
      %v4182 = vadd.f32 0.0, %v4181
      %v4183 = vpop.f32.mrf.mxu0
      %v4184 = vadd.f32 0.0, %v4183
      %4185 = vmatmul.bf16.gmra.mxu0 %v4114
      %v4186 = vpop.f32.mrf.mxu0
      %v4187 = vadd.f32 0.0, %v4186
      %v4188 = vpop.f32.mrf.mxu0
      %v4189 = vadd.f32 0.0, %v4188
      %4190 = vmatmul.bf16.gmra.mxu0 %v4117
      %v4191 = vpop.f32.mrf.mxu0
      %v4192 = vadd.f32 0.0, %v4191
      %v4193 = vpop.f32.mrf.mxu0
      %v4194 = vadd.f32 0.0, %v4193
      %4195 = vmatmul.bf16.gmra.mxu0 %v4120
      %v4196 = vpop.f32.mrf.mxu0
      %v4197 = vadd.f32 0.0, %v4196
      %v4198 = vpop.f32.mrf.mxu0
      %v4199 = vadd.f32 0.0, %v4198
      %4200 = vmatmul.bf16.gmra.mxu0 %v4123
      %v4201 = vpop.f32.mrf.mxu0
      %v4202 = vadd.f32 0.0, %v4201
      %v4203 = vpop.f32.mrf.mxu0
      %v4204 = vadd.f32 0.0, %v4203
      %4205 = vmatmul.bf16.gmra.mxu0 %v4126
      %v4206 = vpop.f32.mrf.mxu0
      %v4207 = vadd.f32 0.0, %v4206
      %v4208 = vpop.f32.mrf.mxu0
      %v4209 = vadd.f32 0.0, %v4208
      %4210 = vmatmul.bf16.gmra.mxu0 %v4129
      %v4211 = vpop.f32.mrf.mxu0
      %v4212 = vadd.f32 0.0, %v4211
      %v4213 = vpop.f32.mrf.mxu0
      %v4214 = vadd.f32 0.0, %v4213
      %4215 = vmatmul.bf16.gmra.mxu0 %v4132
      %v4216 = vpop.f32.mrf.mxu0
      %v4217 = vadd.f32 0.0, %v4216
      %v4218 = vpop.f32.mrf.mxu0
      %v4219 = vadd.f32 0.0, %v4218
      %4220 = vmatmul.bf16.gmra.mxu0 %v4135
      %v4221 = vpop.f32.mrf.mxu0
      %v4222 = vadd.f32 0.0, %v4221
      %v4223 = vpop.f32.mrf.mxu0
      %v4224 = vadd.f32 0.0, %v4223
      %4225 = vdwg.mxu0
      %v4226 = vpack.c.bf16 %v4147, %v4147
      %v4227 = vpack.c.bf16 %v4149, %v4149
      %v4228 = vpack.c.bf16 %v4152, %v4152
      %v4229 = vpack.c.bf16 %v4154, %v4154
      %v4230 = vpack.c.bf16 %v4157, %v4157
      %v4231 = vpack.c.bf16 %v4159, %v4159
      %v4232 = vpack.c.bf16 %v4162, %v4162
      %v4233 = vpack.c.bf16 %v4164, %v4164
      %v4234 = vpack.c.bf16 %v4167, %v4167
      %v4235 = vpack.c.bf16 %v4169, %v4169
      %v4236 = vpack.c.bf16 %v4172, %v4172
      %v4237 = vpack.c.bf16 %v4174, %v4174
      %v4238 = vpack.c.bf16 %v4177, %v4177
      %v4239 = vpack.c.bf16 %v4179, %v4179
      %v4240 = vpack.c.bf16 %v4182, %v4182
      %v4241 = vpack.c.bf16 %v4184, %v4184
      %v4242 = vpack.c.bf16 %v4187, %v4187
      %v4243 = vpack.c.bf16 %v4189, %v4189
      %v4244 = vpack.c.bf16 %v4192, %v4192
      %v4245 = vpack.c.bf16 %v4194, %v4194
      %v4246 = vpack.c.bf16 %v4197, %v4197
      %v4247 = vpack.c.bf16 %v4199, %v4199
      %v4248 = vpack.c.bf16 %v4202, %v4202
      %v4249 = vpack.c.bf16 %v4204, %v4204
      %v4250 = vpack.c.bf16 %v4207, %v4207
      %v4251 = vpack.c.bf16 %v4209, %v4209
      %v4252 = vpack.c.bf16 %v4212, %v4212
      %v4253 = vpack.c.bf16 %v4214, %v4214
      %v4254 = vpack.c.bf16 %v4217, %v4217
      %v4255 = vpack.c.bf16 %v4219, %v4219
      %v4256 = vpack.c.bf16 %v4222, %v4222
      %v4257 = vpack.c.bf16 %v4224, %v4224
      %v4258 = vld [vmem:[%s5] sm:$0xf]
      %v4259 = vld [vmem:[%s5 + $0x4] sm:$0xf]
      %v4260 = vld [vmem:[%s5 + $0x8] sm:$0xf]
      %v4261 = vld [vmem:[%s5 + $0xc] sm:$0xf]
      %v4262 = vld [vmem:[%s5 + $0x10] sm:$0xf]
      %v4263 = vld [vmem:[%s5 + $0x14] sm:$0xf]
      %v4264 = vld [vmem:[%s5 + $0x18] sm:$0xf]
      %v4265 = vld [vmem:[%s5 + $0x1c] sm:$0xf]
      %s4266 = scalar_lea.vmem %s5, 32
      %v4267 = vld [vmem:[%s4266] sm:$0xf]
      %v4268 = vld [vmem:[%s4266 + $0x4] sm:$0xf]
      %v4269 = vld [vmem:[%s4266 + $0x8] sm:$0xf]
      %v4270 = vld [vmem:[%s4266 + $0xc] sm:$0xf]
      %v4271 = vld [vmem:[%s4266 + $0x10] sm:$0xf]
      %v4272 = vld [vmem:[%s4266 + $0x14] sm:$0xf]
      %v4273 = vld [vmem:[%s4266 + $0x18] sm:$0xf]
      %v4274 = vld [vmem:[%s4266 + $0x1c] sm:$0xf]
      %v4277 = vunpack.c.l.b16 %v4228
      %v4278 = vunpack.c.l.b16 %v4229
      %v4279 = vpack.c.b16 %v4278, %v4277
      %v4288 = vunpack.c.l.b16 %v4267
      %v4289 = vunpack.c.l.b16 %v4268
      %v4290 = vunpack.c.l.b16 %v4269
      %v4291 = vunpack.c.l.b16 %v4270
      %v4292 = vunpack.c.l.b16 %v4271
      %v4293 = vunpack.c.l.b16 %v4272
      %v4294 = vunpack.c.l.b16 %v4273
      %v4295 = vunpack.c.l.b16 %v4274
      %v4296 = vpack.c.b16 %v4289, %v4288
      %v4297 = vpack.c.b16 %v4291, %v4290
      %v4298 = vpack.c.b16 %v4293, %v4292
      %v4299 = vpack.c.b16 %v4295, %v4294
      %v4305 = vsel %vm3894, %v4279, 0
      %4307 = vmatpush.bf16.msra.mxu0 0
      %4308 = vmatpush.bf16.msra.mxu0 0
      %4309 = vmatpush.bf16.msra.mxu0 0
      %4310 = vmatpush.bf16.msra.mxu0 0
      %4311 = vmatpush.bf16.msra.mxu0 %v4299
      %4312 = vmatpush.bf16.msra.mxu0 %v4298
      %4313 = vmatpush.bf16.msra.mxu0 %v4297
      %4314 = vmatpush.bf16.msra.mxu0 %v4296
      %4315 = vmatmul.bf16.gmra.mxu0 %v4305
      %v4316 = vpop.f32.mrf.mxu0
      %v4317 = vadd.f32 0.0, %v4316
      %v4318 = vpop.f32.mrf.mxu0
      %v4319 = vadd.f32 0.0, %v4318
      %4320 = vdwg.mxu0
      %v4323 = vunpack.c.l.b16 %v4226
      %v4324 = vunpack.c.l.b16 %v4227
      %v4325 = vpack.c.b16 %v4324, %v4323
      %v4334 = vunpack.c.l.b16 %v4258
      %v4335 = vunpack.c.l.b16 %v4259
      %v4336 = vunpack.c.l.b16 %v4260
      %v4337 = vunpack.c.l.b16 %v4261
      %v4338 = vunpack.c.l.b16 %v4262
      %v4339 = vunpack.c.l.b16 %v4263
      %v4340 = vunpack.c.l.b16 %v4264
      %v4341 = vunpack.c.l.b16 %v4265
      %v4342 = vpack.c.b16 %v4335, %v4334
      %v4343 = vpack.c.b16 %v4337, %v4336
      %v4344 = vpack.c.b16 %v4339, %v4338
      %v4345 = vpack.c.b16 %v4341, %v4340
      %v4351 = vsel %vm3894, %v4325, 0
      %4353 = vmatpush.bf16.msra.mxu0 0
      %4354 = vmatpush.bf16.msra.mxu0 0
      %4355 = vmatpush.bf16.msra.mxu0 0
      %4356 = vmatpush.bf16.msra.mxu0 0
      %4357 = vmatpush.bf16.msra.mxu0 %v4345
      %4358 = vmatpush.bf16.msra.mxu0 %v4344
      %4359 = vmatpush.bf16.msra.mxu0 %v4343
      %4360 = vmatpush.bf16.msra.mxu0 %v4342
      %4361 = vmatmul.bf16.gmra.mxu0 %v4351
      %v4362 = vpop.f32.mrf.mxu0
      %v4363 = vadd.f32 %v4317, %v4362
      %v4364 = vpop.f32.mrf.mxu0
      %v4365 = vadd.f32 %v4319, %v4364
      %4366 = vdwg.mxu0
      %s4367 = scalar_lea.vmem %s5, 64
      %v4368 = vld [vmem:[%s4367] sm:$0xf]
      %v4369 = vld [vmem:[%s4367 + $0x4] sm:$0xf]
      %v4370 = vld [vmem:[%s4367 + $0x8] sm:$0xf]
      %v4371 = vld [vmem:[%s4367 + $0xc] sm:$0xf]
      %v4372 = vld [vmem:[%s4367 + $0x10] sm:$0xf]
      %v4373 = vld [vmem:[%s4367 + $0x14] sm:$0xf]
      %v4374 = vld [vmem:[%s4367 + $0x18] sm:$0xf]
      %v4375 = vld [vmem:[%s4367 + $0x1c] sm:$0xf]
      %v4378 = vunpack.c.l.b16 %v4230
      %v4379 = vunpack.c.l.b16 %v4231
      %v4380 = vpack.c.b16 %v4379, %v4378
      %v4389 = vunpack.c.l.b16 %v4368
      %v4390 = vunpack.c.l.b16 %v4369
      %v4391 = vunpack.c.l.b16 %v4370
      %v4392 = vunpack.c.l.b16 %v4371
      %v4393 = vunpack.c.l.b16 %v4372
      %v4394 = vunpack.c.l.b16 %v4373
      %v4395 = vunpack.c.l.b16 %v4374
      %v4396 = vunpack.c.l.b16 %v4375
      %v4397 = vpack.c.b16 %v4390, %v4389
      %v4398 = vpack.c.b16 %v4392, %v4391
      %v4399 = vpack.c.b16 %v4394, %v4393
      %v4400 = vpack.c.b16 %v4396, %v4395
      %v4406 = vsel %vm3894, %v4380, 0
      %4408 = vmatpush.bf16.msra.mxu0 0
      %4409 = vmatpush.bf16.msra.mxu0 0
      %4410 = vmatpush.bf16.msra.mxu0 0
      %4411 = vmatpush.bf16.msra.mxu0 0
      %4412 = vmatpush.bf16.msra.mxu0 %v4400
      %4413 = vmatpush.bf16.msra.mxu0 %v4399
      %4414 = vmatpush.bf16.msra.mxu0 %v4398
      %4415 = vmatpush.bf16.msra.mxu0 %v4397
      %4416 = vmatmul.bf16.gmra.mxu0 %v4406
      %v4417 = vpop.f32.mrf.mxu0
      %v4418 = vadd.f32 0.0, %v4417
      %v4419 = vpop.f32.mrf.mxu0
      %v4420 = vadd.f32 0.0, %v4419
      %4421 = vdwg.mxu0
      %v4422 = vadd.f32 %v4363, %v4418
      %v4423 = vadd.f32 %v4365, %v4420
      %s4424 = scalar_lea.vmem %s5, 96
      %v4425 = vld [vmem:[%s4424] sm:$0xf]
      %v4426 = vld [vmem:[%s4424 + $0x4] sm:$0xf]
      %v4427 = vld [vmem:[%s4424 + $0x8] sm:$0xf]
      %v4428 = vld [vmem:[%s4424 + $0xc] sm:$0xf]
      %v4429 = vld [vmem:[%s4424 + $0x10] sm:$0xf]
      %v4430 = vld [vmem:[%s4424 + $0x14] sm:$0xf]
      %v4431 = vld [vmem:[%s4424 + $0x18] sm:$0xf]
      %v4432 = vld [vmem:[%s4424 + $0x1c] sm:$0xf]
      %v4435 = vunpack.c.l.b16 %v4232
      %v4436 = vunpack.c.l.b16 %v4233
      %v4437 = vpack.c.b16 %v4436, %v4435
      %v4446 = vunpack.c.l.b16 %v4425
      %v4447 = vunpack.c.l.b16 %v4426
      %v4448 = vunpack.c.l.b16 %v4427
      %v4449 = vunpack.c.l.b16 %v4428
      %v4450 = vunpack.c.l.b16 %v4429
      %v4451 = vunpack.c.l.b16 %v4430
      %v4452 = vunpack.c.l.b16 %v4431
      %v4453 = vunpack.c.l.b16 %v4432
      %v4454 = vpack.c.b16 %v4447, %v4446
      %v4455 = vpack.c.b16 %v4449, %v4448
      %v4456 = vpack.c.b16 %v4451, %v4450
      %v4457 = vpack.c.b16 %v4453, %v4452
      %v4463 = vsel %vm3894, %v4437, 0
      %4465 = vmatpush.bf16.msra.mxu0 0
      %4466 = vmatpush.bf16.msra.mxu0 0
      %4467 = vmatpush.bf16.msra.mxu0 0
      %4468 = vmatpush.bf16.msra.mxu0 0
      %4469 = vmatpush.bf16.msra.mxu0 %v4457
      %4470 = vmatpush.bf16.msra.mxu0 %v4456
      %4471 = vmatpush.bf16.msra.mxu0 %v4455
      %4472 = vmatpush.bf16.msra.mxu0 %v4454
      %4473 = vmatmul.bf16.gmra.mxu0 %v4463
      %v4474 = vpop.f32.mrf.mxu0
      %v4475 = vadd.f32 0.0, %v4474
      %v4476 = vpop.f32.mrf.mxu0
      %v4477 = vadd.f32 0.0, %v4476
      %4478 = vdwg.mxu0
      %v4479 = vadd.f32 %v4422, %v4475
      %v4480 = vadd.f32 %v4423, %v4477
      %s4481 = scalar_lea.vmem %s5, 128
      %v4482 = vld [vmem:[%s4481] sm:$0xf]
      %v4483 = vld [vmem:[%s4481 + $0x4] sm:$0xf]
      %v4484 = vld [vmem:[%s4481 + $0x8] sm:$0xf]
      %v4485 = vld [vmem:[%s4481 + $0xc] sm:$0xf]
      %v4486 = vld [vmem:[%s4481 + $0x10] sm:$0xf]
      %v4487 = vld [vmem:[%s4481 + $0x14] sm:$0xf]
      %v4488 = vld [vmem:[%s4481 + $0x18] sm:$0xf]
      %v4489 = vld [vmem:[%s4481 + $0x1c] sm:$0xf]
      %v4492 = vunpack.c.l.b16 %v4234
      %v4493 = vunpack.c.l.b16 %v4235
      %v4494 = vpack.c.b16 %v4493, %v4492
      %v4503 = vunpack.c.l.b16 %v4482
      %v4504 = vunpack.c.l.b16 %v4483
      %v4505 = vunpack.c.l.b16 %v4484
      %v4506 = vunpack.c.l.b16 %v4485
      %v4507 = vunpack.c.l.b16 %v4486
      %v4508 = vunpack.c.l.b16 %v4487
      %v4509 = vunpack.c.l.b16 %v4488
      %v4510 = vunpack.c.l.b16 %v4489
      %v4511 = vpack.c.b16 %v4504, %v4503
      %v4512 = vpack.c.b16 %v4506, %v4505
      %v4513 = vpack.c.b16 %v4508, %v4507
      %v4514 = vpack.c.b16 %v4510, %v4509
      %v4520 = vsel %vm3894, %v4494, 0
      %4522 = vmatpush.bf16.msra.mxu0 0
      %4523 = vmatpush.bf16.msra.mxu0 0
      %4524 = vmatpush.bf16.msra.mxu0 0
      %4525 = vmatpush.bf16.msra.mxu0 0
      %4526 = vmatpush.bf16.msra.mxu0 %v4514
      %4527 = vmatpush.bf16.msra.mxu0 %v4513
      %4528 = vmatpush.bf16.msra.mxu0 %v4512
      %4529 = vmatpush.bf16.msra.mxu0 %v4511
      %4530 = vmatmul.bf16.gmra.mxu0 %v4520
      %v4531 = vpop.f32.mrf.mxu0
      %v4532 = vadd.f32 0.0, %v4531
      %v4533 = vpop.f32.mrf.mxu0
      %v4534 = vadd.f32 0.0, %v4533
      %4535 = vdwg.mxu0
      %v4536 = vadd.f32 %v4479, %v4532
      %v4537 = vadd.f32 %v4480, %v4534
      %s4538 = scalar_lea.vmem %s5, 160
      %v4539 = vld [vmem:[%s4538] sm:$0xf]
      %v4540 = vld [vmem:[%s4538 + $0x4] sm:$0xf]
      %v4541 = vld [vmem:[%s4538 + $0x8] sm:$0xf]
      %v4542 = vld [vmem:[%s4538 + $0xc] sm:$0xf]
      %v4543 = vld [vmem:[%s4538 + $0x10] sm:$0xf]
      %v4544 = vld [vmem:[%s4538 + $0x14] sm:$0xf]
      %v4545 = vld [vmem:[%s4538 + $0x18] sm:$0xf]
      %v4546 = vld [vmem:[%s4538 + $0x1c] sm:$0xf]
      %v4549 = vunpack.c.l.b16 %v4236
      %v4550 = vunpack.c.l.b16 %v4237
      %v4551 = vpack.c.b16 %v4550, %v4549
      %v4560 = vunpack.c.l.b16 %v4539
      %v4561 = vunpack.c.l.b16 %v4540
      %v4562 = vunpack.c.l.b16 %v4541
      %v4563 = vunpack.c.l.b16 %v4542
      %v4564 = vunpack.c.l.b16 %v4543
      %v4565 = vunpack.c.l.b16 %v4544
      %v4566 = vunpack.c.l.b16 %v4545
      %v4567 = vunpack.c.l.b16 %v4546
      %v4568 = vpack.c.b16 %v4561, %v4560
      %v4569 = vpack.c.b16 %v4563, %v4562
      %v4570 = vpack.c.b16 %v4565, %v4564
      %v4571 = vpack.c.b16 %v4567, %v4566
      %v4577 = vsel %vm3894, %v4551, 0
      %4579 = vmatpush.bf16.msra.mxu0 0
      %4580 = vmatpush.bf16.msra.mxu0 0
      %4581 = vmatpush.bf16.msra.mxu0 0
      %4582 = vmatpush.bf16.msra.mxu0 0
      %4583 = vmatpush.bf16.msra.mxu0 %v4571
      %4584 = vmatpush.bf16.msra.mxu0 %v4570
      %4585 = vmatpush.bf16.msra.mxu0 %v4569
      %4586 = vmatpush.bf16.msra.mxu0 %v4568
      %4587 = vmatmul.bf16.gmra.mxu0 %v4577
      %v4588 = vpop.f32.mrf.mxu0
      %v4589 = vadd.f32 0.0, %v4588
      %v4590 = vpop.f32.mrf.mxu0
      %v4591 = vadd.f32 0.0, %v4590
      %4592 = vdwg.mxu0
      %v4593 = vadd.f32 %v4536, %v4589
      %v4594 = vadd.f32 %v4537, %v4591
      %s4595 = scalar_lea.vmem %s5, 192
      %v4596 = vld [vmem:[%s4595] sm:$0xf]
      %v4597 = vld [vmem:[%s4595 + $0x4] sm:$0xf]
      %v4598 = vld [vmem:[%s4595 + $0x8] sm:$0xf]
      %v4599 = vld [vmem:[%s4595 + $0xc] sm:$0xf]
      %v4600 = vld [vmem:[%s4595 + $0x10] sm:$0xf]
      %v4601 = vld [vmem:[%s4595 + $0x14] sm:$0xf]
      %v4602 = vld [vmem:[%s4595 + $0x18] sm:$0xf]
      %v4603 = vld [vmem:[%s4595 + $0x1c] sm:$0xf]
      %v4606 = vunpack.c.l.b16 %v4238
      %v4607 = vunpack.c.l.b16 %v4239
      %v4608 = vpack.c.b16 %v4607, %v4606
      %v4617 = vunpack.c.l.b16 %v4596
      %v4618 = vunpack.c.l.b16 %v4597
      %v4619 = vunpack.c.l.b16 %v4598
      %v4620 = vunpack.c.l.b16 %v4599
      %v4621 = vunpack.c.l.b16 %v4600
      %v4622 = vunpack.c.l.b16 %v4601
      %v4623 = vunpack.c.l.b16 %v4602
      %v4624 = vunpack.c.l.b16 %v4603
      %v4625 = vpack.c.b16 %v4618, %v4617
      %v4626 = vpack.c.b16 %v4620, %v4619
      %v4627 = vpack.c.b16 %v4622, %v4621
      %v4628 = vpack.c.b16 %v4624, %v4623
      %v4634 = vsel %vm3894, %v4608, 0
      %4636 = vmatpush.bf16.msra.mxu0 0
      %4637 = vmatpush.bf16.msra.mxu0 0
      %4638 = vmatpush.bf16.msra.mxu0 0
      %4639 = vmatpush.bf16.msra.mxu0 0
      %4640 = vmatpush.bf16.msra.mxu0 %v4628
      %4641 = vmatpush.bf16.msra.mxu0 %v4627
      %4642 = vmatpush.bf16.msra.mxu0 %v4626
      %4643 = vmatpush.bf16.msra.mxu0 %v4625
      %4644 = vmatmul.bf16.gmra.mxu0 %v4634
      %v4645 = vpop.f32.mrf.mxu0
      %v4646 = vadd.f32 0.0, %v4645
      %v4647 = vpop.f32.mrf.mxu0
      %v4648 = vadd.f32 0.0, %v4647
      %4649 = vdwg.mxu0
      %v4650 = vadd.f32 %v4593, %v4646
      %v4651 = vadd.f32 %v4594, %v4648
      %s4652 = scalar_lea.vmem %s5, 224
      %v4653 = vld [vmem:[%s4652] sm:$0xf]
      %v4654 = vld [vmem:[%s4652 + $0x4] sm:$0xf]
      %v4655 = vld [vmem:[%s4652 + $0x8] sm:$0xf]
      %v4656 = vld [vmem:[%s4652 + $0xc] sm:$0xf]
      %v4657 = vld [vmem:[%s4652 + $0x10] sm:$0xf]
      %v4658 = vld [vmem:[%s4652 + $0x14] sm:$0xf]
      %v4659 = vld [vmem:[%s4652 + $0x18] sm:$0xf]
      %v4660 = vld [vmem:[%s4652 + $0x1c] sm:$0xf]
      %v4663 = vunpack.c.l.b16 %v4240
      %v4664 = vunpack.c.l.b16 %v4241
      %v4665 = vpack.c.b16 %v4664, %v4663
      %v4674 = vunpack.c.l.b16 %v4653
      %v4675 = vunpack.c.l.b16 %v4654
      %v4676 = vunpack.c.l.b16 %v4655
      %v4677 = vunpack.c.l.b16 %v4656
      %v4678 = vunpack.c.l.b16 %v4657
      %v4679 = vunpack.c.l.b16 %v4658
      %v4680 = vunpack.c.l.b16 %v4659
      %v4681 = vunpack.c.l.b16 %v4660
      %v4682 = vpack.c.b16 %v4675, %v4674
      %v4683 = vpack.c.b16 %v4677, %v4676
      %v4684 = vpack.c.b16 %v4679, %v4678
      %v4685 = vpack.c.b16 %v4681, %v4680
      %v4691 = vsel %vm3894, %v4665, 0
      %4693 = vmatpush.bf16.msra.mxu0 0
      %4694 = vmatpush.bf16.msra.mxu0 0
      %4695 = vmatpush.bf16.msra.mxu0 0
      %4696 = vmatpush.bf16.msra.mxu0 0
      %4697 = vmatpush.bf16.msra.mxu0 %v4685
      %4698 = vmatpush.bf16.msra.mxu0 %v4684
      %4699 = vmatpush.bf16.msra.mxu0 %v4683
      %4700 = vmatpush.bf16.msra.mxu0 %v4682
      %4701 = vmatmul.bf16.gmra.mxu0 %v4691
      %v4702 = vpop.f32.mrf.mxu0
      %v4703 = vadd.f32 0.0, %v4702
      %v4704 = vpop.f32.mrf.mxu0
      %v4705 = vadd.f32 0.0, %v4704
      %4706 = vdwg.mxu0
      %v4707 = vadd.f32 %v4650, %v4703
      %v4708 = vadd.f32 %v4651, %v4705
      %s4709 = scalar_lea.vmem %s5, 256
      %v4710 = vld [vmem:[%s4709] sm:$0xf]
      %v4711 = vld [vmem:[%s4709 + $0x4] sm:$0xf]
      %v4712 = vld [vmem:[%s4709 + $0x8] sm:$0xf]
      %v4713 = vld [vmem:[%s4709 + $0xc] sm:$0xf]
      %v4714 = vld [vmem:[%s4709 + $0x10] sm:$0xf]
      %v4715 = vld [vmem:[%s4709 + $0x14] sm:$0xf]
      %v4716 = vld [vmem:[%s4709 + $0x18] sm:$0xf]
      %v4717 = vld [vmem:[%s4709 + $0x1c] sm:$0xf]
      %v4720 = vunpack.c.l.b16 %v4242
      %v4721 = vunpack.c.l.b16 %v4243
      %v4722 = vpack.c.b16 %v4721, %v4720
      %v4731 = vunpack.c.l.b16 %v4710
      %v4732 = vunpack.c.l.b16 %v4711
      %v4733 = vunpack.c.l.b16 %v4712
      %v4734 = vunpack.c.l.b16 %v4713
      %v4735 = vunpack.c.l.b16 %v4714
      %v4736 = vunpack.c.l.b16 %v4715
      %v4737 = vunpack.c.l.b16 %v4716
      %v4738 = vunpack.c.l.b16 %v4717
      %v4739 = vpack.c.b16 %v4732, %v4731
      %v4740 = vpack.c.b16 %v4734, %v4733
      %v4741 = vpack.c.b16 %v4736, %v4735
      %v4742 = vpack.c.b16 %v4738, %v4737
      %v4748 = vsel %vm3894, %v4722, 0
      %4750 = vmatpush.bf16.msra.mxu0 0
      %4751 = vmatpush.bf16.msra.mxu0 0
      %4752 = vmatpush.bf16.msra.mxu0 0
      %4753 = vmatpush.bf16.msra.mxu0 0
      %4754 = vmatpush.bf16.msra.mxu0 %v4742
      %4755 = vmatpush.bf16.msra.mxu0 %v4741
      %4756 = vmatpush.bf16.msra.mxu0 %v4740
      %4757 = vmatpush.bf16.msra.mxu0 %v4739
      %4758 = vmatmul.bf16.gmra.mxu0 %v4748
      %v4759 = vpop.f32.mrf.mxu0
      %v4760 = vadd.f32 0.0, %v4759
      %v4761 = vpop.f32.mrf.mxu0
      %v4762 = vadd.f32 0.0, %v4761
      %4763 = vdwg.mxu0
      %v4764 = vadd.f32 %v4707, %v4760
      %v4765 = vadd.f32 %v4708, %v4762
      %s4766 = scalar_lea.vmem %s5, 288
      %v4767 = vld [vmem:[%s4766] sm:$0xf]
      %v4768 = vld [vmem:[%s4766 + $0x4] sm:$0xf]
      %v4769 = vld [vmem:[%s4766 + $0x8] sm:$0xf]
      %v4770 = vld [vmem:[%s4766 + $0xc] sm:$0xf]
      %v4771 = vld [vmem:[%s4766 + $0x10] sm:$0xf]
      %v4772 = vld [vmem:[%s4766 + $0x14] sm:$0xf]
      %v4773 = vld [vmem:[%s4766 + $0x18] sm:$0xf]
      %v4774 = vld [vmem:[%s4766 + $0x1c] sm:$0xf]
      %v4777 = vunpack.c.l.b16 %v4244
      %v4778 = vunpack.c.l.b16 %v4245
      %v4779 = vpack.c.b16 %v4778, %v4777
      %v4788 = vunpack.c.l.b16 %v4767
      %v4789 = vunpack.c.l.b16 %v4768
      %v4790 = vunpack.c.l.b16 %v4769
      %v4791 = vunpack.c.l.b16 %v4770
      %v4792 = vunpack.c.l.b16 %v4771
      %v4793 = vunpack.c.l.b16 %v4772
      %v4794 = vunpack.c.l.b16 %v4773
      %v4795 = vunpack.c.l.b16 %v4774
      %v4796 = vpack.c.b16 %v4789, %v4788
      %v4797 = vpack.c.b16 %v4791, %v4790
      %v4798 = vpack.c.b16 %v4793, %v4792
      %v4799 = vpack.c.b16 %v4795, %v4794
      %v4805 = vsel %vm3894, %v4779, 0
      %4807 = vmatpush.bf16.msra.mxu0 0
      %4808 = vmatpush.bf16.msra.mxu0 0
      %4809 = vmatpush.bf16.msra.mxu0 0
      %4810 = vmatpush.bf16.msra.mxu0 0
      %4811 = vmatpush.bf16.msra.mxu0 %v4799
      %4812 = vmatpush.bf16.msra.mxu0 %v4798
      %4813 = vmatpush.bf16.msra.mxu0 %v4797
      %4814 = vmatpush.bf16.msra.mxu0 %v4796
      %4815 = vmatmul.bf16.gmra.mxu0 %v4805
      %v4816 = vpop.f32.mrf.mxu0
      %v4817 = vadd.f32 0.0, %v4816
      %v4818 = vpop.f32.mrf.mxu0
      %v4819 = vadd.f32 0.0, %v4818
      %4820 = vdwg.mxu0
      %v4821 = vadd.f32 %v4764, %v4817
      %v4822 = vadd.f32 %v4765, %v4819
      %s4823 = scalar_lea.vmem %s5, 320
      %v4824 = vld [vmem:[%s4823] sm:$0xf]
      %v4825 = vld [vmem:[%s4823 + $0x4] sm:$0xf]
      %v4826 = vld [vmem:[%s4823 + $0x8] sm:$0xf]
      %v4827 = vld [vmem:[%s4823 + $0xc] sm:$0xf]
      %v4828 = vld [vmem:[%s4823 + $0x10] sm:$0xf]
      %v4829 = vld [vmem:[%s4823 + $0x14] sm:$0xf]
      %v4830 = vld [vmem:[%s4823 + $0x18] sm:$0xf]
      %v4831 = vld [vmem:[%s4823 + $0x1c] sm:$0xf]
      %v4834 = vunpack.c.l.b16 %v4246
      %v4835 = vunpack.c.l.b16 %v4247
      %v4836 = vpack.c.b16 %v4835, %v4834
      %v4845 = vunpack.c.l.b16 %v4824
      %v4846 = vunpack.c.l.b16 %v4825
      %v4847 = vunpack.c.l.b16 %v4826
      %v4848 = vunpack.c.l.b16 %v4827
      %v4849 = vunpack.c.l.b16 %v4828
      %v4850 = vunpack.c.l.b16 %v4829
      %v4851 = vunpack.c.l.b16 %v4830
      %v4852 = vunpack.c.l.b16 %v4831
      %v4853 = vpack.c.b16 %v4846, %v4845
      %v4854 = vpack.c.b16 %v4848, %v4847
      %v4855 = vpack.c.b16 %v4850, %v4849
      %v4856 = vpack.c.b16 %v4852, %v4851
      %v4862 = vsel %vm3894, %v4836, 0
      %4864 = vmatpush.bf16.msra.mxu0 0
      %4865 = vmatpush.bf16.msra.mxu0 0
      %4866 = vmatpush.bf16.msra.mxu0 0
      %4867 = vmatpush.bf16.msra.mxu0 0
      %4868 = vmatpush.bf16.msra.mxu0 %v4856
      %4869 = vmatpush.bf16.msra.mxu0 %v4855
      %4870 = vmatpush.bf16.msra.mxu0 %v4854
      %4871 = vmatpush.bf16.msra.mxu0 %v4853
      %4872 = vmatmul.bf16.gmra.mxu0 %v4862
      %v4873 = vpop.f32.mrf.mxu0
      %v4874 = vadd.f32 0.0, %v4873
      %v4875 = vpop.f32.mrf.mxu0
      %v4876 = vadd.f32 0.0, %v4875
      %4877 = vdwg.mxu0
      %v4878 = vadd.f32 %v4821, %v4874
      %v4879 = vadd.f32 %v4822, %v4876
      %s4880 = scalar_lea.vmem %s5, 352
      %v4881 = vld [vmem:[%s4880] sm:$0xf]
      %v4882 = vld [vmem:[%s4880 + $0x4] sm:$0xf]
      %v4883 = vld [vmem:[%s4880 + $0x8] sm:$0xf]
      %v4884 = vld [vmem:[%s4880 + $0xc] sm:$0xf]
      %v4885 = vld [vmem:[%s4880 + $0x10] sm:$0xf]
      %v4886 = vld [vmem:[%s4880 + $0x14] sm:$0xf]
      %v4887 = vld [vmem:[%s4880 + $0x18] sm:$0xf]
      %v4888 = vld [vmem:[%s4880 + $0x1c] sm:$0xf]
      %v4891 = vunpack.c.l.b16 %v4248
      %v4892 = vunpack.c.l.b16 %v4249
      %v4893 = vpack.c.b16 %v4892, %v4891
      %v4902 = vunpack.c.l.b16 %v4881
      %v4903 = vunpack.c.l.b16 %v4882
      %v4904 = vunpack.c.l.b16 %v4883
      %v4905 = vunpack.c.l.b16 %v4884
      %v4906 = vunpack.c.l.b16 %v4885
      %v4907 = vunpack.c.l.b16 %v4886
      %v4908 = vunpack.c.l.b16 %v4887
      %v4909 = vunpack.c.l.b16 %v4888
      %v4910 = vpack.c.b16 %v4903, %v4902
      %v4911 = vpack.c.b16 %v4905, %v4904
      %v4912 = vpack.c.b16 %v4907, %v4906
      %v4913 = vpack.c.b16 %v4909, %v4908
      %v4919 = vsel %vm3894, %v4893, 0
      %4921 = vmatpush.bf16.msra.mxu0 0
      %4922 = vmatpush.bf16.msra.mxu0 0
      %4923 = vmatpush.bf16.msra.mxu0 0
      %4924 = vmatpush.bf16.msra.mxu0 0
      %4925 = vmatpush.bf16.msra.mxu0 %v4913
      %4926 = vmatpush.bf16.msra.mxu0 %v4912
      %4927 = vmatpush.bf16.msra.mxu0 %v4911
      %4928 = vmatpush.bf16.msra.mxu0 %v4910
      %4929 = vmatmul.bf16.gmra.mxu0 %v4919
      %v4930 = vpop.f32.mrf.mxu0
      %v4931 = vadd.f32 0.0, %v4930
      %v4932 = vpop.f32.mrf.mxu0
      %v4933 = vadd.f32 0.0, %v4932
      %4934 = vdwg.mxu0
      %v4935 = vadd.f32 %v4878, %v4931
      %v4936 = vadd.f32 %v4879, %v4933
      %s4937 = scalar_lea.vmem %s5, 384
      %v4938 = vld [vmem:[%s4937] sm:$0xf]
      %v4939 = vld [vmem:[%s4937 + $0x4] sm:$0xf]
      %v4940 = vld [vmem:[%s4937 + $0x8] sm:$0xf]
      %v4941 = vld [vmem:[%s4937 + $0xc] sm:$0xf]
      %v4942 = vld [vmem:[%s4937 + $0x10] sm:$0xf]
      %v4943 = vld [vmem:[%s4937 + $0x14] sm:$0xf]
      %v4944 = vld [vmem:[%s4937 + $0x18] sm:$0xf]
      %v4945 = vld [vmem:[%s4937 + $0x1c] sm:$0xf]
      %v4948 = vunpack.c.l.b16 %v4250
      %v4949 = vunpack.c.l.b16 %v4251
      %v4950 = vpack.c.b16 %v4949, %v4948
      %v4959 = vunpack.c.l.b16 %v4938
      %v4960 = vunpack.c.l.b16 %v4939
      %v4961 = vunpack.c.l.b16 %v4940
      %v4962 = vunpack.c.l.b16 %v4941
      %v4963 = vunpack.c.l.b16 %v4942
      %v4964 = vunpack.c.l.b16 %v4943
      %v4965 = vunpack.c.l.b16 %v4944
      %v4966 = vunpack.c.l.b16 %v4945
      %v4967 = vpack.c.b16 %v4960, %v4959
      %v4968 = vpack.c.b16 %v4962, %v4961
      %v4969 = vpack.c.b16 %v4964, %v4963
      %v4970 = vpack.c.b16 %v4966, %v4965
      %v4976 = vsel %vm3894, %v4950, 0
      %4978 = vmatpush.bf16.msra.mxu0 0
      %4979 = vmatpush.bf16.msra.mxu0 0
      %4980 = vmatpush.bf16.msra.mxu0 0
      %4981 = vmatpush.bf16.msra.mxu0 0
      %4982 = vmatpush.bf16.msra.mxu0 %v4970
      %4983 = vmatpush.bf16.msra.mxu0 %v4969
      %4984 = vmatpush.bf16.msra.mxu0 %v4968
      %4985 = vmatpush.bf16.msra.mxu0 %v4967
      %4986 = vmatmul.bf16.gmra.mxu0 %v4976
      %v4987 = vpop.f32.mrf.mxu0
      %v4988 = vadd.f32 0.0, %v4987
      %v4989 = vpop.f32.mrf.mxu0
      %v4990 = vadd.f32 0.0, %v4989
      %4991 = vdwg.mxu0
      %v4992 = vadd.f32 %v4935, %v4988
      %v4993 = vadd.f32 %v4936, %v4990
      %s4994 = scalar_lea.vmem %s5, 416
      %v4995 = vld [vmem:[%s4994] sm:$0xf]
      %v4996 = vld [vmem:[%s4994 + $0x4] sm:$0xf]
      %v4997 = vld [vmem:[%s4994 + $0x8] sm:$0xf]
      %v4998 = vld [vmem:[%s4994 + $0xc] sm:$0xf]
      %v4999 = vld [vmem:[%s4994 + $0x10] sm:$0xf]
      %v5000 = vld [vmem:[%s4994 + $0x14] sm:$0xf]
      %v5001 = vld [vmem:[%s4994 + $0x18] sm:$0xf]
      %v5002 = vld [vmem:[%s4994 + $0x1c] sm:$0xf]
      %v5005 = vunpack.c.l.b16 %v4252
      %v5006 = vunpack.c.l.b16 %v4253
      %v5007 = vpack.c.b16 %v5006, %v5005
      %v5016 = vunpack.c.l.b16 %v4995
      %v5017 = vunpack.c.l.b16 %v4996
      %v5018 = vunpack.c.l.b16 %v4997
      %v5019 = vunpack.c.l.b16 %v4998
      %v5020 = vunpack.c.l.b16 %v4999
      %v5021 = vunpack.c.l.b16 %v5000
      %v5022 = vunpack.c.l.b16 %v5001
      %v5023 = vunpack.c.l.b16 %v5002
      %v5024 = vpack.c.b16 %v5017, %v5016
      %v5025 = vpack.c.b16 %v5019, %v5018
      %v5026 = vpack.c.b16 %v5021, %v5020
      %v5027 = vpack.c.b16 %v5023, %v5022
      %v5033 = vsel %vm3894, %v5007, 0
      %5035 = vmatpush.bf16.msra.mxu0 0
      %5036 = vmatpush.bf16.msra.mxu0 0
      %5037 = vmatpush.bf16.msra.mxu0 0
      %5038 = vmatpush.bf16.msra.mxu0 0
      %5039 = vmatpush.bf16.msra.mxu0 %v5027
      %5040 = vmatpush.bf16.msra.mxu0 %v5026
      %5041 = vmatpush.bf16.msra.mxu0 %v5025
      %5042 = vmatpush.bf16.msra.mxu0 %v5024
      %5043 = vmatmul.bf16.gmra.mxu0 %v5033
      %v5044 = vpop.f32.mrf.mxu0
      %v5045 = vadd.f32 0.0, %v5044
      %v5046 = vpop.f32.mrf.mxu0
      %v5047 = vadd.f32 0.0, %v5046
      %5048 = vdwg.mxu0
      %v5049 = vadd.f32 %v4992, %v5045
      %v5050 = vadd.f32 %v4993, %v5047
      %s5051 = scalar_lea.vmem %s5, 448
      %v5052 = vld [vmem:[%s5051] sm:$0xf]
      %v5053 = vld [vmem:[%s5051 + $0x4] sm:$0xf]
      %v5054 = vld [vmem:[%s5051 + $0x8] sm:$0xf]
      %v5055 = vld [vmem:[%s5051 + $0xc] sm:$0xf]
      %v5056 = vld [vmem:[%s5051 + $0x10] sm:$0xf]
      %v5057 = vld [vmem:[%s5051 + $0x14] sm:$0xf]
      %v5058 = vld [vmem:[%s5051 + $0x18] sm:$0xf]
      %v5059 = vld [vmem:[%s5051 + $0x1c] sm:$0xf]
      %v5062 = vunpack.c.l.b16 %v4254
      %v5063 = vunpack.c.l.b16 %v4255
      %v5064 = vpack.c.b16 %v5063, %v5062
      %v5073 = vunpack.c.l.b16 %v5052
      %v5074 = vunpack.c.l.b16 %v5053
      %v5075 = vunpack.c.l.b16 %v5054
      %v5076 = vunpack.c.l.b16 %v5055
      %v5077 = vunpack.c.l.b16 %v5056
      %v5078 = vunpack.c.l.b16 %v5057
      %v5079 = vunpack.c.l.b16 %v5058
      %v5080 = vunpack.c.l.b16 %v5059
      %v5081 = vpack.c.b16 %v5074, %v5073
      %v5082 = vpack.c.b16 %v5076, %v5075
      %v5083 = vpack.c.b16 %v5078, %v5077
      %v5084 = vpack.c.b16 %v5080, %v5079
      %v5090 = vsel %vm3894, %v5064, 0
      %5092 = vmatpush.bf16.msra.mxu0 0
      %5093 = vmatpush.bf16.msra.mxu0 0
      %5094 = vmatpush.bf16.msra.mxu0 0
      %5095 = vmatpush.bf16.msra.mxu0 0
      %5096 = vmatpush.bf16.msra.mxu0 %v5084
      %5097 = vmatpush.bf16.msra.mxu0 %v5083
      %5098 = vmatpush.bf16.msra.mxu0 %v5082
      %5099 = vmatpush.bf16.msra.mxu0 %v5081
      %5100 = vmatmul.bf16.gmra.mxu0 %v5090
      %v5101 = vpop.f32.mrf.mxu0
      %v5102 = vadd.f32 0.0, %v5101
      %v5103 = vpop.f32.mrf.mxu0
      %v5104 = vadd.f32 0.0, %v5103
      %5105 = vdwg.mxu0
      %v5106 = vadd.f32 %v5049, %v5102
      %v5107 = vadd.f32 %v5050, %v5104
      %s5108 = scalar_lea.vmem %s5, 480
      %v5109 = vld [vmem:[%s5108] sm:$0xf]
      %v5110 = vld [vmem:[%s5108 + $0x4] sm:$0xf]
      %v5111 = vld [vmem:[%s5108 + $0x8] sm:$0xf]
      %v5112 = vld [vmem:[%s5108 + $0xc] sm:$0xf]
      %v5113 = vld [vmem:[%s5108 + $0x10] sm:$0xf]
      %v5114 = vld [vmem:[%s5108 + $0x14] sm:$0xf]
      %v5115 = vld [vmem:[%s5108 + $0x18] sm:$0xf]
      %v5116 = vld [vmem:[%s5108 + $0x1c] sm:$0xf]
      %v5119 = vunpack.c.l.b16 %v4256
      %v5120 = vunpack.c.l.b16 %v4257
      %v5121 = vpack.c.b16 %v5120, %v5119
      %v5130 = vunpack.c.l.b16 %v5109
      %v5131 = vunpack.c.l.b16 %v5110
      %v5132 = vunpack.c.l.b16 %v5111
      %v5133 = vunpack.c.l.b16 %v5112
      %v5134 = vunpack.c.l.b16 %v5113
      %v5135 = vunpack.c.l.b16 %v5114
      %v5136 = vunpack.c.l.b16 %v5115
      %v5137 = vunpack.c.l.b16 %v5116
      %v5138 = vpack.c.b16 %v5131, %v5130
      %v5139 = vpack.c.b16 %v5133, %v5132
      %v5140 = vpack.c.b16 %v5135, %v5134
      %v5141 = vpack.c.b16 %v5137, %v5136
      %v5147 = vsel %vm3894, %v5121, 0
      %5149 = vmatpush.bf16.msra.mxu0 0
      %5150 = vmatpush.bf16.msra.mxu0 0
      %5151 = vmatpush.bf16.msra.mxu0 0
      %5152 = vmatpush.bf16.msra.mxu0 0
      %5153 = vmatpush.bf16.msra.mxu0 %v5141
      %5154 = vmatpush.bf16.msra.mxu0 %v5140
      %5155 = vmatpush.bf16.msra.mxu0 %v5139
      %5156 = vmatpush.bf16.msra.mxu0 %v5138
      %5157 = vmatmul.bf16.gmra.mxu0 %v5147
      %v5158 = vpop.f32.mrf.mxu0
      %v5159 = vadd.f32 0.0, %v5158
      %v5160 = vpop.f32.mrf.mxu0
      %v5161 = vadd.f32 0.0, %v5160
      %5162 = vdwg.mxu0
      %v5163 = vadd.f32 %v5106, %v5159
      %v5164 = vadd.f32 %v5107, %v5161
      %v5165 = vadd.f32 %v5163, %v5164
      %v5166 = vrot.slane %v5165, 4
      %v5167 = vadd.f32 %v5165, %v5166
      %v5168 = vrot.slane %v5167, 2
      %v5169 = vadd.f32 %v5167, %v5168
      %v5170 = vrot.slane %v5169, 1
      %v5171 = vadd.f32 %v5169, %v5170
      %v5172 = vrcp.pop 16.0
      %v5173 = vmul.f32 16.0, %v5172
      %v5174 = vsub.f32 1.0, %v5173
      %v5175 = vmul.f32 %v5172, %v5174
      %v5176 = vadd.f32 %v5172, %v5175
      %vm5177 = vweird.f32 %v5172
      %v5178 = vsel %vm5177, %v5172, %v5176
      %v5179 = vmul.f32 %v5171, %v5178
      %v5180 = vsub.f32 %v5163, %v5179
      %v5181 = vsub.f32 %v5164, %v5179
      %v5182 = vmul.f32 %v5180, %v5180
      %v5183 = vmul.f32 %v5181, %v5181
      %v5184 = vadd.f32 %v5182, %v5183
      %v5185 = vrot.slane %v5184, 4
      %v5186 = vadd.f32 %v5184, %v5185
      %v5187 = vrot.slane %v5186, 2
      %v5188 = vadd.f32 %v5186, %v5187
      %v5189 = vrot.slane %v5188, 1
      %v5190 = vadd.f32 %v5188, %v5189
      %v5191 = vmul.f32 %v5190, %v5178
      %v5192 = vadd.f32 %v5191, 1e-05
      %v5193 = vrsqrt.pop %v5192
      %v5194 = vmul.f32 %v5193, %v5192
      %v5195 = vmul.f32 %v5194, %v5193
      %v5196 = vmul.f32 0.5, %v5195
      %v5197 = vsub.f32 1.5, %v5196
      %v5198 = vmul.f32 %v5193, %v5197
      %vm5199 = vweird.f32 %v5192
      %vm5200 = vweird.f32 %v5193
      %vm5201 = vmor %vm5199, %vm5200
      %v5202 = vsel %vm5201, %v5193, %v5198
      %v5203 = vmul.f32 %v5180, %v5202
      %v5204 = vmul.f32 %v5181, %v5202
      %vm5205 = vcmp.ge.f32.partialorder %v5203, 0.0
      %vm5206 = vcmp.ge.f32.partialorder %v5204, 0.0
      %v5207 = vmul.f32 %v5203, 0.2
      %v5208 = vmul.f32 %v5204, 0.2
      %v5209 = vsel %vm5205, %v5203, %v5207
      %v5210 = vsel %vm5206, %v5204, %v5208
      %v5211 = vmul.f32 %v5209, %v471
      %v5212 = vmul.f32 %v5210, %v472
      %v5213 = vadd.f32 %v5211, %v5212
      %5214 = vadd.xlane.f32.xlu0 %v5213
      %v5215 = vpop.xlane.xlu0 %5214
      %v5216 = vrot.slane %v5215, 4
      %v5217 = vadd.f32 %v5215, %v5216
      %v5218 = vrot.slane %v5217, 2
      %v5219 = vadd.f32 %v5217, %v5218
      %v5220 = vrot.slane %v5219, 1
      %v5221 = vadd.f32 %v5219, %v5220
      %s5222 = vtos %v5221
      %v5223 = vstv %s5222
      %v5224 = vadd.f32 %v5223, %v473
      %vm5225 = vcmask 0
      %5226 = vst.msk [vmem:[%s303] sm:$0x1] %vm5225, %v5224
      %p5227 = scmp.lt.s32.totalorder %s21, 1
      %s5228 = scalar_select %p5227, %s21, 1
      %s5229 = scalar_lea.vmem %s8, %s5228
      // Predicated region
      $region53: #{discriminator_forward.1} parent=51 // pred_check
        %p5230 = pneg %p212
      $region54: #{discriminator_forward.1} parent=51 // pred_check_branch
        %5232 = sbr.rel (%p5230) target = $region56
      $region55: #{discriminator_forward.1} parent=51 // pred_region
        _
      $region56: #{discriminator_forward.1} parent=51 // pred_fallthru
        _
    $region52: #{discriminator_forward.1} parent=5 // pred_fallthru
      _
    %p5233 = scmp.le.s32.totalorder 2, %s16
    // Predicated region
    $region57: #{discriminator_forward.1} parent=5 // pred_check
      %p5234 = pneg %p5233
    $region58: #{discriminator_forward.1} parent=5 // pred_check_branch
      %5236 = sbr.rel (%p5234) target = $region60
    $region59: #{discriminator_forward.1} parent=5 // pred_region
      %s5237 = ssub.s32 %s16, 2
      // Predicated region
      $region61: #{discriminator_forward.1} parent=59 // pred_check
        %p5238 = pneg %p218
      $region62: #{discriminator_forward.1} parent=59 // pred_check_branch
        %5240 = sbr.rel (%p5238) target = $region64
      $region63: #{discriminator_forward.1} parent=59 // pred_region
        %p5241 = scmp.lt.s32.totalorder %s22, 1
        %s5242 = scalar_select %p5241, %s22, 1
        %s5243 = scalar_lea.vmem %s8, %s5242
      $region64: #{discriminator_forward.1} parent=59 // pred_fallthru
        _
    $region60: #{discriminator_forward.1} parent=5 // pred_fallthru
      _
  $region6: #{discriminator_forward.1} parent=0 // loop_footer
    %s20 = sadd.s32 1, %s16
  $region7: #{discriminator_forward.1} parent=0 // loop_footer_branch
    %15 = sbr.rel target = $region3
  $region8: #{discriminator_forward.1} parent=0 // loop_exit
    _

</llo_original>
